<compile_context>
chip_gen: v6e
topology: v6e:2x2x1
jax: 0.10.0
libtpu: 0.0.40
codegen_flags: <defaults>
</compile_context>

<pallas_src>
import functools

import jax
import jax.numpy as jnp
from jax.experimental import pallas as pl
from jax.experimental.pallas import tpu as pltpu

EPS = 1e-5          # nn.BatchNorm3d default eps
LANE = 128          # TPU lane width
TILE_M_MAX = 2048   # max rows per M-tile (multiple of 256; fits v7x scoped VMEM)


def _round_up(x, m):
    return (x + m - 1) // m * m


def _choose_tile_m(m, tm_max=TILE_M_MAX):
    # Big streaming tiles (mem-bound), but keep >= 2 tiles when possible so the
    # single "parallel" grid axis shards across both v7x TensorCores.
    return min(tm_max, max(256, _round_up((m + 1) // 2, 256)))


# ---------------------------------------------------------------------------
# Pass 1 (stats only): conv tile = one lane-dense MXU matmul; reduce to per-tile
# per-channel sum and sum-of-squares.  No conv output is written to HBM.
# ---------------------------------------------------------------------------
def conv_stats_kernel(taps_ref, w_ref, sum_ref, sumsq_ref):
    y = jnp.dot(taps_ref[...], w_ref[...], preferred_element_type=jnp.float32)
    sum_ref[...] = jnp.sum(y, axis=0, keepdims=True)
    sumsq_ref[...] = jnp.sum(y * y, axis=0, keepdims=True)


# ---------------------------------------------------------------------------
# Pass 2 (fused epilogue): recompute the conv tile, apply the folded BatchNorm
# per-channel affine + ReLU, store once in compute dtype (bf16 production path).
# ---------------------------------------------------------------------------
def conv_bn_relu_kernel(taps_ref, w_ref, scale_ref, shift_ref, o_ref):
    y = jnp.dot(taps_ref[...], w_ref[...], preferred_element_type=jnp.float32)
    o_ref[...] = jnp.maximum(
        y * scale_ref[...] + shift_ref[...], 0.0
    ).astype(o_ref.dtype)


# ---------------------------------------------------------------------------
# JAX glue: packed im2col.  27 shifted views concatenated on the channel axis,
# with the K padding folded into the same concatenate (no extra pad pass).
# ---------------------------------------------------------------------------
def _im2col_packed(x_ndhwc, k_pad, m_pad, compute_dtype):
    n, d, h, w, c = x_ndhwc.shape
    m = n * d * h * w
    k = 27 * c
    xp = jnp.pad(x_ndhwc.astype(compute_dtype),
                 ((0, 0), (1, 1), (1, 1), (1, 1), (0, 0)))
    cols = [
        xp[:, kd:kd + d, kh:kh + h, kw:kw + w, :]
        for kd in range(3) for kh in range(3) for kw in range(3)
    ]
    if k_pad > k:  # fold K padding into the single concat
        cols.append(jnp.zeros((n, d, h, w, k_pad - k), compute_dtype))
    taps = jnp.concatenate(cols, axis=-1).reshape(m, k_pad)
    if m_pad > m:  # only when tm does not divide M (toy/real shapes usually divide)
        taps = jnp.concatenate(
            [taps, jnp.zeros((m_pad - m, k_pad), compute_dtype)], axis=0)
    return taps


def conv_bn_relu(x_ndhwc, w, b, gamma, beta, *, compute_dtype, tm_max=TILE_M_MAX):
    n, d, h, wd, cin = x_ndhwc.shape
    cout = w.shape[-1]
    m = n * d * h * wd
    k = 27 * cin
    k_pad = _round_up(k, LANE)
    c_pad = _round_up(cout, LANE)
    tm = _choose_tile_m(m, tm_max)
    m_pad = _round_up(m, tm)
    n_tiles = m_pad // tm

    itemsize = jnp.dtype(compute_dtype).itemsize

    # Lane-dense packed operands (zero padding on K / Cout / M rows is exact).
    taps = _im2col_packed(x_ndhwc, k_pad, m_pad, compute_dtype)
    w_mat = jnp.pad(w.reshape(k, cout),
                    ((0, k_pad - k), (0, c_pad - cout))).astype(compute_dtype)

    # Scoped-VMEM budget from the actual double-buffered footprint (pass 2 is the
    # larger one); floor 32 MiB, cap 48 MiB so it is safe on v5e/v6e/v7x alike.
    step_bytes = (2 * tm * k_pad * itemsize        # taps tile, double buffered
                  + 2 * k_pad * c_pad * itemsize   # resident weights
                  + 2 * tm * c_pad * itemsize      # output tile, double buffered
                  + 8 * c_pad * 4)                 # scale/shift/stats vectors
    vmem_limit = int(min(48 << 20, max(32 << 20, 2 * step_bytes)))
    cparams = pltpu.CompilerParams(dimension_semantics=("parallel",),
                                   vmem_limit_bytes=vmem_limit)

    cost1 = pl.CostEstimate(
        flops=2 * m_pad * k_pad * c_pad,
        transcendentals=0,
        bytes_accessed=(m_pad * k_pad * itemsize + k_pad * c_pad * itemsize
                        + 2 * n_tiles * c_pad * 4),
    )

    # ---- Pass 1: per-tile BN partial sums (no conv output written). ----
    tile_sum, tile_sumsq = pl.pallas_call(
        conv_stats_kernel,
        out_shape=(
            jax.ShapeDtypeStruct((n_tiles, 1, c_pad), jnp.float32),
            jax.ShapeDtypeStruct((n_tiles, 1, c_pad), jnp.float32),
        ),
        grid=(n_tiles,),
        in_specs=[
            pl.BlockSpec((tm, k_pad), lambda i: (i, 0)),       # taps M-tile
            pl.BlockSpec((k_pad, c_pad), lambda i: (0, 0)),    # packed weights
        ],
        out_specs=(
            pl.BlockSpec((None, 1, c_pad), lambda i: (i, 0, 0)),
            pl.BlockSpec((None, 1, c_pad), lambda i: (i, 0, 0)),
        ),
        compiler_params=cparams,
        cost_estimate=cost1,
    )(taps, w_mat)

    # Cross-tile BN reduction (tiny: 2 * n_tiles * c_pad floats) + (scale, shift).
    # The conv bias shifts every sample equally per channel, so it cancels exactly
    # under training-mode BatchNorm: (y + b) - mean(y + b) == y - mean(y).
    del b
    total = jnp.sum(tile_sum, axis=(0, 1))[:cout]
    total_sq = jnp.sum(tile_sumsq, axis=(0, 1))[:cout]
    mean = total / m
    var = jnp.maximum(total_sq / m - mean * mean, 0.0)   # biased var (training BN)
    inv = jax.lax.rsqrt(var + EPS)
    scale = gamma * inv
    shift = beta - mean * scale
    scale_p = jnp.zeros((1, c_pad), jnp.float32).at[0, :cout].set(scale)
    shift_p = jnp.zeros((1, c_pad), jnp.float32).at[0, :cout].set(shift)

    cost2 = pl.CostEstimate(
        flops=2 * m_pad * k_pad * c_pad + 3 * m_pad * c_pad,
        transcendentals=0,
        bytes_accessed=(m_pad * k_pad * itemsize + k_pad * c_pad * itemsize
                        + 2 * c_pad * 4 + m_pad * c_pad * itemsize),
    )

    # ---- Pass 2: recompute conv, fused BN affine + ReLU, single bf16/f32 store. ----
    out = pl.pallas_call(
        conv_bn_relu_kernel,
        out_shape=jax.ShapeDtypeStruct((m_pad, c_pad), compute_dtype),
        grid=(n_tiles,),
        in_specs=[
            pl.BlockSpec((tm, k_pad), lambda i: (i, 0)),
            pl.BlockSpec((k_pad, c_pad), lambda i: (0, 0)),
            pl.BlockSpec((1, c_pad), lambda i: (0, 0)),
            pl.BlockSpec((1, c_pad), lambda i: (0, 0)),
        ],
        out_specs=pl.BlockSpec((tm, c_pad), lambda i: (i, 0)),
        compiler_params=cparams,
        cost_estimate=cost2,
    )(taps, w_mat, scale_p, shift_p)

    return out[:m, :cout].reshape(n, d, h, wd, cout)


# ---------------------------------------------------------------------------
# Full module forward (PyTorch NCDHW in / NCDHW out).
# ---------------------------------------------------------------------------
@functools.partial(jax.jit, static_argnames=("compute_dtype",))
def up_double_3d_conv(x_ncdhw, params, compute_dtype=jnp.bfloat16):
    x = jnp.transpose(x_ncdhw, (0, 2, 3, 4, 1))  # NCDHW -> NDHWC (channels last)
    y = conv_bn_relu(x, params["w1"], params["b1"], params["g1"], params["bt1"],
                     compute_dtype=compute_dtype)
    z = conv_bn_relu(y, params["w2"], params["b2"], params["g2"], params["bt2"],
                     compute_dtype=compute_dtype)
    return jnp.transpose(z, (0, 4, 1, 2, 3)).astype(jnp.float32)  # NDHWC -> NCDHW


# ---------------------------------------------------------------------------
# Pure-JAX reference (for correctness check) -- includes the conv bias.
# ---------------------------------------------------------------------------
def ref_forward(x_ncdhw, params):
    def conv(x, w, b):
        wt = jnp.transpose(w, (4, 3, 0, 1, 2))  # (3,3,3,Cin,Cout) -> OIDHW
        y = jax.lax.conv_general_dilated(
            x, wt, window_strides=(1, 1, 1),
            padding=((1, 1), (1, 1), (1, 1)),
            dimension_numbers=("NCDHW", "OIDHW", "NCDHW"),
        )
        return y + b.reshape(1, -1, 1, 1, 1)

    def bn_relu(x, g, bt):
        mean = jnp.mean(x, axis=(0, 2, 3, 4), keepdims=True)
        var = jnp.mean((x - mean) ** 2, axis=(0, 2, 3, 4), keepdims=True)
        y = (x - mean) * jax.lax.rsqrt(var + EPS)
        y = y * g.reshape(1, -1, 1, 1, 1) + bt.reshape(1, -1, 1, 1, 1)
        return jnp.maximum(y, 0.0)

    y = bn_relu(conv(x_ncdhw, params["w1"], params["b1"]), params["g1"], params["bt1"])
    return bn_relu(conv(y, params["w2"], params["b2"]), params["g2"], params["bt2"])


# ---------------------------------------------------------------------------
# Deterministic parameter init (shapes follow nn.Conv3d / nn.BatchNorm3d).
# Conv weights stored as (3, 3, 3, Cin, Cout); BN affine: gamma=1, beta=0.
# ---------------------------------------------------------------------------
def init_params(key, in_ch, out_ch):
    k1, k2, k3, k4 = jax.random.split(key, 4)
    return {
        "w1": 0.1 * jax.random.normal(k1, (3, 3, 3, in_ch, out_ch), jnp.float32),
        "b1": 0.01 * jax.random.normal(k2, (out_ch,), jnp.float32),
        "g1": jnp.ones((out_ch,), jnp.float32),
        "bt1": jnp.zeros((out_ch,), jnp.float32),
        "w2": 0.1 * jax.random.normal(k3, (3, 3, 3, out_ch, out_ch), jnp.float32),
        "b2": 0.01 * jax.random.normal(k4, (out_ch,), jnp.float32),
        "g2": jnp.ones((out_ch,), jnp.float32),
        "bt2": jnp.zeros((out_ch,), jnp.float32),
    }


if __name__ == "__main__":
    key = jax.random.PRNGKey(0)
    kx, kp = jax.random.split(key)

    N, IN_CH, OUT_CH, D, H, W = 2, 4, 8, 8, 8, 8
    x = jax.random.normal(kx, (N, IN_CH, D, H, W), jnp.float32)  # NCDHW like PyTorch
    params = init_params(kp, IN_CH, OUT_CH)

    ref = jax.block_until_ready(ref_forward(x, params))

    # f32 path: tight correctness check.
    out_f32 = jax.block_until_ready(
        up_double_3d_conv(x, params, compute_dtype=jnp.float32))
    assert out_f32.shape == (N, OUT_CH, D, H, W), out_f32.shape
    err_f32 = float(jnp.max(jnp.abs(out_f32 - ref)))
    assert err_f32 < 2e-2, err_f32

    # bf16 matmul path (default / production path): looser tolerance vs f32 reference.
    out_bf16 = jax.block_until_ready(
        up_double_3d_conv(x, params, compute_dtype=jnp.bfloat16))
    assert out_bf16.shape == (N, OUT_CH, D, H, W), out_bf16.shape
    err_bf16 = float(jnp.max(jnp.abs(out_bf16 - ref)))
    assert err_bf16 < 1.5e-1, err_bf16

    print("KERNEL_OK")
</pallas_src>

<mosaic_0001>
module attributes {stable_mosaic.version = 11 : i64} {
  func.func @conv_stats_kernel(%arg0: i32, %arg1: memref<512x128xf32, #tpu.memory_space<vmem>>, %arg2: memref<128x128xf32, #tpu.memory_space<vmem>>, %arg3: memref<1x1x128xf32, #tpu.memory_space<vmem>>, %arg4: memref<1x1x128xf32, #tpu.memory_space<vmem>>) attributes {dimension_semantics = [#tpu.dimension_semantics<parallel>], iteration_bounds = array<i64: 2>, scalar_prefetch = 0 : i64, scratch_operands = 0 : i64, tpu.core_type = #tpu.core_type<tc>, window_params = [{transform_indices = @transform_0, window_bounds = array<i64: 512, 128>}, {pipeline_mode = #tpu.pipeline_mode<synchronous>, transform_indices = @transform_1, window_bounds = array<i64: 128, 128>}, {transform_indices = @transform_2, window_bounds = array<i64: 1, 1, 128>}, {transform_indices = @transform_3, window_bounds = array<i64: 1, 1, 128>}]} {
    %c0 = arith.constant 0 : index
    %c0_0 = arith.constant 0 : index
    %0 = vector.load %arg1[%c0, %c0_0] : memref<512x128xf32, #tpu.memory_space<vmem>>, vector<512x128xf32>
    %c0_1 = arith.constant 0 : index
    %c0_2 = arith.constant 0 : index
    %1 = vector.load %arg2[%c0_1, %c0_2] : memref<128x128xf32, #tpu.memory_space<vmem>>, vector<128x128xf32>
    %cst = arith.constant dense<0.000000e+00> : vector<512x128xf32>
    %2 = tpu.matmul %0, %1, %cst {dimension_numbers = #tpu.dot_dimension_numbers<[1], [0], [0], [1], [0, 0, 1, 1], [], []>} : vector<512x128xf32>, vector<128x128xf32>, vector<512x128xf32> -> vector<512x128xf32>
    %cst_3 = arith.constant dense<0.000000e+00> : vector<128xf32>
    %3 = vector.multi_reduction <add>, %2, %cst_3 [0] : vector<512x128xf32> to vector<128xf32>
    %4 = vector.shape_cast %3 : vector<128xf32> to vector<1x128xf32>
    %c0_4 = arith.constant 0 : index
    %c0_5 = arith.constant 0 : index
    %c0_6 = arith.constant 0 : index
    %5 = vector.load %arg3[%c0_4, %c0_5, %c0_6] : memref<1x1x128xf32, #tpu.memory_space<vmem>>, vector<1x1x128xf32>
    %6 = vector.shape_cast %5 : vector<1x1x128xf32> to vector<1x128xf32>
    %7 = vector.shape_cast %4 : vector<1x128xf32> to vector<1x1x128xf32>
    tpu.vector_store %arg3[%c0_4, %c0_5, %c0_6], %7 {strides = array<i32>} : memref<1x1x128xf32, #tpu.memory_space<vmem>>, vector<1x1x128xf32>,
    %8 = arith.mulf %2, %2 : vector<512x128xf32>
    %cst_7 = arith.constant dense<0.000000e+00> : vector<128xf32>
    %9 = vector.multi_reduction <add>, %8, %cst_7 [0] : vector<512x128xf32> to vector<128xf32>
    %10 = vector.shape_cast %9 : vector<128xf32> to vector<1x128xf32>
    %c0_8 = arith.constant 0 : index
    %c0_9 = arith.constant 0 : index
    %c0_10 = arith.constant 0 : index
    %11 = vector.load %arg4[%c0_8, %c0_9, %c0_10] : memref<1x1x128xf32, #tpu.memory_space<vmem>>, vector<1x1x128xf32>
    %12 = vector.shape_cast %11 : vector<1x1x128xf32> to vector<1x128xf32>
    %13 = vector.shape_cast %10 : vector<1x128xf32> to vector<1x1x128xf32>
    tpu.vector_store %arg4[%c0_8, %c0_9, %c0_10], %13 {strides = array<i32>} : memref<1x1x128xf32, #tpu.memory_space<vmem>>, vector<1x1x128xf32>,
    return
  }
  func.func @transform_0(%arg0: i32) -> (i32, i32) {
    %c0_i32 = arith.constant 0 : i32
    %c0_i32_0 = arith.constant 0 : i32
    return %arg0, %c0_i32 : i32, i32
  }
  func.func @transform_1(%arg0: i32) -> (i32, i32) {
    %c0_i32 = arith.constant 0 : i32
    %c0_i32_0 = arith.constant 0 : i32
    %c0_i32_1 = arith.constant 0 : i32
    return %c0_i32, %c0_i32_0 : i32, i32
  }
  func.func @transform_2(%arg0: i32) -> (i32, i32, i32) {
    %c0_i32 = arith.constant 0 : i32
    %c0_i32_0 = arith.constant 0 : i32
    %c0_i32_1 = arith.constant 0 : i32
    return %arg0, %c0_i32, %c0_i32_0 : i32, i32, i32
  }
  func.func @transform_3(%arg0: i32) -> (i32, i32, i32) {
    %c0_i32 = arith.constant 0 : i32
    %c0_i32_0 = arith.constant 0 : i32
    %c0_i32_1 = arith.constant 0 : i32
    return %arg0, %c0_i32, %c0_i32_0 : i32, i32, i32
  }
}

module attributes {stable_mosaic.version = 11 : i64} {
  func.func @conv_bn_relu_kernel(%arg0: i32, %arg1: memref<512x128xf32, #tpu.memory_space<vmem>>, %arg2: memref<128x128xf32, #tpu.memory_space<vmem>>, %arg3: memref<1x128xf32, #tpu.memory_space<vmem>>, %arg4: memref<1x128xf32, #tpu.memory_space<vmem>>, %arg5: memref<512x128xf32, #tpu.memory_space<vmem>>) attributes {dimension_semantics = [#tpu.dimension_semantics<parallel>], iteration_bounds = array<i64: 2>, scalar_prefetch = 0 : i64, scratch_operands = 0 : i64, tpu.core_type = #tpu.core_type<tc>, window_params = [{transform_indices = @transform_0, window_bounds = array<i64: 512, 128>}, {pipeline_mode = #tpu.pipeline_mode<synchronous>, transform_indices = @transform_1, window_bounds = array<i64: 128, 128>}, {pipeline_mode = #tpu.pipeline_mode<synchronous>, transform_indices = @transform_2, window_bounds = array<i64: 1, 128>}, {pipeline_mode = #tpu.pipeline_mode<synchronous>, transform_indices = @transform_3, window_bounds = array<i64: 1, 128>}, {transform_indices = @transform_4, window_bounds = array<i64: 512, 128>}]} {
    %c0 = arith.constant 0 : index
    %c0_0 = arith.constant 0 : index
    %0 = vector.load %arg1[%c0, %c0_0] : memref<512x128xf32, #tpu.memory_space<vmem>>, vector<512x128xf32>
    %c0_1 = arith.constant 0 : index
    %c0_2 = arith.constant 0 : index
    %1 = vector.load %arg2[%c0_1, %c0_2] : memref<128x128xf32, #tpu.memory_space<vmem>>, vector<128x128xf32>
    %cst = arith.constant dense<0.000000e+00> : vector<512x128xf32>
    %2 = tpu.matmul %0, %1, %cst {dimension_numbers = #tpu.dot_dimension_numbers<[1], [0], [0], [1], [0, 0, 1, 1], [], []>} : vector<512x128xf32>, vector<128x128xf32>, vector<512x128xf32> -> vector<512x128xf32>
    %c0_3 = arith.constant 0 : index
    %c0_4 = arith.constant 0 : index
    %3 = vector.load %arg3[%c0_3, %c0_4] : memref<1x128xf32, #tpu.memory_space<vmem>>, vector<1x128xf32>
    %4 = vector.broadcast %3 : vector<1x128xf32> to vector<512x128xf32>
    %5 = arith.mulf %2, %4 : vector<512x128xf32>
    %c0_5 = arith.constant 0 : index
    %c0_6 = arith.constant 0 : index
    %6 = vector.load %arg4[%c0_5, %c0_6] : memref<1x128xf32, #tpu.memory_space<vmem>>, vector<1x128xf32>
    %7 = vector.broadcast %6 : vector<1x128xf32> to vector<512x128xf32>
    %8 = arith.addf %5, %7 : vector<512x128xf32>
    %cst_7 = arith.constant 0.000000e+00 : f32
    %9 = vector.broadcast %cst_7 : f32 to vector<512x128xf32>
    %10 = arith.maximumf %8, %9 : vector<512x128xf32>
    %c0_8 = arith.constant 0 : index
    %c0_9 = arith.constant 0 : index
    %11 = vector.load %arg5[%c0_8, %c0_9] : memref<512x128xf32, #tpu.memory_space<vmem>>, vector<512x128xf32>
    tpu.vector_store %arg5[%c0_8, %c0_9], %10 {strides = array<i32>} : memref<512x128xf32, #tpu.memory_space<vmem>>, vector<512x128xf32>,
    return
  }
  func.func @transform_0(%arg0: i32) -> (i32, i32) {
    %c0_i32 = arith.constant 0 : i32
    %c0_i32_0 = arith.constant 0 : i32
    return %arg0, %c0_i32 : i32, i32
  }
  func.func @transform_1(%arg0: i32) -> (i32, i32) {
    %c0_i32 = arith.constant 0 : i32
    %c0_i32_0 = arith.constant 0 : i32
    %c0_i32_1 = arith.constant 0 : i32
    return %c0_i32, %c0_i32_0 : i32, i32
  }
  func.func @transform_2(%arg0: i32) -> (i32, i32) {
    %c0_i32 = arith.constant 0 : i32
    %c0_i32_0 = arith.constant 0 : i32
    %c0_i32_1 = arith.constant 0 : i32
    return %c0_i32, %c0_i32_0 : i32, i32
  }
  func.func @transform_3(%arg0: i32) -> (i32, i32) {
    %c0_i32 = arith.constant 0 : i32
    %c0_i32_0 = arith.constant 0 : i32
    %c0_i32_1 = arith.constant 0 : i32
    return %c0_i32, %c0_i32_0 : i32, i32
  }
  func.func @transform_4(%arg0: i32) -> (i32, i32) {
    %c0_i32 = arith.constant 0 : i32
    %c0_i32_0 = arith.constant 0 : i32
    return %arg0, %c0_i32 : i32, i32
  }
}

module attributes {stable_mosaic.version = 11 : i64} {
  func.func @conv_stats_kernel(%arg0: i32, %arg1: memref<512x256xf32, #tpu.memory_space<vmem>>, %arg2: memref<256x128xf32, #tpu.memory_space<vmem>>, %arg3: memref<1x1x128xf32, #tpu.memory_space<vmem>>, %arg4: memref<1x1x128xf32, #tpu.memory_space<vmem>>) attributes {dimension_semantics = [#tpu.dimension_semantics<parallel>], iteration_bounds = array<i64: 2>, scalar_prefetch = 0 : i64, scratch_operands = 0 : i64, tpu.core_type = #tpu.core_type<tc>, window_params = [{transform_indices = @transform_0, window_bounds = array<i64: 512, 256>}, {pipeline_mode = #tpu.pipeline_mode<synchronous>, transform_indices = @transform_1, window_bounds = array<i64: 256, 128>}, {transform_indices = @transform_2, window_bounds = array<i64: 1, 1, 128>}, {transform_indices = @transform_3, window_bounds = array<i64: 1, 1, 128>}]} {
    %c0 = arith.constant 0 : index
    %c0_0 = arith.constant 0 : index
    %0 = vector.load %arg1[%c0, %c0_0] : memref<512x256xf32, #tpu.memory_space<vmem>>, vector<512x256xf32>
    %c0_1 = arith.constant 0 : index
    %c0_2 = arith.constant 0 : index
    %1 = vector.load %arg2[%c0_1, %c0_2] : memref<256x128xf32, #tpu.memory_space<vmem>>, vector<256x128xf32>
    %cst = arith.constant dense<0.000000e+00> : vector<512x128xf32>
    %2 = tpu.matmul %0, %1, %cst {dimension_numbers = #tpu.dot_dimension_numbers<[1], [0], [0], [1], [0, 0, 1, 1], [], []>} : vector<512x256xf32>, vector<256x128xf32>, vector<512x128xf32> -> vector<512x128xf32>
    %cst_3 = arith.constant dense<0.000000e+00> : vector<128xf32>
    %3 = vector.multi_reduction <add>, %2, %cst_3 [0] : vector<512x128xf32> to vector<128xf32>
    %4 = vector.shape_cast %3 : vector<128xf32> to vector<1x128xf32>
    %c0_4 = arith.constant 0 : index
    %c0_5 = arith.constant 0 : index
    %c0_6 = arith.constant 0 : index
    %5 = vector.load %arg3[%c0_4, %c0_5, %c0_6] : memref<1x1x128xf32, #tpu.memory_space<vmem>>, vector<1x1x128xf32>
    %6 = vector.shape_cast %5 : vector<1x1x128xf32> to vector<1x128xf32>
    %7 = vector.shape_cast %4 : vector<1x128xf32> to vector<1x1x128xf32>
    tpu.vector_store %arg3[%c0_4, %c0_5, %c0_6], %7 {strides = array<i32>} : memref<1x1x128xf32, #tpu.memory_space<vmem>>, vector<1x1x128xf32>,
    %8 = arith.mulf %2, %2 : vector<512x128xf32>
    %cst_7 = arith.constant dense<0.000000e+00> : vector<128xf32>
    %9 = vector.multi_reduction <add>, %8, %cst_7 [0] : vector<512x128xf32> to vector<128xf32>
    %10 = vector.shape_cast %9 : vector<128xf32> to vector<1x128xf32>
    %c0_8 = arith.constant 0 : index
    %c0_9 = arith.constant 0 : index
    %c0_10 = arith.constant 0 : index
    %11 = vector.load %arg4[%c0_8, %c0_9, %c0_10] : memref<1x1x128xf32, #tpu.memory_space<vmem>>, vector<1x1x128xf32>
    %12 = vector.shape_cast %11 : vector<1x1x128xf32> to vector<1x128xf32>
    %13 = vector.shape_cast %10 : vector<1x128xf32> to vector<1x1x128xf32>
    tpu.vector_store %arg4[%c0_8, %c0_9, %c0_10], %13 {strides = array<i32>} : memref<1x1x128xf32, #tpu.memory_space<vmem>>, vector<1x1x128xf32>,
    return
  }
  func.func @transform_0(%arg0: i32) -> (i32, i32) {
    %c0_i32 = arith.constant 0 : i32
    %c0_i32_0 = arith.constant 0 : i32
    return %arg0, %c0_i32 : i32, i32
  }
  func.func @transform_1(%arg0: i32) -> (i32, i32) {
    %c0_i32 = arith.constant 0 : i32
    %c0_i32_0 = arith.constant 0 : i32
    %c0_i32_1 = arith.constant 0 : i32
    return %c0_i32, %c0_i32_0 : i32, i32
  }
  func.func @transform_2(%arg0: i32) -> (i32, i32, i32) {
    %c0_i32 = arith.constant 0 : i32
    %c0_i32_0 = arith.constant 0 : i32
    %c0_i32_1 = arith.constant 0 : i32
    return %arg0, %c0_i32, %c0_i32_0 : i32, i32, i32
  }
  func.func @transform_3(%arg0: i32) -> (i32, i32, i32) {
    %c0_i32 = arith.constant 0 : i32
    %c0_i32_0 = arith.constant 0 : i32
    %c0_i32_1 = arith.constant 0 : i32
    return %arg0, %c0_i32, %c0_i32_0 : i32, i32, i32
  }
}

module attributes {stable_mosaic.version = 11 : i64} {
  func.func @conv_bn_relu_kernel(%arg0: i32, %arg1: memref<512x256xf32, #tpu.memory_space<vmem>>, %arg2: memref<256x128xf32, #tpu.memory_space<vmem>>, %arg3: memref<1x128xf32, #tpu.memory_space<vmem>>, %arg4: memref<1x128xf32, #tpu.memory_space<vmem>>, %arg5: memref<512x128xf32, #tpu.memory_space<vmem>>) attributes {dimension_semantics = [#tpu.dimension_semantics<parallel>], iteration_bounds = array<i64: 2>, scalar_prefetch = 0 : i64, scratch_operands = 0 : i64, tpu.core_type = #tpu.core_type<tc>, window_params = [{transform_indices = @transform_0, window_bounds = array<i64: 512, 256>}, {pipeline_mode = #tpu.pipeline_mode<synchronous>, transform_indices = @transform_1, window_bounds = array<i64: 256, 128>}, {pipeline_mode = #tpu.pipeline_mode<synchronous>, transform_indices = @transform_2, window_bounds = array<i64: 1, 128>}, {pipeline_mode = #tpu.pipeline_mode<synchronous>, transform_indices = @transform_3, window_bounds = array<i64: 1, 128>}, {transform_indices = @transform_4, window_bounds = array<i64: 512, 128>}]} {
    %c0 = arith.constant 0 : index
    %c0_0 = arith.constant 0 : index
    %0 = vector.load %arg1[%c0, %c0_0] : memref<512x256xf32, #tpu.memory_space<vmem>>, vector<512x256xf32>
    %c0_1 = arith.constant 0 : index
    %c0_2 = arith.constant 0 : index
    %1 = vector.load %arg2[%c0_1, %c0_2] : memref<256x128xf32, #tpu.memory_space<vmem>>, vector<256x128xf32>
    %cst = arith.constant dense<0.000000e+00> : vector<512x128xf32>
    %2 = tpu.matmul %0, %1, %cst {dimension_numbers = #tpu.dot_dimension_numbers<[1], [0], [0], [1], [0, 0, 1, 1], [], []>} : vector<512x256xf32>, vector<256x128xf32>, vector<512x128xf32> -> vector<512x128xf32>
    %c0_3 = arith.constant 0 : index
    %c0_4 = arith.constant 0 : index
    %3 = vector.load %arg3[%c0_3, %c0_4] : memref<1x128xf32, #tpu.memory_space<vmem>>, vector<1x128xf32>
    %4 = vector.broadcast %3 : vector<1x128xf32> to vector<512x128xf32>
    %5 = arith.mulf %2, %4 : vector<512x128xf32>
    %c0_5 = arith.constant 0 : index
    %c0_6 = arith.constant 0 : index
    %6 = vector.load %arg4[%c0_5, %c0_6] : memref<1x128xf32, #tpu.memory_space<vmem>>, vector<1x128xf32>
    %7 = vector.broadcast %6 : vector<1x128xf32> to vector<512x128xf32>
    %8 = arith.addf %5, %7 : vector<512x128xf32>
    %cst_7 = arith.constant 0.000000e+00 : f32
    %9 = vector.broadcast %cst_7 : f32 to vector<512x128xf32>
    %10 = arith.maximumf %8, %9 : vector<512x128xf32>
    %c0_8 = arith.constant 0 : index
    %c0_9 = arith.constant 0 : index
    %11 = vector.load %arg5[%c0_8, %c0_9] : memref<512x128xf32, #tpu.memory_space<vmem>>, vector<512x128xf32>
    tpu.vector_store %arg5[%c0_8, %c0_9], %10 {strides = array<i32>} : memref<512x128xf32, #tpu.memory_space<vmem>>, vector<512x128xf32>,
    return
  }
  func.func @transform_0(%arg0: i32) -> (i32, i32) {
    %c0_i32 = arith.constant 0 : i32
    %c0_i32_0 = arith.constant 0 : i32
    return %arg0, %c0_i32 : i32, i32
  }
  func.func @transform_1(%arg0: i32) -> (i32, i32) {
    %c0_i32 = arith.constant 0 : i32
    %c0_i32_0 = arith.constant 0 : i32
    %c0_i32_1 = arith.constant 0 : i32
    return %c0_i32, %c0_i32_0 : i32, i32
  }
  func.func @transform_2(%arg0: i32) -> (i32, i32) {
    %c0_i32 = arith.constant 0 : i32
    %c0_i32_0 = arith.constant 0 : i32
    %c0_i32_1 = arith.constant 0 : i32
    return %c0_i32, %c0_i32_0 : i32, i32
  }
  func.func @transform_3(%arg0: i32) -> (i32, i32) {
    %c0_i32 = arith.constant 0 : i32
    %c0_i32_0 = arith.constant 0 : i32
    %c0_i32_1 = arith.constant 0 : i32
    return %c0_i32, %c0_i32_0 : i32, i32
  }
  func.func @transform_4(%arg0: i32) -> (i32, i32) {
    %c0_i32 = arith.constant 0 : i32
    %c0_i32_0 = arith.constant 0 : i32
    return %arg0, %c0_i32 : i32, i32
  }
}

</mosaic_0001>

<llo_original>
// kernel: up_double_3d_conv.4
$region0: #{up_double_3d_conv.4}
  #allocation0 [shape = 'u32[]', space=smem, size = 0x4, offset = 0x4, fixed_abs, tag = 'smem constant byte address 0x4 - core index']
  #allocation1 [shape = 'u32[144,128]{1,0:T(1,128)}', space=vmem, size = 0x12000, scoped, tag = 'internal scratch']
  %s0 = inlined_call_operand.vmem [shape: f32[1024,128], index: 0, kind: input, shape index: {}]
  %s1 = inlined_call_operand.vmem [shape: f32[128,128], index: 1, kind: input, shape index: {}]
  %s2 = inlined_call_operand.vmem [shape: f32[2,1,128], index: 2, kind: output, shape index: {0}]
  %s3 = inlined_call_operand.vmem [shape: f32[2,1,128], index: 3, kind: output, shape index: {1}]
  %4 = xla_tuple %s2, %s3
  %s5 = sld [smem:[#allocation0]]
  $region49: #{up_double_3d_conv.4} parent=0
    _
  %s7 = ssub.s32 1, %s5
  %s8 = scalar_select 0, %s7, %s5
  loop: start=0, step=1, limit=4
  $region2: #{up_double_3d_conv.4} parent=0 // loop_pre_header
    _
  $region3: #{up_double_3d_conv.4} parent=0 // loop_header
    %s10 = sphi 0, %s14
    %p11 = scmp.ge.s32.totalorder %s10, 4
    %s20 = sphi 0, %s22
    %s23 = sphi 0, %s20
    %s24 = sphi 0, %s23
    %s40 = sphi 0, %s24
    %s44 = sphi 0, %s44
    %s46 = sphi 0, %s44
    %s47 = sphi 0, %s46
    %s61 = sphi 0, %s47
    %s67 = sphi 0, %s69
    %s70 = sphi 0, %s67
    %s71 = sphi 0, %s70
    %s87 = sphi 0, %s71
    %s93 = sphi 0, %s95
    %s96 = sphi 0, %s93
    %s97 = sphi 0, %s96
    %s113 = sphi 0, %s97
  $region4: #{up_double_3d_conv.4} parent=0 // loop_header_branch
    %13 = sbr.rel (%p11) target = $region8
  $region5: #{up_double_3d_conv.4} parent=0 // loop_body
    %s15 = ssub.s32 %s10, 1
    %s16 = ssub.s32 %s10, 2
    %s17 = sadd.s32 %s10, 1
    %s18 = ssub.s32 %s10, %s17
    %p19 = scmp.eq.s32.totalorder %s18, 0
    %s21 = sadd.s32 %s20, 1
    %s22 = scalar_select %p19, %s20, %s21
    %p25 = pneg %p19
    %p26 = scmp.eq.s32.totalorder %s10, 1
    %p27 = por %p25, %p26
    %p28 = scmp.ne.s32.totalorder %s20, %s23
    %p29 = scmp.eq.s32.totalorder %s10, 0
    %p30 = por %p28, %p29
    %p31 = scmp.ne.s32.totalorder %s20, %s23
    %p32 = scmp.eq.s32.totalorder %s15, 1
    %p33 = por %p31, %p32
    %p34 = scmp.ne.s32.totalorder %s23, %s24
    %p35 = scmp.eq.s32.totalorder %s15, 0
    %p36 = por %p34, %p35
    %p37 = scmp.ne.s32.totalorder %s23, %s24
    %p38 = scmp.eq.s32.totalorder %s16, 1
    %p39 = por %p37, %p38
    %p41 = scmp.ne.s32.totalorder %s24, %s40
    %p42 = scmp.eq.s32.totalorder %s16, 0
    %p43 = por %p41, %p42
    %s45 = sadd.s32 %s44, 1
    %p48 = scmp.eq.s32.totalorder %s10, 1
    %p49 = scmp.ne.s32.totalorder %s44, %s46
    %p50 = scmp.eq.s32.totalorder %s10, 0
    %p51 = por %p49, %p50
    %p52 = scmp.ne.s32.totalorder %s44, %s46
    %p53 = scmp.eq.s32.totalorder %s15, 1
    %p54 = por %p52, %p53
    %p55 = scmp.ne.s32.totalorder %s46, %s47
    %p56 = scmp.eq.s32.totalorder %s15, 0
    %p57 = por %p55, %p56
    %p58 = scmp.ne.s32.totalorder %s46, %s47
    %p59 = scmp.eq.s32.totalorder %s16, 1
    %p60 = por %p58, %p59
    %p62 = scmp.ne.s32.totalorder %s47, %s61
    %p63 = scmp.eq.s32.totalorder %s16, 0
    %p64 = por %p62, %p63
    %s65 = ssub.s32 %s10, %s17
    %p66 = scmp.eq.s32.totalorder %s65, 0
    %s68 = sadd.s32 %s67, 1
    %s69 = scalar_select %p66, %s67, %s68
    %p72 = pneg %p66
    %p73 = scmp.eq.s32.totalorder %s10, 1
    %p74 = por %p72, %p73
    %p75 = scmp.ne.s32.totalorder %s67, %s70
    %p76 = scmp.eq.s32.totalorder %s10, 0
    %p77 = por %p75, %p76
    %p78 = scmp.ne.s32.totalorder %s67, %s70
    %p79 = scmp.eq.s32.totalorder %s15, 1
    %p80 = por %p78, %p79
    %p81 = scmp.ne.s32.totalorder %s70, %s71
    %p82 = scmp.eq.s32.totalorder %s15, 0
    %p83 = por %p81, %p82
    %p84 = scmp.ne.s32.totalorder %s70, %s71
    %p85 = scmp.eq.s32.totalorder %s16, 1
    %p86 = por %p84, %p85
    %p88 = scmp.ne.s32.totalorder %s71, %s87
    %p89 = scmp.eq.s32.totalorder %s16, 0
    %p90 = por %p88, %p89
    %s91 = ssub.s32 %s10, %s17
    %p92 = scmp.eq.s32.totalorder %s91, 0
    %s94 = sadd.s32 %s93, 1
    %s95 = scalar_select %p92, %s93, %s94
    %p98 = pneg %p92
    %p99 = scmp.eq.s32.totalorder %s10, 1
    %p100 = por %p98, %p99
    %p101 = scmp.ne.s32.totalorder %s93, %s96
    %p102 = scmp.eq.s32.totalorder %s10, 0
    %p103 = por %p101, %p102
    %p104 = scmp.ne.s32.totalorder %s93, %s96
    %p105 = scmp.eq.s32.totalorder %s15, 1
    %p106 = por %p104, %p105
    %p107 = scmp.ne.s32.totalorder %s96, %s97
    %p108 = scmp.eq.s32.totalorder %s15, 0
    %p109 = por %p107, %p108
    %p110 = scmp.ne.s32.totalorder %s96, %s97
    %p111 = scmp.eq.s32.totalorder %s16, 1
    %p112 = por %p110, %p111
    %p114 = scmp.ne.s32.totalorder %s97, %s113
    %p115 = scmp.eq.s32.totalorder %s16, 0
    %p116 = por %p114, %p115
    %p117 = scmp.le.s32.totalorder 1, %s10
    %p118 = scmp.lt.s32.totalorder %s10, 3
    %p119 = pnand %p117, %p118
    %p120 = pneg %p119
    // Predicated region
    $region9: #{up_double_3d_conv.4} parent=5 // pred_check
      _
    $region10: #{up_double_3d_conv.4} parent=5 // pred_check_branch
      %122 = sbr.rel (%p119) target = $region12
    $region11: #{up_double_3d_conv.4} parent=5 // pred_region
      %s123 = ssub.s32 %s10, 1
      // Predicated region
      $region13: #{up_double_3d_conv.4} parent=11 // pred_check
        %p124 = pneg %p57
      $region14: #{up_double_3d_conv.4} parent=11 // pred_check_branch
        %126 = sbr.rel (%p124) target = $region16
      $region15: #{up_double_3d_conv.4} parent=11 // pred_region
        _
      $region16: #{up_double_3d_conv.4} parent=11 // pred_fallthru
        _
    $region12: #{up_double_3d_conv.4} parent=5 // pred_fallthru
      _
    %p127 = scmp.lt.s32.totalorder %s10, 2
    // Predicated region
    $region17: #{up_double_3d_conv.4} parent=5 // pred_check
      %p128 = pneg %p127
    $region18: #{up_double_3d_conv.4} parent=5 // pred_check_branch
      %130 = sbr.rel (%p128) target = $region20
    $region19: #{up_double_3d_conv.4} parent=5 // pred_region
      // Predicated region
      $region21: #{up_double_3d_conv.4} parent=19 // pred_check
        %p131 = pneg %p30
      $region22: #{up_double_3d_conv.4} parent=19 // pred_check_branch
        %133 = sbr.rel (%p131) target = $region24
      $region23: #{up_double_3d_conv.4} parent=19 // pred_region
        %s134 = smul.u32 64, %s10
        %p135 = scmp.lt.s32.totalorder %s134, 127
        %s136 = scalar_select %p135, %s134, 127
        %s137 = smul.addr %s136, 8
        %s138 = scalar_lea.vmem %s0, %s137
        %s139 = smul.u32 64, %s10
      $region24: #{up_double_3d_conv.4} parent=19 // pred_fallthru
        _
    $region20: #{up_double_3d_conv.4} parent=5 // pred_fallthru
      _
    %p140 = scmp.le.s32.totalorder 1, %s10
    %p141 = scmp.lt.s32.totalorder %s10, 3
    %p142 = pnand %p140, %p141
    %p143 = pneg %p142
    // Predicated region
    $region25: #{up_double_3d_conv.4} parent=5 // pred_check
      _
    $region26: #{up_double_3d_conv.4} parent=5 // pred_check_branch
      %145 = sbr.rel (%p142) target = $region28
    $region27: #{up_double_3d_conv.4} parent=5 // pred_region
      %s146 = ssub.s32 %s10, 1
      %s147 = smul.u32 64, %s15
      %p148 = scmp.lt.s32.totalorder %s147, 127
      %s149 = scalar_select %p148, %s147, 127
      %s150 = smul.addr %s149, 8
      %s151 = scalar_lea.vmem %s0, %s150
      %p152 = pneg %p36
      %p153 = pneg %p33
      %p154 = pneg %p57
      %p155 = pneg %p54
      %p156 = pneg %p83
      %p157 = pneg %p80
      %p158 = scmp.lt.s32.totalorder %s15, 1
      %s159 = scalar_select %p158, %s15, 1
      %s160 = scalar_lea.vmem %s2, %s159
      %p161 = pneg %p109
      %p162 = pneg %p106
      %p163 = scmp.lt.s32.totalorder %s15, 1
      %s164 = scalar_select %p163, %s15, 1
      %s165 = scalar_lea.vmem %s3, %s164
      %s166 = smul.u32 64, %s15
      %p167 = scmp.lt.s32.totalorder %s166, 127
      %s168 = scalar_select %p167, %s166, 127
      %s169 = smul.addr %s168, 8
      %s170 = scalar_lea.vmem %s0, %s169
      %s171 = smul.u32 64, %s15
      %p172 = scmp.lt.s32.totalorder %s15, 1
      %s173 = scalar_select %p172, %s15, 1
      %s174 = scalar_lea.vmem %s2, %s173
      %p175 = scmp.lt.s32.totalorder %s15, 1
      %s176 = scalar_select %p175, %s15, 1
      %s177 = scalar_lea.vmem %s3, %s176
      %v178 = vld [vmem:[%s170] sm:$0xff]
      %v179 = vld [vmem:[%s170 + $0x8] sm:$0xff]
      %v180 = vld [vmem:[%s170 + $0x10] sm:$0xff]
      %v181 = vld [vmem:[%s170 + $0x18] sm:$0xff]
      %v182 = vld [vmem:[%s170 + $0x20] sm:$0xff]
      %v183 = vld [vmem:[%s170 + $0x28] sm:$0xff]
      %v184 = vld [vmem:[%s170 + $0x30] sm:$0xff]
      %v185 = vld [vmem:[%s170 + $0x38] sm:$0xff]
      %v186 = vld [vmem:[%s170 + $0x40] sm:$0xff]
      %v187 = vld [vmem:[%s170 + $0x48] sm:$0xff]
      %v188 = vld [vmem:[%s170 + $0x50] sm:$0xff]
      %v189 = vld [vmem:[%s170 + $0x58] sm:$0xff]
      %v190 = vld [vmem:[%s170 + $0x60] sm:$0xff]
      %v191 = vld [vmem:[%s170 + $0x68] sm:$0xff]
      %v192 = vld [vmem:[%s170 + $0x70] sm:$0xff]
      %v193 = vld [vmem:[%s170 + $0x78] sm:$0xff]
      %v194 = vld [vmem:[%s170 + $0x80] sm:$0xff]
      %v195 = vld [vmem:[%s170 + $0x88] sm:$0xff]
      %v196 = vld [vmem:[%s170 + $0x90] sm:$0xff]
      %v197 = vld [vmem:[%s170 + $0x98] sm:$0xff]
      %v198 = vld [vmem:[%s170 + $0xa0] sm:$0xff]
      %v199 = vld [vmem:[%s170 + $0xa8] sm:$0xff]
      %v200 = vld [vmem:[%s170 + $0xb0] sm:$0xff]
      %v201 = vld [vmem:[%s170 + $0xb8] sm:$0xff]
      %v202 = vld [vmem:[%s170 + $0xc0] sm:$0xff]
      %v203 = vld [vmem:[%s170 + $0xc8] sm:$0xff]
      %v204 = vld [vmem:[%s170 + $0xd0] sm:$0xff]
      %v205 = vld [vmem:[%s170 + $0xd8] sm:$0xff]
      %v206 = vld [vmem:[%s170 + $0xe0] sm:$0xff]
      %v207 = vld [vmem:[%s170 + $0xe8] sm:$0xff]
      %v208 = vld [vmem:[%s170 + $0xf0] sm:$0xff]
      %v209 = vld [vmem:[%s170 + $0xf8] sm:$0xff]
      %v210 = vld [vmem:[%s170 + $0x100] sm:$0xff]
      %v211 = vld [vmem:[%s170 + $0x108] sm:$0xff]
      %v212 = vld [vmem:[%s170 + $0x110] sm:$0xff]
      %v213 = vld [vmem:[%s170 + $0x118] sm:$0xff]
      %v214 = vld [vmem:[%s170 + $0x120] sm:$0xff]
      %v215 = vld [vmem:[%s170 + $0x128] sm:$0xff]
      %v216 = vld [vmem:[%s170 + $0x130] sm:$0xff]
      %v217 = vld [vmem:[%s170 + $0x138] sm:$0xff]
      %v218 = vld [vmem:[%s170 + $0x140] sm:$0xff]
      %v219 = vld [vmem:[%s170 + $0x148] sm:$0xff]
      %v220 = vld [vmem:[%s170 + $0x150] sm:$0xff]
      %v221 = vld [vmem:[%s170 + $0x158] sm:$0xff]
      %v222 = vld [vmem:[%s170 + $0x160] sm:$0xff]
      %v223 = vld [vmem:[%s170 + $0x168] sm:$0xff]
      %v224 = vld [vmem:[%s170 + $0x170] sm:$0xff]
      %v225 = vld [vmem:[%s170 + $0x178] sm:$0xff]
      %v226 = vld [vmem:[%s170 + $0x180] sm:$0xff]
      %v227 = vld [vmem:[%s170 + $0x188] sm:$0xff]
      %v228 = vld [vmem:[%s170 + $0x190] sm:$0xff]
      %v229 = vld [vmem:[%s170 + $0x198] sm:$0xff]
      %v230 = vld [vmem:[%s170 + $0x1a0] sm:$0xff]
      %v231 = vld [vmem:[%s170 + $0x1a8] sm:$0xff]
      %v232 = vld [vmem:[%s170 + $0x1b0] sm:$0xff]
      %v233 = vld [vmem:[%s170 + $0x1b8] sm:$0xff]
      %v234 = vld [vmem:[%s170 + $0x1c0] sm:$0xff]
      %v235 = vld [vmem:[%s170 + $0x1c8] sm:$0xff]
      %v236 = vld [vmem:[%s170 + $0x1d0] sm:$0xff]
      %v237 = vld [vmem:[%s170 + $0x1d8] sm:$0xff]
      %v238 = vld [vmem:[%s170 + $0x1e0] sm:$0xff]
      %v239 = vld [vmem:[%s170 + $0x1e8] sm:$0xff]
      %v240 = vld [vmem:[%s170 + $0x1f0] sm:$0xff]
      %v241 = vld [vmem:[%s170 + $0x1f8] sm:$0xff]
      %v242 = vld [vmem:[%s1] sm:$0xff]
      %v243 = vld [vmem:[%s1 + $0x8] sm:$0xff]
      %v244 = vld [vmem:[%s1 + $0x10] sm:$0xff]
      %v245 = vld [vmem:[%s1 + $0x18] sm:$0xff]
      %v246 = vld [vmem:[%s1 + $0x20] sm:$0xff]
      %v247 = vld [vmem:[%s1 + $0x28] sm:$0xff]
      %v248 = vld [vmem:[%s1 + $0x30] sm:$0xff]
      %v249 = vld [vmem:[%s1 + $0x38] sm:$0xff]
      %v250 = vld [vmem:[%s1 + $0x40] sm:$0xff]
      %v251 = vld [vmem:[%s1 + $0x48] sm:$0xff]
      %v252 = vld [vmem:[%s1 + $0x50] sm:$0xff]
      %v253 = vld [vmem:[%s1 + $0x58] sm:$0xff]
      %v254 = vld [vmem:[%s1 + $0x60] sm:$0xff]
      %v255 = vld [vmem:[%s1 + $0x68] sm:$0xff]
      %v256 = vld [vmem:[%s1 + $0x70] sm:$0xff]
      %v257 = vld [vmem:[%s1 + $0x78] sm:$0xff]
      %258 = vmatprep.subr.mxu0 0.0
      %259 = vmatpush1.msra.mxu0 %v257
      %260 = vmatprep.subr.mxu0 0.0
      %261 = vmatpush1.msra.mxu0 %v256
      %262 = vmatprep.subr.mxu0 0.0
      %263 = vmatpush1.msra.mxu0 %v255
      %264 = vmatprep.subr.mxu0 0.0
      %265 = vmatpush1.msra.mxu0 %v254
      %266 = vmatprep.subr.mxu0 0.0
      %267 = vmatpush1.msra.mxu0 %v253
      %268 = vmatprep.subr.mxu0 0.0
      %269 = vmatpush1.msra.mxu0 %v252
      %270 = vmatprep.subr.mxu0 0.0
      %271 = vmatpush1.msra.mxu0 %v251
      %272 = vmatprep.subr.mxu0 0.0
      %273 = vmatpush1.msra.mxu0 %v250
      %274 = vmatprep.subr.mxu0 0.0
      %275 = vmatpush1.msra.mxu0 %v249
      %276 = vmatprep.subr.mxu0 0.0
      %277 = vmatpush1.msra.mxu0 %v248
      %278 = vmatprep.subr.mxu0 0.0
      %279 = vmatpush1.msra.mxu0 %v247
      %280 = vmatprep.subr.mxu0 0.0
      %281 = vmatpush1.msra.mxu0 %v246
      %282 = vmatprep.subr.mxu0 0.0
      %283 = vmatpush1.msra.mxu0 %v245
      %284 = vmatprep.subr.mxu0 0.0
      %285 = vmatpush1.msra.mxu0 %v244
      %286 = vmatprep.subr.mxu0 0.0
      %287 = vmatpush1.msra.mxu0 %v243
      %288 = vmatprep.subr.mxu0 0.0
      %289 = vmatpush1.msra.mxu0 %v242
      %290 = vmatprep.subr.mxu0 0.0
      %291 = vmatpush2.msra.mxu0 0.0
      %292 = vmatprep.subr.mxu0 0.0
      %293 = vmatpush2.msra.mxu0 0.0
      %294 = vmatprep.subr.mxu0 0.0
      %295 = vmatpush2.msra.mxu0 0.0
      %296 = vmatprep.subr.mxu0 0.0
      %297 = vmatpush2.msra.mxu0 0.0
      %298 = vmatprep.subr.mxu0 0.0
      %299 = vmatpush2.msra.mxu0 0.0
      %300 = vmatprep.subr.mxu0 0.0
      %301 = vmatpush2.msra.mxu0 0.0
      %302 = vmatprep.subr.mxu0 0.0
      %303 = vmatpush2.msra.mxu0 0.0
      %304 = vmatprep.subr.mxu0 0.0
      %305 = vmatpush2.msra.mxu0 0.0
      %306 = vmatprep.subr.mxu0 0.0
      %307 = vmatpush2.msra.mxu0 0.0
      %308 = vmatprep.subr.mxu0 0.0
      %309 = vmatpush2.msra.mxu0 0.0
      %310 = vmatprep.subr.mxu0 0.0
      %311 = vmatpush2.msra.mxu0 0.0
      %312 = vmatprep.subr.mxu0 0.0
      %313 = vmatpush2.msra.mxu0 0.0
      %314 = vmatprep.subr.mxu0 0.0
      %315 = vmatpush2.msra.mxu0 0.0
      %316 = vmatprep.subr.mxu0 0.0
      %317 = vmatpush2.msra.mxu0 0.0
      %318 = vmatprep.subr.mxu0 0.0
      %319 = vmatpush2.msra.mxu0 0.0
      %320 = vmatprep.subr.mxu0 0.0
      %321 = vmatpush2.msra.mxu0 0.0
      %322 = vmatprep.mubr.f32.mxu0 0.0
      %323 = vmatmul.mubr.f32.gmra.mxu0 %v178
      %v324 = vpop.f32.mrf.mxu0
      %v325 = vadd.f32 0.0, %v324
      %v326 = vpop.f32.mrf.mxu0
      %327 = vmatprep.mubr.f32.mxu0 0.0
      %328 = vmatmul.mubr.f32.gmra.mxu0 %v179
      %v329 = vpop.f32.mrf.mxu0
      %v330 = vadd.f32 0.0, %v329
      %v331 = vpop.f32.mrf.mxu0
      %332 = vmatprep.mubr.f32.mxu0 0.0
      %333 = vmatmul.mubr.f32.gmra.mxu0 %v180
      %v334 = vpop.f32.mrf.mxu0
      %v335 = vadd.f32 0.0, %v334
      %v336 = vpop.f32.mrf.mxu0
      %337 = vmatprep.mubr.f32.mxu0 0.0
      %338 = vmatmul.mubr.f32.gmra.mxu0 %v181
      %v339 = vpop.f32.mrf.mxu0
      %v340 = vadd.f32 0.0, %v339
      %v341 = vpop.f32.mrf.mxu0
      %342 = vmatprep.mubr.f32.mxu0 0.0
      %343 = vmatmul.mubr.f32.gmra.mxu0 %v182
      %v344 = vpop.f32.mrf.mxu0
      %v345 = vadd.f32 0.0, %v344
      %v346 = vpop.f32.mrf.mxu0
      %347 = vmatprep.mubr.f32.mxu0 0.0
      %348 = vmatmul.mubr.f32.gmra.mxu0 %v183
      %v349 = vpop.f32.mrf.mxu0
      %v350 = vadd.f32 0.0, %v349
      %v351 = vpop.f32.mrf.mxu0
      %352 = vmatprep.mubr.f32.mxu0 0.0
      %353 = vmatmul.mubr.f32.gmra.mxu0 %v184
      %v354 = vpop.f32.mrf.mxu0
      %v355 = vadd.f32 0.0, %v354
      %v356 = vpop.f32.mrf.mxu0
      %357 = vmatprep.mubr.f32.mxu0 0.0
      %358 = vmatmul.mubr.f32.gmra.mxu0 %v185
      %v359 = vpop.f32.mrf.mxu0
      %v360 = vadd.f32 0.0, %v359
      %v361 = vpop.f32.mrf.mxu0
      %362 = vmatprep.mubr.f32.mxu0 0.0
      %363 = vmatmul.mubr.f32.gmra.mxu0 %v186
      %v364 = vpop.f32.mrf.mxu0
      %v365 = vadd.f32 0.0, %v364
      %v366 = vpop.f32.mrf.mxu0
      %367 = vmatprep.mubr.f32.mxu0 0.0
      %368 = vmatmul.mubr.f32.gmra.mxu0 %v187
      %v369 = vpop.f32.mrf.mxu0
      %v370 = vadd.f32 0.0, %v369
      %v371 = vpop.f32.mrf.mxu0
      %372 = vmatprep.mubr.f32.mxu0 0.0
      %373 = vmatmul.mubr.f32.gmra.mxu0 %v188
      %v374 = vpop.f32.mrf.mxu0
      %v375 = vadd.f32 0.0, %v374
      %v376 = vpop.f32.mrf.mxu0
      %377 = vmatprep.mubr.f32.mxu0 0.0
      %378 = vmatmul.mubr.f32.gmra.mxu0 %v189
      %v379 = vpop.f32.mrf.mxu0
      %v380 = vadd.f32 0.0, %v379
      %v381 = vpop.f32.mrf.mxu0
      %382 = vmatprep.mubr.f32.mxu0 0.0
      %383 = vmatmul.mubr.f32.gmra.mxu0 %v190
      %v384 = vpop.f32.mrf.mxu0
      %v385 = vadd.f32 0.0, %v384
      %v386 = vpop.f32.mrf.mxu0
      %387 = vmatprep.mubr.f32.mxu0 0.0
      %388 = vmatmul.mubr.f32.gmra.mxu0 %v191
      %v389 = vpop.f32.mrf.mxu0
      %v390 = vadd.f32 0.0, %v389
      %v391 = vpop.f32.mrf.mxu0
      %392 = vmatprep.mubr.f32.mxu0 0.0
      %393 = vmatmul.mubr.f32.gmra.mxu0 %v192
      %v394 = vpop.f32.mrf.mxu0
      %v395 = vadd.f32 0.0, %v394
      %v396 = vpop.f32.mrf.mxu0
      %397 = vmatprep.mubr.f32.mxu0 0.0
      %398 = vmatmul.mubr.f32.gmra.mxu0 %v193
      %v399 = vpop.f32.mrf.mxu0
      %v400 = vadd.f32 0.0, %v399
      %v401 = vpop.f32.mrf.mxu0
      %402 = vmatprep.mubr.f32.mxu0 0.0
      %403 = vmatmul.mubr.f32.gmra.mxu0 %v194
      %v404 = vpop.f32.mrf.mxu0
      %v405 = vadd.f32 0.0, %v404
      %v406 = vpop.f32.mrf.mxu0
      %407 = vmatprep.mubr.f32.mxu0 0.0
      %408 = vmatmul.mubr.f32.gmra.mxu0 %v195
      %v409 = vpop.f32.mrf.mxu0
      %v410 = vadd.f32 0.0, %v409
      %v411 = vpop.f32.mrf.mxu0
      %412 = vmatprep.mubr.f32.mxu0 0.0
      %413 = vmatmul.mubr.f32.gmra.mxu0 %v196
      %v414 = vpop.f32.mrf.mxu0
      %v415 = vadd.f32 0.0, %v414
      %v416 = vpop.f32.mrf.mxu0
      %417 = vmatprep.mubr.f32.mxu0 0.0
      %418 = vmatmul.mubr.f32.gmra.mxu0 %v197
      %v419 = vpop.f32.mrf.mxu0
      %v420 = vadd.f32 0.0, %v419
      %v421 = vpop.f32.mrf.mxu0
      %422 = vmatprep.mubr.f32.mxu0 0.0
      %423 = vmatmul.mubr.f32.gmra.mxu0 %v198
      %v424 = vpop.f32.mrf.mxu0
      %v425 = vadd.f32 0.0, %v424
      %v426 = vpop.f32.mrf.mxu0
      %427 = vmatprep.mubr.f32.mxu0 0.0
      %428 = vmatmul.mubr.f32.gmra.mxu0 %v199
      %v429 = vpop.f32.mrf.mxu0
      %v430 = vadd.f32 0.0, %v429
      %v431 = vpop.f32.mrf.mxu0
      %432 = vmatprep.mubr.f32.mxu0 0.0
      %433 = vmatmul.mubr.f32.gmra.mxu0 %v200
      %v434 = vpop.f32.mrf.mxu0
      %v435 = vadd.f32 0.0, %v434
      %v436 = vpop.f32.mrf.mxu0
      %437 = vmatprep.mubr.f32.mxu0 0.0
      %438 = vmatmul.mubr.f32.gmra.mxu0 %v201
      %v439 = vpop.f32.mrf.mxu0
      %v440 = vadd.f32 0.0, %v439
      %v441 = vpop.f32.mrf.mxu0
      %442 = vmatprep.mubr.f32.mxu0 0.0
      %443 = vmatmul.mubr.f32.gmra.mxu0 %v202
      %v444 = vpop.f32.mrf.mxu0
      %v445 = vadd.f32 0.0, %v444
      %v446 = vpop.f32.mrf.mxu0
      %447 = vmatprep.mubr.f32.mxu0 0.0
      %448 = vmatmul.mubr.f32.gmra.mxu0 %v203
      %v449 = vpop.f32.mrf.mxu0
      %v450 = vadd.f32 0.0, %v449
      %v451 = vpop.f32.mrf.mxu0
      %452 = vmatprep.mubr.f32.mxu0 0.0
      %453 = vmatmul.mubr.f32.gmra.mxu0 %v204
      %v454 = vpop.f32.mrf.mxu0
      %v455 = vadd.f32 0.0, %v454
      %v456 = vpop.f32.mrf.mxu0
      %457 = vmatprep.mubr.f32.mxu0 0.0
      %458 = vmatmul.mubr.f32.gmra.mxu0 %v205
      %v459 = vpop.f32.mrf.mxu0
      %v460 = vadd.f32 0.0, %v459
      %v461 = vpop.f32.mrf.mxu0
      %462 = vmatprep.mubr.f32.mxu0 0.0
      %463 = vmatmul.mubr.f32.gmra.mxu0 %v206
      %v464 = vpop.f32.mrf.mxu0
      %v465 = vadd.f32 0.0, %v464
      %v466 = vpop.f32.mrf.mxu0
      %467 = vmatprep.mubr.f32.mxu0 0.0
      %468 = vmatmul.mubr.f32.gmra.mxu0 %v207
      %v469 = vpop.f32.mrf.mxu0
      %v470 = vadd.f32 0.0, %v469
      %v471 = vpop.f32.mrf.mxu0
      %472 = vmatprep.mubr.f32.mxu0 0.0
      %473 = vmatmul.mubr.f32.gmra.mxu0 %v208
      %v474 = vpop.f32.mrf.mxu0
      %v475 = vadd.f32 0.0, %v474
      %v476 = vpop.f32.mrf.mxu0
      %477 = vmatprep.mubr.f32.mxu0 0.0
      %478 = vmatmul.mubr.f32.gmra.mxu0 %v209
      %v479 = vpop.f32.mrf.mxu0
      %v480 = vadd.f32 0.0, %v479
      %v481 = vpop.f32.mrf.mxu0
      %482 = vmatprep.mubr.f32.mxu0 0.0
      %483 = vmatmul.mubr.f32.gmra.mxu0 %v210
      %v484 = vpop.f32.mrf.mxu0
      %v485 = vadd.f32 0.0, %v484
      %v486 = vpop.f32.mrf.mxu0
      %487 = vmatprep.mubr.f32.mxu0 0.0
      %488 = vmatmul.mubr.f32.gmra.mxu0 %v211
      %v489 = vpop.f32.mrf.mxu0
      %v490 = vadd.f32 0.0, %v489
      %v491 = vpop.f32.mrf.mxu0
      %492 = vmatprep.mubr.f32.mxu0 0.0
      %493 = vmatmul.mubr.f32.gmra.mxu0 %v212
      %v494 = vpop.f32.mrf.mxu0
      %v495 = vadd.f32 0.0, %v494
      %v496 = vpop.f32.mrf.mxu0
      %497 = vmatprep.mubr.f32.mxu0 0.0
      %498 = vmatmul.mubr.f32.gmra.mxu0 %v213
      %v499 = vpop.f32.mrf.mxu0
      %v500 = vadd.f32 0.0, %v499
      %v501 = vpop.f32.mrf.mxu0
      %502 = vmatprep.mubr.f32.mxu0 0.0
      %503 = vmatmul.mubr.f32.gmra.mxu0 %v214
      %v504 = vpop.f32.mrf.mxu0
      %v505 = vadd.f32 0.0, %v504
      %v506 = vpop.f32.mrf.mxu0
      %507 = vmatprep.mubr.f32.mxu0 0.0
      %508 = vmatmul.mubr.f32.gmra.mxu0 %v215
      %v509 = vpop.f32.mrf.mxu0
      %v510 = vadd.f32 0.0, %v509
      %v511 = vpop.f32.mrf.mxu0
      %512 = vmatprep.mubr.f32.mxu0 0.0
      %513 = vmatmul.mubr.f32.gmra.mxu0 %v216
      %v514 = vpop.f32.mrf.mxu0
      %v515 = vadd.f32 0.0, %v514
      %v516 = vpop.f32.mrf.mxu0
      %517 = vmatprep.mubr.f32.mxu0 0.0
      %518 = vmatmul.mubr.f32.gmra.mxu0 %v217
      %v519 = vpop.f32.mrf.mxu0
      %v520 = vadd.f32 0.0, %v519
      %v521 = vpop.f32.mrf.mxu0
      %522 = vmatprep.mubr.f32.mxu0 0.0
      %523 = vmatmul.mubr.f32.gmra.mxu0 %v218
      %v524 = vpop.f32.mrf.mxu0
      %v525 = vadd.f32 0.0, %v524
      %v526 = vpop.f32.mrf.mxu0
      %527 = vmatprep.mubr.f32.mxu0 0.0
      %528 = vmatmul.mubr.f32.gmra.mxu0 %v219
      %v529 = vpop.f32.mrf.mxu0
      %v530 = vadd.f32 0.0, %v529
      %v531 = vpop.f32.mrf.mxu0
      %532 = vmatprep.mubr.f32.mxu0 0.0
      %533 = vmatmul.mubr.f32.gmra.mxu0 %v220
      %v534 = vpop.f32.mrf.mxu0
      %v535 = vadd.f32 0.0, %v534
      %v536 = vpop.f32.mrf.mxu0
      %537 = vmatprep.mubr.f32.mxu0 0.0
      %538 = vmatmul.mubr.f32.gmra.mxu0 %v221
      %v539 = vpop.f32.mrf.mxu0
      %v540 = vadd.f32 0.0, %v539
      %v541 = vpop.f32.mrf.mxu0
      %542 = vmatprep.mubr.f32.mxu0 0.0
      %543 = vmatmul.mubr.f32.gmra.mxu0 %v222
      %v544 = vpop.f32.mrf.mxu0
      %v545 = vadd.f32 0.0, %v544
      %v546 = vpop.f32.mrf.mxu0
      %547 = vmatprep.mubr.f32.mxu0 0.0
      %548 = vmatmul.mubr.f32.gmra.mxu0 %v223
      %v549 = vpop.f32.mrf.mxu0
      %v550 = vadd.f32 0.0, %v549
      %v551 = vpop.f32.mrf.mxu0
      %552 = vmatprep.mubr.f32.mxu0 0.0
      %553 = vmatmul.mubr.f32.gmra.mxu0 %v224
      %v554 = vpop.f32.mrf.mxu0
      %v555 = vadd.f32 0.0, %v554
      %v556 = vpop.f32.mrf.mxu0
      %557 = vmatprep.mubr.f32.mxu0 0.0
      %558 = vmatmul.mubr.f32.gmra.mxu0 %v225
      %v559 = vpop.f32.mrf.mxu0
      %v560 = vadd.f32 0.0, %v559
      %v561 = vpop.f32.mrf.mxu0
      %562 = vmatprep.mubr.f32.mxu0 0.0
      %563 = vmatmul.mubr.f32.gmra.mxu0 %v226
      %v564 = vpop.f32.mrf.mxu0
      %v565 = vadd.f32 0.0, %v564
      %v566 = vpop.f32.mrf.mxu0
      %567 = vmatprep.mubr.f32.mxu0 0.0
      %568 = vmatmul.mubr.f32.gmra.mxu0 %v227
      %v569 = vpop.f32.mrf.mxu0
      %v570 = vadd.f32 0.0, %v569
      %v571 = vpop.f32.mrf.mxu0
      %572 = vmatprep.mubr.f32.mxu0 0.0
      %573 = vmatmul.mubr.f32.gmra.mxu0 %v228
      %v574 = vpop.f32.mrf.mxu0
      %v575 = vadd.f32 0.0, %v574
      %v576 = vpop.f32.mrf.mxu0
      %577 = vmatprep.mubr.f32.mxu0 0.0
      %578 = vmatmul.mubr.f32.gmra.mxu0 %v229
      %v579 = vpop.f32.mrf.mxu0
      %v580 = vadd.f32 0.0, %v579
      %v581 = vpop.f32.mrf.mxu0
      %582 = vmatprep.mubr.f32.mxu0 0.0
      %583 = vmatmul.mubr.f32.gmra.mxu0 %v230
      %v584 = vpop.f32.mrf.mxu0
      %v585 = vadd.f32 0.0, %v584
      %v586 = vpop.f32.mrf.mxu0
      %587 = vmatprep.mubr.f32.mxu0 0.0
      %588 = vmatmul.mubr.f32.gmra.mxu0 %v231
      %v589 = vpop.f32.mrf.mxu0
      %v590 = vadd.f32 0.0, %v589
      %v591 = vpop.f32.mrf.mxu0
      %592 = vmatprep.mubr.f32.mxu0 0.0
      %593 = vmatmul.mubr.f32.gmra.mxu0 %v232
      %v594 = vpop.f32.mrf.mxu0
      %v595 = vadd.f32 0.0, %v594
      %v596 = vpop.f32.mrf.mxu0
      %597 = vmatprep.mubr.f32.mxu0 0.0
      %598 = vmatmul.mubr.f32.gmra.mxu0 %v233
      %v599 = vpop.f32.mrf.mxu0
      %v600 = vadd.f32 0.0, %v599
      %v601 = vpop.f32.mrf.mxu0
      %602 = vmatprep.mubr.f32.mxu0 0.0
      %603 = vmatmul.mubr.f32.gmra.mxu0 %v234
      %v604 = vpop.f32.mrf.mxu0
      %v605 = vadd.f32 0.0, %v604
      %v606 = vpop.f32.mrf.mxu0
      %607 = vmatprep.mubr.f32.mxu0 0.0
      %608 = vmatmul.mubr.f32.gmra.mxu0 %v235
      %v609 = vpop.f32.mrf.mxu0
      %v610 = vadd.f32 0.0, %v609
      %v611 = vpop.f32.mrf.mxu0
      %612 = vmatprep.mubr.f32.mxu0 0.0
      %613 = vmatmul.mubr.f32.gmra.mxu0 %v236
      %v614 = vpop.f32.mrf.mxu0
      %v615 = vadd.f32 0.0, %v614
      %v616 = vpop.f32.mrf.mxu0
      %617 = vmatprep.mubr.f32.mxu0 0.0
      %618 = vmatmul.mubr.f32.gmra.mxu0 %v237
      %v619 = vpop.f32.mrf.mxu0
      %v620 = vadd.f32 0.0, %v619
      %v621 = vpop.f32.mrf.mxu0
      %622 = vmatprep.mubr.f32.mxu0 0.0
      %623 = vmatmul.mubr.f32.gmra.mxu0 %v238
      %v624 = vpop.f32.mrf.mxu0
      %v625 = vadd.f32 0.0, %v624
      %v626 = vpop.f32.mrf.mxu0
      %627 = vmatprep.mubr.f32.mxu0 0.0
      %628 = vmatmul.mubr.f32.gmra.mxu0 %v239
      %v629 = vpop.f32.mrf.mxu0
      %v630 = vadd.f32 0.0, %v629
      %v631 = vpop.f32.mrf.mxu0
      %632 = vmatprep.mubr.f32.mxu0 0.0
      %633 = vmatmul.mubr.f32.gmra.mxu0 %v240
      %v634 = vpop.f32.mrf.mxu0
      %v635 = vadd.f32 0.0, %v634
      %v636 = vpop.f32.mrf.mxu0
      %637 = vmatprep.mubr.f32.mxu0 0.0
      %638 = vmatmul.mubr.f32.gmra.mxu0 %v241
      %v639 = vpop.f32.mrf.mxu0
      %v640 = vadd.f32 0.0, %v639
      %v641 = vpop.f32.mrf.mxu0
      %642 = vdwg.mxu0
      %v643 = vadd.f32 %v325, %v330
      %v644 = vadd.f32 %v643, %v335
      %v645 = vadd.f32 %v644, %v340
      %v646 = vadd.f32 %v645, %v345
      %v647 = vadd.f32 %v646, %v350
      %v648 = vadd.f32 %v647, %v355
      %v649 = vadd.f32 %v648, %v360
      %v650 = vadd.f32 %v649, %v365
      %v651 = vadd.f32 %v650, %v370
      %v652 = vadd.f32 %v651, %v375
      %v653 = vadd.f32 %v652, %v380
      %v654 = vadd.f32 %v653, %v385
      %v655 = vadd.f32 %v654, %v390
      %v656 = vadd.f32 %v655, %v395
      %v657 = vadd.f32 %v656, %v400
      %v658 = vadd.f32 %v657, %v405
      %v659 = vadd.f32 %v658, %v410
      %v660 = vadd.f32 %v659, %v415
      %v661 = vadd.f32 %v660, %v420
      %v662 = vadd.f32 %v661, %v425
      %v663 = vadd.f32 %v662, %v430
      %v664 = vadd.f32 %v663, %v435
      %v665 = vadd.f32 %v664, %v440
      %v666 = vadd.f32 %v665, %v445
      %v667 = vadd.f32 %v666, %v450
      %v668 = vadd.f32 %v667, %v455
      %v669 = vadd.f32 %v668, %v460
      %v670 = vadd.f32 %v669, %v465
      %v671 = vadd.f32 %v670, %v470
      %v672 = vadd.f32 %v671, %v475
      %v673 = vadd.f32 %v672, %v480
      %v674 = vadd.f32 %v673, %v485
      %v675 = vadd.f32 %v674, %v490
      %v676 = vadd.f32 %v675, %v495
      %v677 = vadd.f32 %v676, %v500
      %v678 = vadd.f32 %v677, %v505
      %v679 = vadd.f32 %v678, %v510
      %v680 = vadd.f32 %v679, %v515
      %v681 = vadd.f32 %v680, %v520
      %v682 = vadd.f32 %v681, %v525
      %v683 = vadd.f32 %v682, %v530
      %v684 = vadd.f32 %v683, %v535
      %v685 = vadd.f32 %v684, %v540
      %v686 = vadd.f32 %v685, %v545
      %v687 = vadd.f32 %v686, %v550
      %v688 = vadd.f32 %v687, %v555
      %v689 = vadd.f32 %v688, %v560
      %v690 = vadd.f32 %v689, %v565
      %v691 = vadd.f32 %v690, %v570
      %v692 = vadd.f32 %v691, %v575
      %v693 = vadd.f32 %v692, %v580
      %v694 = vadd.f32 %v693, %v585
      %v695 = vadd.f32 %v694, %v590
      %v696 = vadd.f32 %v695, %v595
      %v697 = vadd.f32 %v696, %v600
      %v698 = vadd.f32 %v697, %v605
      %v699 = vadd.f32 %v698, %v610
      %v700 = vadd.f32 %v699, %v615
      %v701 = vadd.f32 %v700, %v620
      %v702 = vadd.f32 %v701, %v625
      %v703 = vadd.f32 %v702, %v630
      %v704 = vadd.f32 %v703, %v635
      %v705 = vadd.f32 %v704, %v640
      %v706 = vrot.slane %v705, 4
      %v707 = vadd.f32 %v705, %v706
      %v708 = vrot.slane %v707, 2
      %v709 = vadd.f32 %v707, %v708
      %v710 = vrot.slane %v709, 1
      %v711 = vadd.f32 %v709, %v710
      %712 = vst [vmem:[%s174] sm:$0x1] %v711
      %v713 = vmul.f32 %v325, %v325
      %v714 = vmul.f32 %v330, %v330
      %v715 = vmul.f32 %v335, %v335
      %v716 = vmul.f32 %v340, %v340
      %v717 = vmul.f32 %v345, %v345
      %v718 = vmul.f32 %v350, %v350
      %v719 = vmul.f32 %v355, %v355
      %v720 = vmul.f32 %v360, %v360
      %v721 = vmul.f32 %v365, %v365
      %v722 = vmul.f32 %v370, %v370
      %v723 = vmul.f32 %v375, %v375
      %v724 = vmul.f32 %v380, %v380
      %v725 = vmul.f32 %v385, %v385
      %v726 = vmul.f32 %v390, %v390
      %v727 = vmul.f32 %v395, %v395
      %v728 = vmul.f32 %v400, %v400
      %v729 = vmul.f32 %v405, %v405
      %v730 = vmul.f32 %v410, %v410
      %v731 = vmul.f32 %v415, %v415
      %v732 = vmul.f32 %v420, %v420
      %v733 = vmul.f32 %v425, %v425
      %v734 = vmul.f32 %v430, %v430
      %v735 = vmul.f32 %v435, %v435
      %v736 = vmul.f32 %v440, %v440
      %v737 = vmul.f32 %v445, %v445
      %v738 = vmul.f32 %v450, %v450
      %v739 = vmul.f32 %v455, %v455
      %v740 = vmul.f32 %v460, %v460
      %v741 = vmul.f32 %v465, %v465
      %v742 = vmul.f32 %v470, %v470
      %v743 = vmul.f32 %v475, %v475
      %v744 = vmul.f32 %v480, %v480
      %v745 = vmul.f32 %v485, %v485
      %v746 = vmul.f32 %v490, %v490
      %v747 = vmul.f32 %v495, %v495
      %v748 = vmul.f32 %v500, %v500
      %v749 = vmul.f32 %v505, %v505
      %v750 = vmul.f32 %v510, %v510
      %v751 = vmul.f32 %v515, %v515
      %v752 = vmul.f32 %v520, %v520
      %v753 = vmul.f32 %v525, %v525
      %v754 = vmul.f32 %v530, %v530
      %v755 = vmul.f32 %v535, %v535
      %v756 = vmul.f32 %v540, %v540
      %v757 = vmul.f32 %v545, %v545
      %v758 = vmul.f32 %v550, %v550
      %v759 = vmul.f32 %v555, %v555
      %v760 = vmul.f32 %v560, %v560
      %v761 = vmul.f32 %v565, %v565
      %v762 = vmul.f32 %v570, %v570
      %v763 = vmul.f32 %v575, %v575
      %v764 = vmul.f32 %v580, %v580
      %v765 = vmul.f32 %v585, %v585
      %v766 = vmul.f32 %v590, %v590
      %v767 = vmul.f32 %v595, %v595
      %v768 = vmul.f32 %v600, %v600
      %v769 = vmul.f32 %v605, %v605
      %v770 = vmul.f32 %v610, %v610
      %v771 = vmul.f32 %v615, %v615
      %v772 = vmul.f32 %v620, %v620
      %v773 = vmul.f32 %v625, %v625
      %v774 = vmul.f32 %v630, %v630
      %v775 = vmul.f32 %v635, %v635
      %v776 = vmul.f32 %v640, %v640
      %v777 = vadd.f32 %v713, %v714
      %v778 = vadd.f32 %v777, %v715
      %v779 = vadd.f32 %v778, %v716
      %v780 = vadd.f32 %v779, %v717
      %v781 = vadd.f32 %v780, %v718
      %v782 = vadd.f32 %v781, %v719
      %v783 = vadd.f32 %v782, %v720
      %v784 = vadd.f32 %v783, %v721
      %v785 = vadd.f32 %v784, %v722
      %v786 = vadd.f32 %v785, %v723
      %v787 = vadd.f32 %v786, %v724
      %v788 = vadd.f32 %v787, %v725
      %v789 = vadd.f32 %v788, %v726
      %v790 = vadd.f32 %v789, %v727
      %v791 = vadd.f32 %v790, %v728
      %v792 = vadd.f32 %v791, %v729
      %v793 = vadd.f32 %v792, %v730
      %v794 = vadd.f32 %v793, %v731
      %v795 = vadd.f32 %v794, %v732
      %v796 = vadd.f32 %v795, %v733
      %v797 = vadd.f32 %v796, %v734
      %v798 = vadd.f32 %v797, %v735
      %v799 = vadd.f32 %v798, %v736
      %v800 = vadd.f32 %v799, %v737
      %v801 = vadd.f32 %v800, %v738
      %v802 = vadd.f32 %v801, %v739
      %v803 = vadd.f32 %v802, %v740
      %v804 = vadd.f32 %v803, %v741
      %v805 = vadd.f32 %v804, %v742
      %v806 = vadd.f32 %v805, %v743
      %v807 = vadd.f32 %v806, %v744
      %v808 = vadd.f32 %v807, %v745
      %v809 = vadd.f32 %v808, %v746
      %v810 = vadd.f32 %v809, %v747
      %v811 = vadd.f32 %v810, %v748
      %v812 = vadd.f32 %v811, %v749
      %v813 = vadd.f32 %v812, %v750
      %v814 = vadd.f32 %v813, %v751
      %v815 = vadd.f32 %v814, %v752
      %v816 = vadd.f32 %v815, %v753
      %v817 = vadd.f32 %v816, %v754
      %v818 = vadd.f32 %v817, %v755
      %v819 = vadd.f32 %v818, %v756
      %v820 = vadd.f32 %v819, %v757
      %v821 = vadd.f32 %v820, %v758
      %v822 = vadd.f32 %v821, %v759
      %v823 = vadd.f32 %v822, %v760
      %v824 = vadd.f32 %v823, %v761
      %v825 = vadd.f32 %v824, %v762
      %v826 = vadd.f32 %v825, %v763
      %v827 = vadd.f32 %v826, %v764
      %v828 = vadd.f32 %v827, %v765
      %v829 = vadd.f32 %v828, %v766
      %v830 = vadd.f32 %v829, %v767
      %v831 = vadd.f32 %v830, %v768
      %v832 = vadd.f32 %v831, %v769
      %v833 = vadd.f32 %v832, %v770
      %v834 = vadd.f32 %v833, %v771
      %v835 = vadd.f32 %v834, %v772
      %v836 = vadd.f32 %v835, %v773
      %v837 = vadd.f32 %v836, %v774
      %v838 = vadd.f32 %v837, %v775
      %v839 = vadd.f32 %v838, %v776
      %v840 = vrot.slane %v839, 4
      %v841 = vadd.f32 %v839, %v840
      %v842 = vrot.slane %v841, 2
      %v843 = vadd.f32 %v841, %v842
      %v844 = vrot.slane %v843, 1
      %v845 = vadd.f32 %v843, %v844
      %846 = vst [vmem:[%s177] sm:$0x1] %v845
      %p847 = scmp.lt.s32.totalorder %s15, 1
      %s848 = scalar_select %p847, %s15, 1
      %s849 = scalar_lea.vmem %s2, %s848
      %p850 = scmp.lt.s32.totalorder %s15, 1
      %s851 = scalar_select %p850, %s15, 1
      %s852 = scalar_lea.vmem %s3, %s851
      // Predicated region
      $region29: #{up_double_3d_conv.4} parent=27 // pred_check
        %p853 = pneg %p80
      $region30: #{up_double_3d_conv.4} parent=27 // pred_check_branch
        %855 = sbr.rel (%p853) target = $region32
      $region31: #{up_double_3d_conv.4} parent=27 // pred_region
        _
      $region32: #{up_double_3d_conv.4} parent=27 // pred_fallthru
        _
      // Predicated region
      $region33: #{up_double_3d_conv.4} parent=27 // pred_check
        %p856 = pneg %p106
      $region34: #{up_double_3d_conv.4} parent=27 // pred_check_branch
        %858 = sbr.rel (%p856) target = $region36
      $region35: #{up_double_3d_conv.4} parent=27 // pred_region
        _
      $region36: #{up_double_3d_conv.4} parent=27 // pred_fallthru
        _
    $region28: #{up_double_3d_conv.4} parent=5 // pred_fallthru
      _
    %p859 = scmp.le.s32.totalorder 2, %s10
    // Predicated region
    $region37: #{up_double_3d_conv.4} parent=5 // pred_check
      %p860 = pneg %p859
    $region38: #{up_double_3d_conv.4} parent=5 // pred_check_branch
      %862 = sbr.rel (%p860) target = $region40
    $region39: #{up_double_3d_conv.4} parent=5 // pred_region
      %s863 = ssub.s32 %s10, 2
      // Predicated region
      $region41: #{up_double_3d_conv.4} parent=39 // pred_check
        %p864 = pneg %p86
      $region42: #{up_double_3d_conv.4} parent=39 // pred_check_branch
        %866 = sbr.rel (%p864) target = $region44
      $region43: #{up_double_3d_conv.4} parent=39 // pred_region
        %p867 = scmp.lt.s32.totalorder %s16, 1
        %s868 = scalar_select %p867, %s16, 1
        %s869 = scalar_lea.vmem %s2, %s868
      $region44: #{up_double_3d_conv.4} parent=39 // pred_fallthru
        _
      // Predicated region
      $region45: #{up_double_3d_conv.4} parent=39 // pred_check
        %p870 = pneg %p112
      $region46: #{up_double_3d_conv.4} parent=39 // pred_check_branch
        %872 = sbr.rel (%p870) target = $region48
      $region47: #{up_double_3d_conv.4} parent=39 // pred_region
        %p873 = scmp.lt.s32.totalorder %s16, 1
        %s874 = scalar_select %p873, %s16, 1
        %s875 = scalar_lea.vmem %s3, %s874
      $region48: #{up_double_3d_conv.4} parent=39 // pred_fallthru
        _
    $region40: #{up_double_3d_conv.4} parent=5 // pred_fallthru
      _
  $region6: #{up_double_3d_conv.4} parent=0 // loop_footer
    %s14 = sadd.s32 1, %s10
  $region7: #{up_double_3d_conv.4} parent=0 // loop_footer_branch
    %9 = sbr.rel target = $region3
  $region8: #{up_double_3d_conv.4} parent=0 // loop_exit
    _

// kernel: up_double_3d_conv.5
$region0: #{up_double_3d_conv.5}
  #allocation0 [shape = 'u32[]', space=smem, size = 0x4, offset = 0x4, fixed_abs, tag = 'smem constant byte address 0x4 - core index']
  #allocation1 [shape = 'u32[144,128]{1,0:T(1,128)}', space=vmem, size = 0x12000, scoped, tag = 'internal scratch']
  %s0 = inlined_call_operand.vmem [shape: f32[1024,128], index: 0, kind: input, shape index: {}]
  %s1 = inlined_call_operand.vmem [shape: f32[128,128], index: 1, kind: input, shape index: {}]
  %s2 = inlined_call_operand.vmem [shape: f32[1,128], index: 2, kind: input, shape index: {}]
  %s3 = inlined_call_operand.vmem [shape: f32[1,128], index: 3, kind: input, shape index: {}]
  %s4 = inlined_call_operand.vmem [shape: f32[1024,128], index: 4, kind: output, shape index: {}]
  %s5 = sld [smem:[#allocation0]]
  $region49: #{up_double_3d_conv.5} parent=0
    _
  %s7 = ssub.s32 1, %s5
  %s8 = scalar_select 0, %s7, %s5
  loop: start=0, step=1, limit=4
  $region2: #{up_double_3d_conv.5} parent=0 // loop_pre_header
    _
  $region3: #{up_double_3d_conv.5} parent=0 // loop_header
    %s10 = sphi 0, %s14
    %p11 = scmp.ge.s32.totalorder %s10, 4
    %s20 = sphi 0, %s22
    %s23 = sphi 0, %s20
    %s24 = sphi 0, %s23
    %s40 = sphi 0, %s24
    %s44 = sphi 0, %s44
    %s46 = sphi 0, %s44
    %s47 = sphi 0, %s46
    %s61 = sphi 0, %s47
    %s65 = sphi 0, %s65
    %s67 = sphi 0, %s65
    %s68 = sphi 0, %s67
    %s82 = sphi 0, %s68
    %s86 = sphi 0, %s86
    %s88 = sphi 0, %s86
    %s89 = sphi 0, %s88
    %s103 = sphi 0, %s89
    %s109 = sphi 0, %s111
    %s112 = sphi 0, %s109
    %s113 = sphi 0, %s112
    %s129 = sphi 0, %s113
  $region4: #{up_double_3d_conv.5} parent=0 // loop_header_branch
    %13 = sbr.rel (%p11) target = $region8
  $region5: #{up_double_3d_conv.5} parent=0 // loop_body
    %s15 = ssub.s32 %s10, 1
    %s16 = ssub.s32 %s10, 2
    %s17 = sadd.s32 %s10, 1
    %s18 = ssub.s32 %s10, %s17
    %p19 = scmp.eq.s32.totalorder %s18, 0
    %s21 = sadd.s32 %s20, 1
    %s22 = scalar_select %p19, %s20, %s21
    %p25 = pneg %p19
    %p26 = scmp.eq.s32.totalorder %s10, 1
    %p27 = por %p25, %p26
    %p28 = scmp.ne.s32.totalorder %s20, %s23
    %p29 = scmp.eq.s32.totalorder %s10, 0
    %p30 = por %p28, %p29
    %p31 = scmp.ne.s32.totalorder %s20, %s23
    %p32 = scmp.eq.s32.totalorder %s15, 1
    %p33 = por %p31, %p32
    %p34 = scmp.ne.s32.totalorder %s23, %s24
    %p35 = scmp.eq.s32.totalorder %s15, 0
    %p36 = por %p34, %p35
    %p37 = scmp.ne.s32.totalorder %s23, %s24
    %p38 = scmp.eq.s32.totalorder %s16, 1
    %p39 = por %p37, %p38
    %p41 = scmp.ne.s32.totalorder %s24, %s40
    %p42 = scmp.eq.s32.totalorder %s16, 0
    %p43 = por %p41, %p42
    %s45 = sadd.s32 %s44, 1
    %p48 = scmp.eq.s32.totalorder %s10, 1
    %p49 = scmp.ne.s32.totalorder %s44, %s46
    %p50 = scmp.eq.s32.totalorder %s10, 0
    %p51 = por %p49, %p50
    %p52 = scmp.ne.s32.totalorder %s44, %s46
    %p53 = scmp.eq.s32.totalorder %s15, 1
    %p54 = por %p52, %p53
    %p55 = scmp.ne.s32.totalorder %s46, %s47
    %p56 = scmp.eq.s32.totalorder %s15, 0
    %p57 = por %p55, %p56
    %p58 = scmp.ne.s32.totalorder %s46, %s47
    %p59 = scmp.eq.s32.totalorder %s16, 1
    %p60 = por %p58, %p59
    %p62 = scmp.ne.s32.totalorder %s47, %s61
    %p63 = scmp.eq.s32.totalorder %s16, 0
    %p64 = por %p62, %p63
    %s66 = sadd.s32 %s65, 1
    %p69 = scmp.eq.s32.totalorder %s10, 1
    %p70 = scmp.ne.s32.totalorder %s65, %s67
    %p71 = scmp.eq.s32.totalorder %s10, 0
    %p72 = por %p70, %p71
    %p73 = scmp.ne.s32.totalorder %s65, %s67
    %p74 = scmp.eq.s32.totalorder %s15, 1
    %p75 = por %p73, %p74
    %p76 = scmp.ne.s32.totalorder %s67, %s68
    %p77 = scmp.eq.s32.totalorder %s15, 0
    %p78 = por %p76, %p77
    %p79 = scmp.ne.s32.totalorder %s67, %s68
    %p80 = scmp.eq.s32.totalorder %s16, 1
    %p81 = por %p79, %p80
    %p83 = scmp.ne.s32.totalorder %s68, %s82
    %p84 = scmp.eq.s32.totalorder %s16, 0
    %p85 = por %p83, %p84
    %s87 = sadd.s32 %s86, 1
    %p90 = scmp.eq.s32.totalorder %s10, 1
    %p91 = scmp.ne.s32.totalorder %s86, %s88
    %p92 = scmp.eq.s32.totalorder %s10, 0
    %p93 = por %p91, %p92
    %p94 = scmp.ne.s32.totalorder %s86, %s88
    %p95 = scmp.eq.s32.totalorder %s15, 1
    %p96 = por %p94, %p95
    %p97 = scmp.ne.s32.totalorder %s88, %s89
    %p98 = scmp.eq.s32.totalorder %s15, 0
    %p99 = por %p97, %p98
    %p100 = scmp.ne.s32.totalorder %s88, %s89
    %p101 = scmp.eq.s32.totalorder %s16, 1
    %p102 = por %p100, %p101
    %p104 = scmp.ne.s32.totalorder %s89, %s103
    %p105 = scmp.eq.s32.totalorder %s16, 0
    %p106 = por %p104, %p105
    %s107 = ssub.s32 %s10, %s17
    %p108 = scmp.eq.s32.totalorder %s107, 0
    %s110 = sadd.s32 %s109, 1
    %s111 = scalar_select %p108, %s109, %s110
    %p114 = pneg %p108
    %p115 = scmp.eq.s32.totalorder %s10, 1
    %p116 = por %p114, %p115
    %p117 = scmp.ne.s32.totalorder %s109, %s112
    %p118 = scmp.eq.s32.totalorder %s10, 0
    %p119 = por %p117, %p118
    %p120 = scmp.ne.s32.totalorder %s109, %s112
    %p121 = scmp.eq.s32.totalorder %s15, 1
    %p122 = por %p120, %p121
    %p123 = scmp.ne.s32.totalorder %s112, %s113
    %p124 = scmp.eq.s32.totalorder %s15, 0
    %p125 = por %p123, %p124
    %p126 = scmp.ne.s32.totalorder %s112, %s113
    %p127 = scmp.eq.s32.totalorder %s16, 1
    %p128 = por %p126, %p127
    %p130 = scmp.ne.s32.totalorder %s113, %s129
    %p131 = scmp.eq.s32.totalorder %s16, 0
    %p132 = por %p130, %p131
    %p133 = scmp.le.s32.totalorder 1, %s10
    %p134 = scmp.lt.s32.totalorder %s10, 3
    %p135 = pnand %p133, %p134
    %p136 = pneg %p135
    // Predicated region
    $region9: #{up_double_3d_conv.5} parent=5 // pred_check
      _
    $region10: #{up_double_3d_conv.5} parent=5 // pred_check_branch
      %138 = sbr.rel (%p135) target = $region12
    $region11: #{up_double_3d_conv.5} parent=5 // pred_region
      %s139 = ssub.s32 %s10, 1
      // Predicated region
      $region13: #{up_double_3d_conv.5} parent=11 // pred_check
        %p140 = pneg %p57
      $region14: #{up_double_3d_conv.5} parent=11 // pred_check_branch
        %142 = sbr.rel (%p140) target = $region16
      $region15: #{up_double_3d_conv.5} parent=11 // pred_region
        _
      $region16: #{up_double_3d_conv.5} parent=11 // pred_fallthru
        _
      // Predicated region
      $region17: #{up_double_3d_conv.5} parent=11 // pred_check
        %p143 = pneg %p78
      $region18: #{up_double_3d_conv.5} parent=11 // pred_check_branch
        %145 = sbr.rel (%p143) target = $region20
      $region19: #{up_double_3d_conv.5} parent=11 // pred_region
        _
      $region20: #{up_double_3d_conv.5} parent=11 // pred_fallthru
        _
      // Predicated region
      $region21: #{up_double_3d_conv.5} parent=11 // pred_check
        %p146 = pneg %p99
      $region22: #{up_double_3d_conv.5} parent=11 // pred_check_branch
        %148 = sbr.rel (%p146) target = $region24
      $region23: #{up_double_3d_conv.5} parent=11 // pred_region
        _
      $region24: #{up_double_3d_conv.5} parent=11 // pred_fallthru
        _
    $region12: #{up_double_3d_conv.5} parent=5 // pred_fallthru
      _
    %p149 = scmp.lt.s32.totalorder %s10, 2
    // Predicated region
    $region25: #{up_double_3d_conv.5} parent=5 // pred_check
      %p150 = pneg %p149
    $region26: #{up_double_3d_conv.5} parent=5 // pred_check_branch
      %152 = sbr.rel (%p150) target = $region28
    $region27: #{up_double_3d_conv.5} parent=5 // pred_region
      // Predicated region
      $region29: #{up_double_3d_conv.5} parent=27 // pred_check
        %p153 = pneg %p30
      $region30: #{up_double_3d_conv.5} parent=27 // pred_check_branch
        %155 = sbr.rel (%p153) target = $region32
      $region31: #{up_double_3d_conv.5} parent=27 // pred_region
        %s156 = smul.u32 64, %s10
        %p157 = scmp.lt.s32.totalorder %s156, 127
        %s158 = scalar_select %p157, %s156, 127
        %s159 = smul.addr %s158, 8
        %s160 = scalar_lea.vmem %s0, %s159
        %s161 = smul.u32 64, %s10
      $region32: #{up_double_3d_conv.5} parent=27 // pred_fallthru
        _
    $region28: #{up_double_3d_conv.5} parent=5 // pred_fallthru
      _
    %p162 = scmp.le.s32.totalorder 1, %s10
    %p163 = scmp.lt.s32.totalorder %s10, 3
    %p164 = pnand %p162, %p163
    %p165 = pneg %p164
    // Predicated region
    $region33: #{up_double_3d_conv.5} parent=5 // pred_check
      _
    $region34: #{up_double_3d_conv.5} parent=5 // pred_check_branch
      %167 = sbr.rel (%p164) target = $region36
    $region35: #{up_double_3d_conv.5} parent=5 // pred_region
      %s168 = ssub.s32 %s10, 1
      %s169 = smul.u32 64, %s15
      %p170 = scmp.lt.s32.totalorder %s169, 127
      %s171 = scalar_select %p170, %s169, 127
      %s172 = smul.addr %s171, 8
      %s173 = scalar_lea.vmem %s0, %s172
      %p174 = pneg %p36
      %p175 = pneg %p33
      %p176 = pneg %p57
      %p177 = pneg %p54
      %p178 = pneg %p78
      %p179 = pneg %p75
      %p180 = pneg %p99
      %p181 = pneg %p96
      %p182 = pneg %p125
      %p183 = pneg %p122
      %s184 = smul.u32 64, %s15
      %p185 = scmp.lt.s32.totalorder %s184, 127
      %s186 = scalar_select %p185, %s184, 127
      %s187 = smul.addr %s186, 8
      %s188 = scalar_lea.vmem %s4, %s187
      %s189 = smul.u32 64, %s15
      %p190 = scmp.lt.s32.totalorder %s189, 127
      %s191 = scalar_select %p190, %s189, 127
      %s192 = smul.addr %s191, 8
      %s193 = scalar_lea.vmem %s0, %s192
      %s194 = smul.u32 64, %s15
      %s195 = smul.u32 64, %s15
      %p196 = scmp.lt.s32.totalorder %s195, 127
      %s197 = scalar_select %p196, %s195, 127
      %s198 = smul.addr %s197, 8
      %s199 = scalar_lea.vmem %s4, %s198
      %s200 = smul.u32 64, %s15
      %v201 = vld [vmem:[%s193] sm:$0xff]
      %v202 = vld [vmem:[%s193 + $0x8] sm:$0xff]
      %v203 = vld [vmem:[%s193 + $0x10] sm:$0xff]
      %v204 = vld [vmem:[%s193 + $0x18] sm:$0xff]
      %v205 = vld [vmem:[%s193 + $0x20] sm:$0xff]
      %v206 = vld [vmem:[%s193 + $0x28] sm:$0xff]
      %v207 = vld [vmem:[%s193 + $0x30] sm:$0xff]
      %v208 = vld [vmem:[%s193 + $0x38] sm:$0xff]
      %v209 = vld [vmem:[%s193 + $0x40] sm:$0xff]
      %v210 = vld [vmem:[%s193 + $0x48] sm:$0xff]
      %v211 = vld [vmem:[%s193 + $0x50] sm:$0xff]
      %v212 = vld [vmem:[%s193 + $0x58] sm:$0xff]
      %v213 = vld [vmem:[%s193 + $0x60] sm:$0xff]
      %v214 = vld [vmem:[%s193 + $0x68] sm:$0xff]
      %v215 = vld [vmem:[%s193 + $0x70] sm:$0xff]
      %v216 = vld [vmem:[%s193 + $0x78] sm:$0xff]
      %v217 = vld [vmem:[%s193 + $0x80] sm:$0xff]
      %v218 = vld [vmem:[%s193 + $0x88] sm:$0xff]
      %v219 = vld [vmem:[%s193 + $0x90] sm:$0xff]
      %v220 = vld [vmem:[%s193 + $0x98] sm:$0xff]
      %v221 = vld [vmem:[%s193 + $0xa0] sm:$0xff]
      %v222 = vld [vmem:[%s193 + $0xa8] sm:$0xff]
      %v223 = vld [vmem:[%s193 + $0xb0] sm:$0xff]
      %v224 = vld [vmem:[%s193 + $0xb8] sm:$0xff]
      %v225 = vld [vmem:[%s193 + $0xc0] sm:$0xff]
      %v226 = vld [vmem:[%s193 + $0xc8] sm:$0xff]
      %v227 = vld [vmem:[%s193 + $0xd0] sm:$0xff]
      %v228 = vld [vmem:[%s193 + $0xd8] sm:$0xff]
      %v229 = vld [vmem:[%s193 + $0xe0] sm:$0xff]
      %v230 = vld [vmem:[%s193 + $0xe8] sm:$0xff]
      %v231 = vld [vmem:[%s193 + $0xf0] sm:$0xff]
      %v232 = vld [vmem:[%s193 + $0xf8] sm:$0xff]
      %v233 = vld [vmem:[%s193 + $0x100] sm:$0xff]
      %v234 = vld [vmem:[%s193 + $0x108] sm:$0xff]
      %v235 = vld [vmem:[%s193 + $0x110] sm:$0xff]
      %v236 = vld [vmem:[%s193 + $0x118] sm:$0xff]
      %v237 = vld [vmem:[%s193 + $0x120] sm:$0xff]
      %v238 = vld [vmem:[%s193 + $0x128] sm:$0xff]
      %v239 = vld [vmem:[%s193 + $0x130] sm:$0xff]
      %v240 = vld [vmem:[%s193 + $0x138] sm:$0xff]
      %v241 = vld [vmem:[%s193 + $0x140] sm:$0xff]
      %v242 = vld [vmem:[%s193 + $0x148] sm:$0xff]
      %v243 = vld [vmem:[%s193 + $0x150] sm:$0xff]
      %v244 = vld [vmem:[%s193 + $0x158] sm:$0xff]
      %v245 = vld [vmem:[%s193 + $0x160] sm:$0xff]
      %v246 = vld [vmem:[%s193 + $0x168] sm:$0xff]
      %v247 = vld [vmem:[%s193 + $0x170] sm:$0xff]
      %v248 = vld [vmem:[%s193 + $0x178] sm:$0xff]
      %v249 = vld [vmem:[%s193 + $0x180] sm:$0xff]
      %v250 = vld [vmem:[%s193 + $0x188] sm:$0xff]
      %v251 = vld [vmem:[%s193 + $0x190] sm:$0xff]
      %v252 = vld [vmem:[%s193 + $0x198] sm:$0xff]
      %v253 = vld [vmem:[%s193 + $0x1a0] sm:$0xff]
      %v254 = vld [vmem:[%s193 + $0x1a8] sm:$0xff]
      %v255 = vld [vmem:[%s193 + $0x1b0] sm:$0xff]
      %v256 = vld [vmem:[%s193 + $0x1b8] sm:$0xff]
      %v257 = vld [vmem:[%s193 + $0x1c0] sm:$0xff]
      %v258 = vld [vmem:[%s193 + $0x1c8] sm:$0xff]
      %v259 = vld [vmem:[%s193 + $0x1d0] sm:$0xff]
      %v260 = vld [vmem:[%s193 + $0x1d8] sm:$0xff]
      %v261 = vld [vmem:[%s193 + $0x1e0] sm:$0xff]
      %v262 = vld [vmem:[%s193 + $0x1e8] sm:$0xff]
      %v263 = vld [vmem:[%s193 + $0x1f0] sm:$0xff]
      %v264 = vld [vmem:[%s193 + $0x1f8] sm:$0xff]
      %v265 = vld [vmem:[%s1] sm:$0xff]
      %v266 = vld [vmem:[%s1 + $0x8] sm:$0xff]
      %v267 = vld [vmem:[%s1 + $0x10] sm:$0xff]
      %v268 = vld [vmem:[%s1 + $0x18] sm:$0xff]
      %v269 = vld [vmem:[%s1 + $0x20] sm:$0xff]
      %v270 = vld [vmem:[%s1 + $0x28] sm:$0xff]
      %v271 = vld [vmem:[%s1 + $0x30] sm:$0xff]
      %v272 = vld [vmem:[%s1 + $0x38] sm:$0xff]
      %v273 = vld [vmem:[%s1 + $0x40] sm:$0xff]
      %v274 = vld [vmem:[%s1 + $0x48] sm:$0xff]
      %v275 = vld [vmem:[%s1 + $0x50] sm:$0xff]
      %v276 = vld [vmem:[%s1 + $0x58] sm:$0xff]
      %v277 = vld [vmem:[%s1 + $0x60] sm:$0xff]
      %v278 = vld [vmem:[%s1 + $0x68] sm:$0xff]
      %v279 = vld [vmem:[%s1 + $0x70] sm:$0xff]
      %v280 = vld [vmem:[%s1 + $0x78] sm:$0xff]
      %281 = vmatprep.subr.mxu0 0.0
      %282 = vmatpush1.msra.mxu0 %v280
      %283 = vmatprep.subr.mxu0 0.0
      %284 = vmatpush1.msra.mxu0 %v279
      %285 = vmatprep.subr.mxu0 0.0
      %286 = vmatpush1.msra.mxu0 %v278
      %287 = vmatprep.subr.mxu0 0.0
      %288 = vmatpush1.msra.mxu0 %v277
      %289 = vmatprep.subr.mxu0 0.0
      %290 = vmatpush1.msra.mxu0 %v276
      %291 = vmatprep.subr.mxu0 0.0
      %292 = vmatpush1.msra.mxu0 %v275
      %293 = vmatprep.subr.mxu0 0.0
      %294 = vmatpush1.msra.mxu0 %v274
      %295 = vmatprep.subr.mxu0 0.0
      %296 = vmatpush1.msra.mxu0 %v273
      %297 = vmatprep.subr.mxu0 0.0
      %298 = vmatpush1.msra.mxu0 %v272
      %299 = vmatprep.subr.mxu0 0.0
      %300 = vmatpush1.msra.mxu0 %v271
      %301 = vmatprep.subr.mxu0 0.0
      %302 = vmatpush1.msra.mxu0 %v270
      %303 = vmatprep.subr.mxu0 0.0
      %304 = vmatpush1.msra.mxu0 %v269
      %305 = vmatprep.subr.mxu0 0.0
      %306 = vmatpush1.msra.mxu0 %v268
      %307 = vmatprep.subr.mxu0 0.0
      %308 = vmatpush1.msra.mxu0 %v267
      %309 = vmatprep.subr.mxu0 0.0
      %310 = vmatpush1.msra.mxu0 %v266
      %311 = vmatprep.subr.mxu0 0.0
      %312 = vmatpush1.msra.mxu0 %v265
      %313 = vmatprep.subr.mxu0 0.0
      %314 = vmatpush2.msra.mxu0 0.0
      %315 = vmatprep.subr.mxu0 0.0
      %316 = vmatpush2.msra.mxu0 0.0
      %317 = vmatprep.subr.mxu0 0.0
      %318 = vmatpush2.msra.mxu0 0.0
      %319 = vmatprep.subr.mxu0 0.0
      %320 = vmatpush2.msra.mxu0 0.0
      %321 = vmatprep.subr.mxu0 0.0
      %322 = vmatpush2.msra.mxu0 0.0
      %323 = vmatprep.subr.mxu0 0.0
      %324 = vmatpush2.msra.mxu0 0.0
      %325 = vmatprep.subr.mxu0 0.0
      %326 = vmatpush2.msra.mxu0 0.0
      %327 = vmatprep.subr.mxu0 0.0
      %328 = vmatpush2.msra.mxu0 0.0
      %329 = vmatprep.subr.mxu0 0.0
      %330 = vmatpush2.msra.mxu0 0.0
      %331 = vmatprep.subr.mxu0 0.0
      %332 = vmatpush2.msra.mxu0 0.0
      %333 = vmatprep.subr.mxu0 0.0
      %334 = vmatpush2.msra.mxu0 0.0
      %335 = vmatprep.subr.mxu0 0.0
      %336 = vmatpush2.msra.mxu0 0.0
      %337 = vmatprep.subr.mxu0 0.0
      %338 = vmatpush2.msra.mxu0 0.0
      %339 = vmatprep.subr.mxu0 0.0
      %340 = vmatpush2.msra.mxu0 0.0
      %341 = vmatprep.subr.mxu0 0.0
      %342 = vmatpush2.msra.mxu0 0.0
      %343 = vmatprep.subr.mxu0 0.0
      %344 = vmatpush2.msra.mxu0 0.0
      %345 = vmatprep.mubr.f32.mxu0 0.0
      %346 = vmatmul.mubr.f32.gmra.mxu0 %v201
      %v347 = vpop.f32.mrf.mxu0
      %v348 = vadd.f32 0.0, %v347
      %v349 = vpop.f32.mrf.mxu0
      %350 = vmatprep.mubr.f32.mxu0 0.0
      %351 = vmatmul.mubr.f32.gmra.mxu0 %v202
      %v352 = vpop.f32.mrf.mxu0
      %v353 = vadd.f32 0.0, %v352
      %v354 = vpop.f32.mrf.mxu0
      %355 = vmatprep.mubr.f32.mxu0 0.0
      %356 = vmatmul.mubr.f32.gmra.mxu0 %v203
      %v357 = vpop.f32.mrf.mxu0
      %v358 = vadd.f32 0.0, %v357
      %v359 = vpop.f32.mrf.mxu0
      %360 = vmatprep.mubr.f32.mxu0 0.0
      %361 = vmatmul.mubr.f32.gmra.mxu0 %v204
      %v362 = vpop.f32.mrf.mxu0
      %v363 = vadd.f32 0.0, %v362
      %v364 = vpop.f32.mrf.mxu0
      %365 = vmatprep.mubr.f32.mxu0 0.0
      %366 = vmatmul.mubr.f32.gmra.mxu0 %v205
      %v367 = vpop.f32.mrf.mxu0
      %v368 = vadd.f32 0.0, %v367
      %v369 = vpop.f32.mrf.mxu0
      %370 = vmatprep.mubr.f32.mxu0 0.0
      %371 = vmatmul.mubr.f32.gmra.mxu0 %v206
      %v372 = vpop.f32.mrf.mxu0
      %v373 = vadd.f32 0.0, %v372
      %v374 = vpop.f32.mrf.mxu0
      %375 = vmatprep.mubr.f32.mxu0 0.0
      %376 = vmatmul.mubr.f32.gmra.mxu0 %v207
      %v377 = vpop.f32.mrf.mxu0
      %v378 = vadd.f32 0.0, %v377
      %v379 = vpop.f32.mrf.mxu0
      %380 = vmatprep.mubr.f32.mxu0 0.0
      %381 = vmatmul.mubr.f32.gmra.mxu0 %v208
      %v382 = vpop.f32.mrf.mxu0
      %v383 = vadd.f32 0.0, %v382
      %v384 = vpop.f32.mrf.mxu0
      %385 = vmatprep.mubr.f32.mxu0 0.0
      %386 = vmatmul.mubr.f32.gmra.mxu0 %v209
      %v387 = vpop.f32.mrf.mxu0
      %v388 = vadd.f32 0.0, %v387
      %v389 = vpop.f32.mrf.mxu0
      %390 = vmatprep.mubr.f32.mxu0 0.0
      %391 = vmatmul.mubr.f32.gmra.mxu0 %v210
      %v392 = vpop.f32.mrf.mxu0
      %v393 = vadd.f32 0.0, %v392
      %v394 = vpop.f32.mrf.mxu0
      %395 = vmatprep.mubr.f32.mxu0 0.0
      %396 = vmatmul.mubr.f32.gmra.mxu0 %v211
      %v397 = vpop.f32.mrf.mxu0
      %v398 = vadd.f32 0.0, %v397
      %v399 = vpop.f32.mrf.mxu0
      %400 = vmatprep.mubr.f32.mxu0 0.0
      %401 = vmatmul.mubr.f32.gmra.mxu0 %v212
      %v402 = vpop.f32.mrf.mxu0
      %v403 = vadd.f32 0.0, %v402
      %v404 = vpop.f32.mrf.mxu0
      %405 = vmatprep.mubr.f32.mxu0 0.0
      %406 = vmatmul.mubr.f32.gmra.mxu0 %v213
      %v407 = vpop.f32.mrf.mxu0
      %v408 = vadd.f32 0.0, %v407
      %v409 = vpop.f32.mrf.mxu0
      %410 = vmatprep.mubr.f32.mxu0 0.0
      %411 = vmatmul.mubr.f32.gmra.mxu0 %v214
      %v412 = vpop.f32.mrf.mxu0
      %v413 = vadd.f32 0.0, %v412
      %v414 = vpop.f32.mrf.mxu0
      %415 = vmatprep.mubr.f32.mxu0 0.0
      %416 = vmatmul.mubr.f32.gmra.mxu0 %v215
      %v417 = vpop.f32.mrf.mxu0
      %v418 = vadd.f32 0.0, %v417
      %v419 = vpop.f32.mrf.mxu0
      %420 = vmatprep.mubr.f32.mxu0 0.0
      %421 = vmatmul.mubr.f32.gmra.mxu0 %v216
      %v422 = vpop.f32.mrf.mxu0
      %v423 = vadd.f32 0.0, %v422
      %v424 = vpop.f32.mrf.mxu0
      %425 = vmatprep.mubr.f32.mxu0 0.0
      %426 = vmatmul.mubr.f32.gmra.mxu0 %v217
      %v427 = vpop.f32.mrf.mxu0
      %v428 = vadd.f32 0.0, %v427
      %v429 = vpop.f32.mrf.mxu0
      %430 = vmatprep.mubr.f32.mxu0 0.0
      %431 = vmatmul.mubr.f32.gmra.mxu0 %v218
      %v432 = vpop.f32.mrf.mxu0
      %v433 = vadd.f32 0.0, %v432
      %v434 = vpop.f32.mrf.mxu0
      %435 = vmatprep.mubr.f32.mxu0 0.0
      %436 = vmatmul.mubr.f32.gmra.mxu0 %v219
      %v437 = vpop.f32.mrf.mxu0
      %v438 = vadd.f32 0.0, %v437
      %v439 = vpop.f32.mrf.mxu0
      %440 = vmatprep.mubr.f32.mxu0 0.0
      %441 = vmatmul.mubr.f32.gmra.mxu0 %v220
      %v442 = vpop.f32.mrf.mxu0
      %v443 = vadd.f32 0.0, %v442
      %v444 = vpop.f32.mrf.mxu0
      %445 = vmatprep.mubr.f32.mxu0 0.0
      %446 = vmatmul.mubr.f32.gmra.mxu0 %v221
      %v447 = vpop.f32.mrf.mxu0
      %v448 = vadd.f32 0.0, %v447
      %v449 = vpop.f32.mrf.mxu0
      %450 = vmatprep.mubr.f32.mxu0 0.0
      %451 = vmatmul.mubr.f32.gmra.mxu0 %v222
      %v452 = vpop.f32.mrf.mxu0
      %v453 = vadd.f32 0.0, %v452
      %v454 = vpop.f32.mrf.mxu0
      %455 = vmatprep.mubr.f32.mxu0 0.0
      %456 = vmatmul.mubr.f32.gmra.mxu0 %v223
      %v457 = vpop.f32.mrf.mxu0
      %v458 = vadd.f32 0.0, %v457
      %v459 = vpop.f32.mrf.mxu0
      %460 = vmatprep.mubr.f32.mxu0 0.0
      %461 = vmatmul.mubr.f32.gmra.mxu0 %v224
      %v462 = vpop.f32.mrf.mxu0
      %v463 = vadd.f32 0.0, %v462
      %v464 = vpop.f32.mrf.mxu0
      %465 = vmatprep.mubr.f32.mxu0 0.0
      %466 = vmatmul.mubr.f32.gmra.mxu0 %v225
      %v467 = vpop.f32.mrf.mxu0
      %v468 = vadd.f32 0.0, %v467
      %v469 = vpop.f32.mrf.mxu0
      %470 = vmatprep.mubr.f32.mxu0 0.0
      %471 = vmatmul.mubr.f32.gmra.mxu0 %v226
      %v472 = vpop.f32.mrf.mxu0
      %v473 = vadd.f32 0.0, %v472
      %v474 = vpop.f32.mrf.mxu0
      %475 = vmatprep.mubr.f32.mxu0 0.0
      %476 = vmatmul.mubr.f32.gmra.mxu0 %v227
      %v477 = vpop.f32.mrf.mxu0
      %v478 = vadd.f32 0.0, %v477
      %v479 = vpop.f32.mrf.mxu0
      %480 = vmatprep.mubr.f32.mxu0 0.0
      %481 = vmatmul.mubr.f32.gmra.mxu0 %v228
      %v482 = vpop.f32.mrf.mxu0
      %v483 = vadd.f32 0.0, %v482
      %v484 = vpop.f32.mrf.mxu0
      %485 = vmatprep.mubr.f32.mxu0 0.0
      %486 = vmatmul.mubr.f32.gmra.mxu0 %v229
      %v487 = vpop.f32.mrf.mxu0
      %v488 = vadd.f32 0.0, %v487
      %v489 = vpop.f32.mrf.mxu0
      %490 = vmatprep.mubr.f32.mxu0 0.0
      %491 = vmatmul.mubr.f32.gmra.mxu0 %v230
      %v492 = vpop.f32.mrf.mxu0
      %v493 = vadd.f32 0.0, %v492
      %v494 = vpop.f32.mrf.mxu0
      %495 = vmatprep.mubr.f32.mxu0 0.0
      %496 = vmatmul.mubr.f32.gmra.mxu0 %v231
      %v497 = vpop.f32.mrf.mxu0
      %v498 = vadd.f32 0.0, %v497
      %v499 = vpop.f32.mrf.mxu0
      %500 = vmatprep.mubr.f32.mxu0 0.0
      %501 = vmatmul.mubr.f32.gmra.mxu0 %v232
      %v502 = vpop.f32.mrf.mxu0
      %v503 = vadd.f32 0.0, %v502
      %v504 = vpop.f32.mrf.mxu0
      %505 = vmatprep.mubr.f32.mxu0 0.0
      %506 = vmatmul.mubr.f32.gmra.mxu0 %v233
      %v507 = vpop.f32.mrf.mxu0
      %v508 = vadd.f32 0.0, %v507
      %v509 = vpop.f32.mrf.mxu0
      %510 = vmatprep.mubr.f32.mxu0 0.0
      %511 = vmatmul.mubr.f32.gmra.mxu0 %v234
      %v512 = vpop.f32.mrf.mxu0
      %v513 = vadd.f32 0.0, %v512
      %v514 = vpop.f32.mrf.mxu0
      %515 = vmatprep.mubr.f32.mxu0 0.0
      %516 = vmatmul.mubr.f32.gmra.mxu0 %v235
      %v517 = vpop.f32.mrf.mxu0
      %v518 = vadd.f32 0.0, %v517
      %v519 = vpop.f32.mrf.mxu0
      %520 = vmatprep.mubr.f32.mxu0 0.0
      %521 = vmatmul.mubr.f32.gmra.mxu0 %v236
      %v522 = vpop.f32.mrf.mxu0
      %v523 = vadd.f32 0.0, %v522
      %v524 = vpop.f32.mrf.mxu0
      %525 = vmatprep.mubr.f32.mxu0 0.0
      %526 = vmatmul.mubr.f32.gmra.mxu0 %v237
      %v527 = vpop.f32.mrf.mxu0
      %v528 = vadd.f32 0.0, %v527
      %v529 = vpop.f32.mrf.mxu0
      %530 = vmatprep.mubr.f32.mxu0 0.0
      %531 = vmatmul.mubr.f32.gmra.mxu0 %v238
      %v532 = vpop.f32.mrf.mxu0
      %v533 = vadd.f32 0.0, %v532
      %v534 = vpop.f32.mrf.mxu0
      %535 = vmatprep.mubr.f32.mxu0 0.0
      %536 = vmatmul.mubr.f32.gmra.mxu0 %v239
      %v537 = vpop.f32.mrf.mxu0
      %v538 = vadd.f32 0.0, %v537
      %v539 = vpop.f32.mrf.mxu0
      %540 = vmatprep.mubr.f32.mxu0 0.0
      %541 = vmatmul.mubr.f32.gmra.mxu0 %v240
      %v542 = vpop.f32.mrf.mxu0
      %v543 = vadd.f32 0.0, %v542
      %v544 = vpop.f32.mrf.mxu0
      %545 = vmatprep.mubr.f32.mxu0 0.0
      %546 = vmatmul.mubr.f32.gmra.mxu0 %v241
      %v547 = vpop.f32.mrf.mxu0
      %v548 = vadd.f32 0.0, %v547
      %v549 = vpop.f32.mrf.mxu0
      %550 = vmatprep.mubr.f32.mxu0 0.0
      %551 = vmatmul.mubr.f32.gmra.mxu0 %v242
      %v552 = vpop.f32.mrf.mxu0
      %v553 = vadd.f32 0.0, %v552
      %v554 = vpop.f32.mrf.mxu0
      %555 = vmatprep.mubr.f32.mxu0 0.0
      %556 = vmatmul.mubr.f32.gmra.mxu0 %v243
      %v557 = vpop.f32.mrf.mxu0
      %v558 = vadd.f32 0.0, %v557
      %v559 = vpop.f32.mrf.mxu0
      %560 = vmatprep.mubr.f32.mxu0 0.0
      %561 = vmatmul.mubr.f32.gmra.mxu0 %v244
      %v562 = vpop.f32.mrf.mxu0
      %v563 = vadd.f32 0.0, %v562
      %v564 = vpop.f32.mrf.mxu0
      %565 = vmatprep.mubr.f32.mxu0 0.0
      %566 = vmatmul.mubr.f32.gmra.mxu0 %v245
      %v567 = vpop.f32.mrf.mxu0
      %v568 = vadd.f32 0.0, %v567
      %v569 = vpop.f32.mrf.mxu0
      %570 = vmatprep.mubr.f32.mxu0 0.0
      %571 = vmatmul.mubr.f32.gmra.mxu0 %v246
      %v572 = vpop.f32.mrf.mxu0
      %v573 = vadd.f32 0.0, %v572
      %v574 = vpop.f32.mrf.mxu0
      %575 = vmatprep.mubr.f32.mxu0 0.0
      %576 = vmatmul.mubr.f32.gmra.mxu0 %v247
      %v577 = vpop.f32.mrf.mxu0
      %v578 = vadd.f32 0.0, %v577
      %v579 = vpop.f32.mrf.mxu0
      %580 = vmatprep.mubr.f32.mxu0 0.0
      %581 = vmatmul.mubr.f32.gmra.mxu0 %v248
      %v582 = vpop.f32.mrf.mxu0
      %v583 = vadd.f32 0.0, %v582
      %v584 = vpop.f32.mrf.mxu0
      %585 = vmatprep.mubr.f32.mxu0 0.0
      %586 = vmatmul.mubr.f32.gmra.mxu0 %v249
      %v587 = vpop.f32.mrf.mxu0
      %v588 = vadd.f32 0.0, %v587
      %v589 = vpop.f32.mrf.mxu0
      %590 = vmatprep.mubr.f32.mxu0 0.0
      %591 = vmatmul.mubr.f32.gmra.mxu0 %v250
      %v592 = vpop.f32.mrf.mxu0
      %v593 = vadd.f32 0.0, %v592
      %v594 = vpop.f32.mrf.mxu0
      %595 = vmatprep.mubr.f32.mxu0 0.0
      %596 = vmatmul.mubr.f32.gmra.mxu0 %v251
      %v597 = vpop.f32.mrf.mxu0
      %v598 = vadd.f32 0.0, %v597
      %v599 = vpop.f32.mrf.mxu0
      %600 = vmatprep.mubr.f32.mxu0 0.0
      %601 = vmatmul.mubr.f32.gmra.mxu0 %v252
      %v602 = vpop.f32.mrf.mxu0
      %v603 = vadd.f32 0.0, %v602
      %v604 = vpop.f32.mrf.mxu0
      %605 = vmatprep.mubr.f32.mxu0 0.0
      %606 = vmatmul.mubr.f32.gmra.mxu0 %v253
      %v607 = vpop.f32.mrf.mxu0
      %v608 = vadd.f32 0.0, %v607
      %v609 = vpop.f32.mrf.mxu0
      %610 = vmatprep.mubr.f32.mxu0 0.0
      %611 = vmatmul.mubr.f32.gmra.mxu0 %v254
      %v612 = vpop.f32.mrf.mxu0
      %v613 = vadd.f32 0.0, %v612
      %v614 = vpop.f32.mrf.mxu0
      %615 = vmatprep.mubr.f32.mxu0 0.0
      %616 = vmatmul.mubr.f32.gmra.mxu0 %v255
      %v617 = vpop.f32.mrf.mxu0
      %v618 = vadd.f32 0.0, %v617
      %v619 = vpop.f32.mrf.mxu0
      %620 = vmatprep.mubr.f32.mxu0 0.0
      %621 = vmatmul.mubr.f32.gmra.mxu0 %v256
      %v622 = vpop.f32.mrf.mxu0
      %v623 = vadd.f32 0.0, %v622
      %v624 = vpop.f32.mrf.mxu0
      %625 = vmatprep.mubr.f32.mxu0 0.0
      %626 = vmatmul.mubr.f32.gmra.mxu0 %v257
      %v627 = vpop.f32.mrf.mxu0
      %v628 = vadd.f32 0.0, %v627
      %v629 = vpop.f32.mrf.mxu0
      %630 = vmatprep.mubr.f32.mxu0 0.0
      %631 = vmatmul.mubr.f32.gmra.mxu0 %v258
      %v632 = vpop.f32.mrf.mxu0
      %v633 = vadd.f32 0.0, %v632
      %v634 = vpop.f32.mrf.mxu0
      %635 = vmatprep.mubr.f32.mxu0 0.0
      %636 = vmatmul.mubr.f32.gmra.mxu0 %v259
      %v637 = vpop.f32.mrf.mxu0
      %v638 = vadd.f32 0.0, %v637
      %v639 = vpop.f32.mrf.mxu0
      %640 = vmatprep.mubr.f32.mxu0 0.0
      %641 = vmatmul.mubr.f32.gmra.mxu0 %v260
      %v642 = vpop.f32.mrf.mxu0
      %v643 = vadd.f32 0.0, %v642
      %v644 = vpop.f32.mrf.mxu0
      %645 = vmatprep.mubr.f32.mxu0 0.0
      %646 = vmatmul.mubr.f32.gmra.mxu0 %v261
      %v647 = vpop.f32.mrf.mxu0
      %v648 = vadd.f32 0.0, %v647
      %v649 = vpop.f32.mrf.mxu0
      %650 = vmatprep.mubr.f32.mxu0 0.0
      %651 = vmatmul.mubr.f32.gmra.mxu0 %v262
      %v652 = vpop.f32.mrf.mxu0
      %v653 = vadd.f32 0.0, %v652
      %v654 = vpop.f32.mrf.mxu0
      %655 = vmatprep.mubr.f32.mxu0 0.0
      %656 = vmatmul.mubr.f32.gmra.mxu0 %v263
      %v657 = vpop.f32.mrf.mxu0
      %v658 = vadd.f32 0.0, %v657
      %v659 = vpop.f32.mrf.mxu0
      %660 = vmatprep.mubr.f32.mxu0 0.0
      %661 = vmatmul.mubr.f32.gmra.mxu0 %v264
      %v662 = vpop.f32.mrf.mxu0
      %v663 = vadd.f32 0.0, %v662
      %v664 = vpop.f32.mrf.mxu0
      %665 = vdwg.mxu0
      %v666 = vld [vmem:[%s2] sm:$0x1]
      %v668 = vlaneseq
      %v669 = vshrl.u32 %v668, 7
      %v670 = vsub.s32 0, %v669
      %v671 = vrot.slane %v666, %v670
      %v673 = vmul.f32 %v348, %v671
      %v674 = vmul.f32 %v353, %v671
      %v675 = vmul.f32 %v358, %v671
      %v676 = vmul.f32 %v363, %v671
      %v677 = vmul.f32 %v368, %v671
      %v678 = vmul.f32 %v373, %v671
      %v679 = vmul.f32 %v378, %v671
      %v680 = vmul.f32 %v383, %v671
      %v681 = vmul.f32 %v388, %v671
      %v682 = vmul.f32 %v393, %v671
      %v683 = vmul.f32 %v398, %v671
      %v684 = vmul.f32 %v403, %v671
      %v685 = vmul.f32 %v408, %v671
      %v686 = vmul.f32 %v413, %v671
      %v687 = vmul.f32 %v418, %v671
      %v688 = vmul.f32 %v423, %v671
      %v689 = vmul.f32 %v428, %v671
      %v690 = vmul.f32 %v433, %v671
      %v691 = vmul.f32 %v438, %v671
      %v692 = vmul.f32 %v443, %v671
      %v693 = vmul.f32 %v448, %v671
      %v694 = vmul.f32 %v453, %v671
      %v695 = vmul.f32 %v458, %v671
      %v696 = vmul.f32 %v463, %v671
      %v697 = vmul.f32 %v468, %v671
      %v698 = vmul.f32 %v473, %v671
      %v699 = vmul.f32 %v478, %v671
      %v700 = vmul.f32 %v483, %v671
      %v701 = vmul.f32 %v488, %v671
      %v702 = vmul.f32 %v493, %v671
      %v703 = vmul.f32 %v498, %v671
      %v704 = vmul.f32 %v503, %v671
      %v705 = vmul.f32 %v508, %v671
      %v706 = vmul.f32 %v513, %v671
      %v707 = vmul.f32 %v518, %v671
      %v708 = vmul.f32 %v523, %v671
      %v709 = vmul.f32 %v528, %v671
      %v710 = vmul.f32 %v533, %v671
      %v711 = vmul.f32 %v538, %v671
      %v712 = vmul.f32 %v543, %v671
      %v713 = vmul.f32 %v548, %v671
      %v714 = vmul.f32 %v553, %v671
      %v715 = vmul.f32 %v558, %v671
      %v716 = vmul.f32 %v563, %v671
      %v717 = vmul.f32 %v568, %v671
      %v718 = vmul.f32 %v573, %v671
      %v719 = vmul.f32 %v578, %v671
      %v720 = vmul.f32 %v583, %v671
      %v721 = vmul.f32 %v588, %v671
      %v722 = vmul.f32 %v593, %v671
      %v723 = vmul.f32 %v598, %v671
      %v724 = vmul.f32 %v603, %v671
      %v725 = vmul.f32 %v608, %v671
      %v726 = vmul.f32 %v613, %v671
      %v727 = vmul.f32 %v618, %v671
      %v728 = vmul.f32 %v623, %v671
      %v729 = vmul.f32 %v628, %v671
      %v730 = vmul.f32 %v633, %v671
      %v731 = vmul.f32 %v638, %v671
      %v732 = vmul.f32 %v643, %v671
      %v733 = vmul.f32 %v648, %v671
      %v734 = vmul.f32 %v653, %v671
      %v735 = vmul.f32 %v658, %v671
      %v736 = vmul.f32 %v663, %v671
      %v737 = vld [vmem:[%s3] sm:$0x1]
      %v739 = vlaneseq
      %v740 = vshrl.u32 %v739, 7
      %v741 = vsub.s32 0, %v740
      %v742 = vrot.slane %v737, %v741
      %v744 = vadd.f32 %v673, %v742
      %v745 = vadd.f32 %v674, %v742
      %v746 = vadd.f32 %v675, %v742
      %v747 = vadd.f32 %v676, %v742
      %v748 = vadd.f32 %v677, %v742
      %v749 = vadd.f32 %v678, %v742
      %v750 = vadd.f32 %v679, %v742
      %v751 = vadd.f32 %v680, %v742
      %v752 = vadd.f32 %v681, %v742
      %v753 = vadd.f32 %v682, %v742
      %v754 = vadd.f32 %v683, %v742
      %v755 = vadd.f32 %v684, %v742
      %v756 = vadd.f32 %v685, %v742
      %v757 = vadd.f32 %v686, %v742
      %v758 = vadd.f32 %v687, %v742
      %v759 = vadd.f32 %v688, %v742
      %v760 = vadd.f32 %v689, %v742
      %v761 = vadd.f32 %v690, %v742
      %v762 = vadd.f32 %v691, %v742
      %v763 = vadd.f32 %v692, %v742
      %v764 = vadd.f32 %v693, %v742
      %v765 = vadd.f32 %v694, %v742
      %v766 = vadd.f32 %v695, %v742
      %v767 = vadd.f32 %v696, %v742
      %v768 = vadd.f32 %v697, %v742
      %v769 = vadd.f32 %v698, %v742
      %v770 = vadd.f32 %v699, %v742
      %v771 = vadd.f32 %v700, %v742
      %v772 = vadd.f32 %v701, %v742
      %v773 = vadd.f32 %v702, %v742
      %v774 = vadd.f32 %v703, %v742
      %v775 = vadd.f32 %v704, %v742
      %v776 = vadd.f32 %v705, %v742
      %v777 = vadd.f32 %v706, %v742
      %v778 = vadd.f32 %v707, %v742
      %v779 = vadd.f32 %v708, %v742
      %v780 = vadd.f32 %v709, %v742
      %v781 = vadd.f32 %v710, %v742
      %v782 = vadd.f32 %v711, %v742
      %v783 = vadd.f32 %v712, %v742
      %v784 = vadd.f32 %v713, %v742
      %v785 = vadd.f32 %v714, %v742
      %v786 = vadd.f32 %v715, %v742
      %v787 = vadd.f32 %v716, %v742
      %v788 = vadd.f32 %v717, %v742
      %v789 = vadd.f32 %v718, %v742
      %v790 = vadd.f32 %v719, %v742
      %v791 = vadd.f32 %v720, %v742
      %v792 = vadd.f32 %v721, %v742
      %v793 = vadd.f32 %v722, %v742
      %v794 = vadd.f32 %v723, %v742
      %v795 = vadd.f32 %v724, %v742
      %v796 = vadd.f32 %v725, %v742
      %v797 = vadd.f32 %v726, %v742
      %v798 = vadd.f32 %v727, %v742
      %v799 = vadd.f32 %v728, %v742
      %v800 = vadd.f32 %v729, %v742
      %v801 = vadd.f32 %v730, %v742
      %v802 = vadd.f32 %v731, %v742
      %v803 = vadd.f32 %v732, %v742
      %v804 = vadd.f32 %v733, %v742
      %v805 = vadd.f32 %v734, %v742
      %v806 = vadd.f32 %v735, %v742
      %v807 = vadd.f32 %v736, %v742
      %v808 = vmax.f32 %v744, 0.0
      %v809 = vmax.f32 %v745, 0.0
      %v810 = vmax.f32 %v746, 0.0
      %v811 = vmax.f32 %v747, 0.0
      %v812 = vmax.f32 %v748, 0.0
      %v813 = vmax.f32 %v749, 0.0
      %v814 = vmax.f32 %v750, 0.0
      %v815 = vmax.f32 %v751, 0.0
      %v816 = vmax.f32 %v752, 0.0
      %v817 = vmax.f32 %v753, 0.0
      %v818 = vmax.f32 %v754, 0.0
      %v819 = vmax.f32 %v755, 0.0
      %v820 = vmax.f32 %v756, 0.0
      %v821 = vmax.f32 %v757, 0.0
      %v822 = vmax.f32 %v758, 0.0
      %v823 = vmax.f32 %v759, 0.0
      %v824 = vmax.f32 %v760, 0.0
      %v825 = vmax.f32 %v761, 0.0
      %v826 = vmax.f32 %v762, 0.0
      %v827 = vmax.f32 %v763, 0.0
      %v828 = vmax.f32 %v764, 0.0
      %v829 = vmax.f32 %v765, 0.0
      %v830 = vmax.f32 %v766, 0.0
      %v831 = vmax.f32 %v767, 0.0
      %v832 = vmax.f32 %v768, 0.0
      %v833 = vmax.f32 %v769, 0.0
      %v834 = vmax.f32 %v770, 0.0
      %v835 = vmax.f32 %v771, 0.0
      %v836 = vmax.f32 %v772, 0.0
      %v837 = vmax.f32 %v773, 0.0
      %v838 = vmax.f32 %v774, 0.0
      %v839 = vmax.f32 %v775, 0.0
      %v840 = vmax.f32 %v776, 0.0
      %v841 = vmax.f32 %v777, 0.0
      %v842 = vmax.f32 %v778, 0.0
      %v843 = vmax.f32 %v779, 0.0
      %v844 = vmax.f32 %v780, 0.0
      %v845 = vmax.f32 %v781, 0.0
      %v846 = vmax.f32 %v782, 0.0
      %v847 = vmax.f32 %v783, 0.0
      %v848 = vmax.f32 %v784, 0.0
      %v849 = vmax.f32 %v785, 0.0
      %v850 = vmax.f32 %v786, 0.0
      %v851 = vmax.f32 %v787, 0.0
      %v852 = vmax.f32 %v788, 0.0
      %v853 = vmax.f32 %v789, 0.0
      %v854 = vmax.f32 %v790, 0.0
      %v855 = vmax.f32 %v791, 0.0
      %v856 = vmax.f32 %v792, 0.0
      %v857 = vmax.f32 %v793, 0.0
      %v858 = vmax.f32 %v794, 0.0
      %v859 = vmax.f32 %v795, 0.0
      %v860 = vmax.f32 %v796, 0.0
      %v861 = vmax.f32 %v797, 0.0
      %v862 = vmax.f32 %v798, 0.0
      %v863 = vmax.f32 %v799, 0.0
      %v864 = vmax.f32 %v800, 0.0
      %v865 = vmax.f32 %v801, 0.0
      %v866 = vmax.f32 %v802, 0.0
      %v867 = vmax.f32 %v803, 0.0
      %v868 = vmax.f32 %v804, 0.0
      %v869 = vmax.f32 %v805, 0.0
      %v870 = vmax.f32 %v806, 0.0
      %v871 = vmax.f32 %v807, 0.0
      %872 = vst [vmem:[%s199] sm:$0xff] %v808
      %873 = vst [vmem:[%s199 + $0x8] sm:$0xff] %v809
      %874 = vst [vmem:[%s199 + $0x10] sm:$0xff] %v810
      %875 = vst [vmem:[%s199 + $0x18] sm:$0xff] %v811
      %876 = vst [vmem:[%s199 + $0x20] sm:$0xff] %v812
      %877 = vst [vmem:[%s199 + $0x28] sm:$0xff] %v813
      %878 = vst [vmem:[%s199 + $0x30] sm:$0xff] %v814
      %879 = vst [vmem:[%s199 + $0x38] sm:$0xff] %v815
      %880 = vst [vmem:[%s199 + $0x40] sm:$0xff] %v816
      %881 = vst [vmem:[%s199 + $0x48] sm:$0xff] %v817
      %882 = vst [vmem:[%s199 + $0x50] sm:$0xff] %v818
      %883 = vst [vmem:[%s199 + $0x58] sm:$0xff] %v819
      %884 = vst [vmem:[%s199 + $0x60] sm:$0xff] %v820
      %885 = vst [vmem:[%s199 + $0x68] sm:$0xff] %v821
      %886 = vst [vmem:[%s199 + $0x70] sm:$0xff] %v822
      %887 = vst [vmem:[%s199 + $0x78] sm:$0xff] %v823
      %888 = vst [vmem:[%s199 + $0x80] sm:$0xff] %v824
      %889 = vst [vmem:[%s199 + $0x88] sm:$0xff] %v825
      %890 = vst [vmem:[%s199 + $0x90] sm:$0xff] %v826
      %891 = vst [vmem:[%s199 + $0x98] sm:$0xff] %v827
      %892 = vst [vmem:[%s199 + $0xa0] sm:$0xff] %v828
      %893 = vst [vmem:[%s199 + $0xa8] sm:$0xff] %v829
      %894 = vst [vmem:[%s199 + $0xb0] sm:$0xff] %v830
      %895 = vst [vmem:[%s199 + $0xb8] sm:$0xff] %v831
      %896 = vst [vmem:[%s199 + $0xc0] sm:$0xff] %v832
      %897 = vst [vmem:[%s199 + $0xc8] sm:$0xff] %v833
      %898 = vst [vmem:[%s199 + $0xd0] sm:$0xff] %v834
      %899 = vst [vmem:[%s199 + $0xd8] sm:$0xff] %v835
      %900 = vst [vmem:[%s199 + $0xe0] sm:$0xff] %v836
      %901 = vst [vmem:[%s199 + $0xe8] sm:$0xff] %v837
      %902 = vst [vmem:[%s199 + $0xf0] sm:$0xff] %v838
      %903 = vst [vmem:[%s199 + $0xf8] sm:$0xff] %v839
      %904 = vst [vmem:[%s199 + $0x100] sm:$0xff] %v840
      %905 = vst [vmem:[%s199 + $0x108] sm:$0xff] %v841
      %906 = vst [vmem:[%s199 + $0x110] sm:$0xff] %v842
      %907 = vst [vmem:[%s199 + $0x118] sm:$0xff] %v843
      %908 = vst [vmem:[%s199 + $0x120] sm:$0xff] %v844
      %909 = vst [vmem:[%s199 + $0x128] sm:$0xff] %v845
      %910 = vst [vmem:[%s199 + $0x130] sm:$0xff] %v846
      %911 = vst [vmem:[%s199 + $0x138] sm:$0xff] %v847
      %912 = vst [vmem:[%s199 + $0x140] sm:$0xff] %v848
      %913 = vst [vmem:[%s199 + $0x148] sm:$0xff] %v849
      %914 = vst [vmem:[%s199 + $0x150] sm:$0xff] %v850
      %915 = vst [vmem:[%s199 + $0x158] sm:$0xff] %v851
      %916 = vst [vmem:[%s199 + $0x160] sm:$0xff] %v852
      %917 = vst [vmem:[%s199 + $0x168] sm:$0xff] %v853
      %918 = vst [vmem:[%s199 + $0x170] sm:$0xff] %v854
      %919 = vst [vmem:[%s199 + $0x178] sm:$0xff] %v855
      %920 = vst [vmem:[%s199 + $0x180] sm:$0xff] %v856
      %921 = vst [vmem:[%s199 + $0x188] sm:$0xff] %v857
      %922 = vst [vmem:[%s199 + $0x190] sm:$0xff] %v858
      %923 = vst [vmem:[%s199 + $0x198] sm:$0xff] %v859
      %924 = vst [vmem:[%s199 + $0x1a0] sm:$0xff] %v860
      %925 = vst [vmem:[%s199 + $0x1a8] sm:$0xff] %v861
      %926 = vst [vmem:[%s199 + $0x1b0] sm:$0xff] %v862
      %927 = vst [vmem:[%s199 + $0x1b8] sm:$0xff] %v863
      %928 = vst [vmem:[%s199 + $0x1c0] sm:$0xff] %v864
      %929 = vst [vmem:[%s199 + $0x1c8] sm:$0xff] %v865
      %930 = vst [vmem:[%s199 + $0x1d0] sm:$0xff] %v866
      %931 = vst [vmem:[%s199 + $0x1d8] sm:$0xff] %v867
      %932 = vst [vmem:[%s199 + $0x1e0] sm:$0xff] %v868
      %933 = vst [vmem:[%s199 + $0x1e8] sm:$0xff] %v869
      %934 = vst [vmem:[%s199 + $0x1f0] sm:$0xff] %v870
      %935 = vst [vmem:[%s199 + $0x1f8] sm:$0xff] %v871
      %s936 = smul.u32 64, %s15
      %p937 = scmp.lt.s32.totalorder %s936, 127
      %s938 = scalar_select %p937, %s936, 127
      %s939 = smul.addr %s938, 8
      %s940 = scalar_lea.vmem %s4, %s939
      // Predicated region
      $region37: #{up_double_3d_conv.5} parent=35 // pred_check
        %p941 = pneg %p122
      $region38: #{up_double_3d_conv.5} parent=35 // pred_check_branch
        %943 = sbr.rel (%p941) target = $region40
      $region39: #{up_double_3d_conv.5} parent=35 // pred_region
        %s944 = smul.u32 64, %s15
      $region40: #{up_double_3d_conv.5} parent=35 // pred_fallthru
        _
    $region36: #{up_double_3d_conv.5} parent=5 // pred_fallthru
      _
    %p945 = scmp.le.s32.totalorder 2, %s10
    // Predicated region
    $region41: #{up_double_3d_conv.5} parent=5 // pred_check
      %p946 = pneg %p945
    $region42: #{up_double_3d_conv.5} parent=5 // pred_check_branch
      %948 = sbr.rel (%p946) target = $region44
    $region43: #{up_double_3d_conv.5} parent=5 // pred_region
      %s949 = ssub.s32 %s10, 2
      // Predicated region
      $region45: #{up_double_3d_conv.5} parent=43 // pred_check
        %p950 = pneg %p128
      $region46: #{up_double_3d_conv.5} parent=43 // pred_check_branch
        %952 = sbr.rel (%p950) target = $region48
      $region47: #{up_double_3d_conv.5} parent=43 // pred_region
        %s953 = smul.u32 64, %s16
        %p954 = scmp.lt.s32.totalorder %s953, 127
        %s955 = scalar_select %p954, %s953, 127
        %s956 = smul.addr %s955, 8
        %s957 = scalar_lea.vmem %s4, %s956
      $region48: #{up_double_3d_conv.5} parent=43 // pred_fallthru
        _
    $region44: #{up_double_3d_conv.5} parent=5 // pred_fallthru
      _
  $region6: #{up_double_3d_conv.5} parent=0 // loop_footer
    %s14 = sadd.s32 1, %s10
  $region7: #{up_double_3d_conv.5} parent=0 // loop_footer_branch
    %9 = sbr.rel target = $region3
  $region8: #{up_double_3d_conv.5} parent=0 // loop_exit
    _

// kernel: up_double_3d_conv.6
$region0: #{up_double_3d_conv.6}
  #allocation0 [shape = 'u32[]', space=smem, size = 0x4, offset = 0x4, fixed_abs, tag = 'smem constant byte address 0x4 - core index']
  #allocation1 [shape = 'u32[144,128]{1,0:T(1,128)}', space=vmem, size = 0x12000, scoped, tag = 'internal scratch']
  %s0 = inlined_call_operand.vmem [shape: f32[1024,256], index: 0, kind: input, shape index: {}]
  %s1 = inlined_call_operand.vmem [shape: f32[256,128], index: 1, kind: input, shape index: {}]
  %s2 = inlined_call_operand.vmem [shape: f32[2,1,128], index: 2, kind: output, shape index: {0}]
  %s3 = inlined_call_operand.vmem [shape: f32[2,1,128], index: 3, kind: output, shape index: {1}]
  %4 = xla_tuple %s2, %s3
  %s5 = sld [smem:[#allocation0]]
  $region49: #{up_double_3d_conv.6} parent=0
    _
  %s7 = ssub.s32 1, %s5
  %s8 = scalar_select 0, %s7, %s5
  loop: start=0, step=1, limit=4
  $region2: #{up_double_3d_conv.6} parent=0 // loop_pre_header
    _
  $region3: #{up_double_3d_conv.6} parent=0 // loop_header
    %s10 = sphi 0, %s14
    %p11 = scmp.ge.s32.totalorder %s10, 4
    %s20 = sphi 0, %s22
    %s23 = sphi 0, %s20
    %s24 = sphi 0, %s23
    %s40 = sphi 0, %s24
    %s44 = sphi 0, %s44
    %s46 = sphi 0, %s44
    %s47 = sphi 0, %s46
    %s61 = sphi 0, %s47
    %s67 = sphi 0, %s69
    %s70 = sphi 0, %s67
    %s71 = sphi 0, %s70
    %s87 = sphi 0, %s71
    %s93 = sphi 0, %s95
    %s96 = sphi 0, %s93
    %s97 = sphi 0, %s96
    %s113 = sphi 0, %s97
  $region4: #{up_double_3d_conv.6} parent=0 // loop_header_branch
    %13 = sbr.rel (%p11) target = $region8
  $region5: #{up_double_3d_conv.6} parent=0 // loop_body
    %s15 = ssub.s32 %s10, 1
    %s16 = ssub.s32 %s10, 2
    %s17 = sadd.s32 %s10, 1
    %s18 = ssub.s32 %s10, %s17
    %p19 = scmp.eq.s32.totalorder %s18, 0
    %s21 = sadd.s32 %s20, 1
    %s22 = scalar_select %p19, %s20, %s21
    %p25 = pneg %p19
    %p26 = scmp.eq.s32.totalorder %s10, 1
    %p27 = por %p25, %p26
    %p28 = scmp.ne.s32.totalorder %s20, %s23
    %p29 = scmp.eq.s32.totalorder %s10, 0
    %p30 = por %p28, %p29
    %p31 = scmp.ne.s32.totalorder %s20, %s23
    %p32 = scmp.eq.s32.totalorder %s15, 1
    %p33 = por %p31, %p32
    %p34 = scmp.ne.s32.totalorder %s23, %s24
    %p35 = scmp.eq.s32.totalorder %s15, 0
    %p36 = por %p34, %p35
    %p37 = scmp.ne.s32.totalorder %s23, %s24
    %p38 = scmp.eq.s32.totalorder %s16, 1
    %p39 = por %p37, %p38
    %p41 = scmp.ne.s32.totalorder %s24, %s40
    %p42 = scmp.eq.s32.totalorder %s16, 0
    %p43 = por %p41, %p42
    %s45 = sadd.s32 %s44, 1
    %p48 = scmp.eq.s32.totalorder %s10, 1
    %p49 = scmp.ne.s32.totalorder %s44, %s46
    %p50 = scmp.eq.s32.totalorder %s10, 0
    %p51 = por %p49, %p50
    %p52 = scmp.ne.s32.totalorder %s44, %s46
    %p53 = scmp.eq.s32.totalorder %s15, 1
    %p54 = por %p52, %p53
    %p55 = scmp.ne.s32.totalorder %s46, %s47
    %p56 = scmp.eq.s32.totalorder %s15, 0
    %p57 = por %p55, %p56
    %p58 = scmp.ne.s32.totalorder %s46, %s47
    %p59 = scmp.eq.s32.totalorder %s16, 1
    %p60 = por %p58, %p59
    %p62 = scmp.ne.s32.totalorder %s47, %s61
    %p63 = scmp.eq.s32.totalorder %s16, 0
    %p64 = por %p62, %p63
    %s65 = ssub.s32 %s10, %s17
    %p66 = scmp.eq.s32.totalorder %s65, 0
    %s68 = sadd.s32 %s67, 1
    %s69 = scalar_select %p66, %s67, %s68
    %p72 = pneg %p66
    %p73 = scmp.eq.s32.totalorder %s10, 1
    %p74 = por %p72, %p73
    %p75 = scmp.ne.s32.totalorder %s67, %s70
    %p76 = scmp.eq.s32.totalorder %s10, 0
    %p77 = por %p75, %p76
    %p78 = scmp.ne.s32.totalorder %s67, %s70
    %p79 = scmp.eq.s32.totalorder %s15, 1
    %p80 = por %p78, %p79
    %p81 = scmp.ne.s32.totalorder %s70, %s71
    %p82 = scmp.eq.s32.totalorder %s15, 0
    %p83 = por %p81, %p82
    %p84 = scmp.ne.s32.totalorder %s70, %s71
    %p85 = scmp.eq.s32.totalorder %s16, 1
    %p86 = por %p84, %p85
    %p88 = scmp.ne.s32.totalorder %s71, %s87
    %p89 = scmp.eq.s32.totalorder %s16, 0
    %p90 = por %p88, %p89
    %s91 = ssub.s32 %s10, %s17
    %p92 = scmp.eq.s32.totalorder %s91, 0
    %s94 = sadd.s32 %s93, 1
    %s95 = scalar_select %p92, %s93, %s94
    %p98 = pneg %p92
    %p99 = scmp.eq.s32.totalorder %s10, 1
    %p100 = por %p98, %p99
    %p101 = scmp.ne.s32.totalorder %s93, %s96
    %p102 = scmp.eq.s32.totalorder %s10, 0
    %p103 = por %p101, %p102
    %p104 = scmp.ne.s32.totalorder %s93, %s96
    %p105 = scmp.eq.s32.totalorder %s15, 1
    %p106 = por %p104, %p105
    %p107 = scmp.ne.s32.totalorder %s96, %s97
    %p108 = scmp.eq.s32.totalorder %s15, 0
    %p109 = por %p107, %p108
    %p110 = scmp.ne.s32.totalorder %s96, %s97
    %p111 = scmp.eq.s32.totalorder %s16, 1
    %p112 = por %p110, %p111
    %p114 = scmp.ne.s32.totalorder %s97, %s113
    %p115 = scmp.eq.s32.totalorder %s16, 0
    %p116 = por %p114, %p115
    %p117 = scmp.le.s32.totalorder 1, %s10
    %p118 = scmp.lt.s32.totalorder %s10, 3
    %p119 = pnand %p117, %p118
    %p120 = pneg %p119
    // Predicated region
    $region9: #{up_double_3d_conv.6} parent=5 // pred_check
      _
    $region10: #{up_double_3d_conv.6} parent=5 // pred_check_branch
      %122 = sbr.rel (%p119) target = $region12
    $region11: #{up_double_3d_conv.6} parent=5 // pred_region
      %s123 = ssub.s32 %s10, 1
      // Predicated region
      $region13: #{up_double_3d_conv.6} parent=11 // pred_check
        %p124 = pneg %p57
      $region14: #{up_double_3d_conv.6} parent=11 // pred_check_branch
        %126 = sbr.rel (%p124) target = $region16
      $region15: #{up_double_3d_conv.6} parent=11 // pred_region
        _
      $region16: #{up_double_3d_conv.6} parent=11 // pred_fallthru
        _
    $region12: #{up_double_3d_conv.6} parent=5 // pred_fallthru
      _
    %p127 = scmp.lt.s32.totalorder %s10, 2
    // Predicated region
    $region17: #{up_double_3d_conv.6} parent=5 // pred_check
      %p128 = pneg %p127
    $region18: #{up_double_3d_conv.6} parent=5 // pred_check_branch
      %130 = sbr.rel (%p128) target = $region20
    $region19: #{up_double_3d_conv.6} parent=5 // pred_region
      // Predicated region
      $region21: #{up_double_3d_conv.6} parent=19 // pred_check
        %p131 = pneg %p30
      $region22: #{up_double_3d_conv.6} parent=19 // pred_check_branch
        %133 = sbr.rel (%p131) target = $region24
      $region23: #{up_double_3d_conv.6} parent=19 // pred_region
        %s134 = smul.u32 64, %s10
        %p135 = scmp.lt.s32.totalorder %s134, 127
        %s136 = scalar_select %p135, %s134, 127
        %s137 = smul.addr %s136, 2
        %s138 = smul.addr %s137, 8
        %s139 = scalar_lea.vmem %s0, %s138
        %s140 = smul.u32 64, %s10
      $region24: #{up_double_3d_conv.6} parent=19 // pred_fallthru
        _
    $region20: #{up_double_3d_conv.6} parent=5 // pred_fallthru
      _
    %p141 = scmp.le.s32.totalorder 1, %s10
    %p142 = scmp.lt.s32.totalorder %s10, 3
    %p143 = pnand %p141, %p142
    %p144 = pneg %p143
    // Predicated region
    $region25: #{up_double_3d_conv.6} parent=5 // pred_check
      _
    $region26: #{up_double_3d_conv.6} parent=5 // pred_check_branch
      %146 = sbr.rel (%p143) target = $region28
    $region27: #{up_double_3d_conv.6} parent=5 // pred_region
      %s147 = ssub.s32 %s10, 1
      %s148 = smul.u32 64, %s15
      %p149 = scmp.lt.s32.totalorder %s148, 127
      %s150 = scalar_select %p149, %s148, 127
      %s151 = smul.addr %s150, 2
      %s152 = smul.addr %s151, 8
      %s153 = scalar_lea.vmem %s0, %s152
      %p154 = pneg %p36
      %p155 = pneg %p33
      %p156 = pneg %p57
      %p157 = pneg %p54
      %p158 = pneg %p83
      %p159 = pneg %p80
      %p160 = scmp.lt.s32.totalorder %s15, 1
      %s161 = scalar_select %p160, %s15, 1
      %s162 = scalar_lea.vmem %s2, %s161
      %p163 = pneg %p109
      %p164 = pneg %p106
      %p165 = scmp.lt.s32.totalorder %s15, 1
      %s166 = scalar_select %p165, %s15, 1
      %s167 = scalar_lea.vmem %s3, %s166
      %s168 = smul.u32 64, %s15
      %p169 = scmp.lt.s32.totalorder %s168, 127
      %s170 = scalar_select %p169, %s168, 127
      %s171 = smul.addr %s170, 2
      %s172 = smul.addr %s171, 8
      %s173 = scalar_lea.vmem %s0, %s172
      %s174 = smul.u32 64, %s15
      %p175 = scmp.lt.s32.totalorder %s15, 1
      %s176 = scalar_select %p175, %s15, 1
      %s177 = scalar_lea.vmem %s2, %s176
      %p178 = scmp.lt.s32.totalorder %s15, 1
      %s179 = scalar_select %p178, %s15, 1
      %s180 = scalar_lea.vmem %s3, %s179
      %v181 = vld [vmem:[%s173] sm:$0xff]
      %v182 = vld [vmem:[%s173 + $0x8] sm:$0xff]
      %v183 = vld [vmem:[%s173 + $0x10] sm:$0xff]
      %v184 = vld [vmem:[%s173 + $0x18] sm:$0xff]
      %v185 = vld [vmem:[%s173 + $0x20] sm:$0xff]
      %v186 = vld [vmem:[%s173 + $0x28] sm:$0xff]
      %v187 = vld [vmem:[%s173 + $0x30] sm:$0xff]
      %v188 = vld [vmem:[%s173 + $0x38] sm:$0xff]
      %v189 = vld [vmem:[%s173 + $0x40] sm:$0xff]
      %v190 = vld [vmem:[%s173 + $0x48] sm:$0xff]
      %v191 = vld [vmem:[%s173 + $0x50] sm:$0xff]
      %v192 = vld [vmem:[%s173 + $0x58] sm:$0xff]
      %v193 = vld [vmem:[%s173 + $0x60] sm:$0xff]
      %v194 = vld [vmem:[%s173 + $0x68] sm:$0xff]
      %v195 = vld [vmem:[%s173 + $0x70] sm:$0xff]
      %v196 = vld [vmem:[%s173 + $0x78] sm:$0xff]
      %v197 = vld [vmem:[%s173 + $0x80] sm:$0xff]
      %v198 = vld [vmem:[%s173 + $0x88] sm:$0xff]
      %v199 = vld [vmem:[%s173 + $0x90] sm:$0xff]
      %v200 = vld [vmem:[%s173 + $0x98] sm:$0xff]
      %v201 = vld [vmem:[%s173 + $0xa0] sm:$0xff]
      %v202 = vld [vmem:[%s173 + $0xa8] sm:$0xff]
      %v203 = vld [vmem:[%s173 + $0xb0] sm:$0xff]
      %v204 = vld [vmem:[%s173 + $0xb8] sm:$0xff]
      %v205 = vld [vmem:[%s173 + $0xc0] sm:$0xff]
      %v206 = vld [vmem:[%s173 + $0xc8] sm:$0xff]
      %v207 = vld [vmem:[%s173 + $0xd0] sm:$0xff]
      %v208 = vld [vmem:[%s173 + $0xd8] sm:$0xff]
      %v209 = vld [vmem:[%s173 + $0xe0] sm:$0xff]
      %v210 = vld [vmem:[%s173 + $0xe8] sm:$0xff]
      %v211 = vld [vmem:[%s173 + $0xf0] sm:$0xff]
      %v212 = vld [vmem:[%s173 + $0xf8] sm:$0xff]
      %v213 = vld [vmem:[%s173 + $0x100] sm:$0xff]
      %v214 = vld [vmem:[%s173 + $0x108] sm:$0xff]
      %v215 = vld [vmem:[%s173 + $0x110] sm:$0xff]
      %v216 = vld [vmem:[%s173 + $0x118] sm:$0xff]
      %v217 = vld [vmem:[%s173 + $0x120] sm:$0xff]
      %v218 = vld [vmem:[%s173 + $0x128] sm:$0xff]
      %v219 = vld [vmem:[%s173 + $0x130] sm:$0xff]
      %v220 = vld [vmem:[%s173 + $0x138] sm:$0xff]
      %v221 = vld [vmem:[%s173 + $0x140] sm:$0xff]
      %v222 = vld [vmem:[%s173 + $0x148] sm:$0xff]
      %v223 = vld [vmem:[%s173 + $0x150] sm:$0xff]
      %v224 = vld [vmem:[%s173 + $0x158] sm:$0xff]
      %v225 = vld [vmem:[%s173 + $0x160] sm:$0xff]
      %v226 = vld [vmem:[%s173 + $0x168] sm:$0xff]
      %v227 = vld [vmem:[%s173 + $0x170] sm:$0xff]
      %v228 = vld [vmem:[%s173 + $0x178] sm:$0xff]
      %v229 = vld [vmem:[%s173 + $0x180] sm:$0xff]
      %v230 = vld [vmem:[%s173 + $0x188] sm:$0xff]
      %v231 = vld [vmem:[%s173 + $0x190] sm:$0xff]
      %v232 = vld [vmem:[%s173 + $0x198] sm:$0xff]
      %v233 = vld [vmem:[%s173 + $0x1a0] sm:$0xff]
      %v234 = vld [vmem:[%s173 + $0x1a8] sm:$0xff]
      %v235 = vld [vmem:[%s173 + $0x1b0] sm:$0xff]
      %v236 = vld [vmem:[%s173 + $0x1b8] sm:$0xff]
      %v237 = vld [vmem:[%s173 + $0x1c0] sm:$0xff]
      %v238 = vld [vmem:[%s173 + $0x1c8] sm:$0xff]
      %v239 = vld [vmem:[%s173 + $0x1d0] sm:$0xff]
      %v240 = vld [vmem:[%s173 + $0x1d8] sm:$0xff]
      %v241 = vld [vmem:[%s173 + $0x1e0] sm:$0xff]
      %v242 = vld [vmem:[%s173 + $0x1e8] sm:$0xff]
      %v243 = vld [vmem:[%s173 + $0x1f0] sm:$0xff]
      %v244 = vld [vmem:[%s173 + $0x1f8] sm:$0xff]
      %v245 = vld [vmem:[%s173 + $0x200] sm:$0xff]
      %v246 = vld [vmem:[%s173 + $0x208] sm:$0xff]
      %v247 = vld [vmem:[%s173 + $0x210] sm:$0xff]
      %v248 = vld [vmem:[%s173 + $0x218] sm:$0xff]
      %v249 = vld [vmem:[%s173 + $0x220] sm:$0xff]
      %v250 = vld [vmem:[%s173 + $0x228] sm:$0xff]
      %v251 = vld [vmem:[%s173 + $0x230] sm:$0xff]
      %v252 = vld [vmem:[%s173 + $0x238] sm:$0xff]
      %v253 = vld [vmem:[%s173 + $0x240] sm:$0xff]
      %v254 = vld [vmem:[%s173 + $0x248] sm:$0xff]
      %v255 = vld [vmem:[%s173 + $0x250] sm:$0xff]
      %v256 = vld [vmem:[%s173 + $0x258] sm:$0xff]
      %v257 = vld [vmem:[%s173 + $0x260] sm:$0xff]
      %v258 = vld [vmem:[%s173 + $0x268] sm:$0xff]
      %v259 = vld [vmem:[%s173 + $0x270] sm:$0xff]
      %v260 = vld [vmem:[%s173 + $0x278] sm:$0xff]
      %v261 = vld [vmem:[%s173 + $0x280] sm:$0xff]
      %v262 = vld [vmem:[%s173 + $0x288] sm:$0xff]
      %v263 = vld [vmem:[%s173 + $0x290] sm:$0xff]
      %v264 = vld [vmem:[%s173 + $0x298] sm:$0xff]
      %v265 = vld [vmem:[%s173 + $0x2a0] sm:$0xff]
      %v266 = vld [vmem:[%s173 + $0x2a8] sm:$0xff]
      %v267 = vld [vmem:[%s173 + $0x2b0] sm:$0xff]
      %v268 = vld [vmem:[%s173 + $0x2b8] sm:$0xff]
      %v269 = vld [vmem:[%s173 + $0x2c0] sm:$0xff]
      %v270 = vld [vmem:[%s173 + $0x2c8] sm:$0xff]
      %v271 = vld [vmem:[%s173 + $0x2d0] sm:$0xff]
      %v272 = vld [vmem:[%s173 + $0x2d8] sm:$0xff]
      %v273 = vld [vmem:[%s173 + $0x2e0] sm:$0xff]
      %v274 = vld [vmem:[%s173 + $0x2e8] sm:$0xff]
      %v275 = vld [vmem:[%s173 + $0x2f0] sm:$0xff]
      %v276 = vld [vmem:[%s173 + $0x2f8] sm:$0xff]
      %v277 = vld [vmem:[%s173 + $0x300] sm:$0xff]
      %v278 = vld [vmem:[%s173 + $0x308] sm:$0xff]
      %v279 = vld [vmem:[%s173 + $0x310] sm:$0xff]
      %v280 = vld [vmem:[%s173 + $0x318] sm:$0xff]
      %v281 = vld [vmem:[%s173 + $0x320] sm:$0xff]
      %v282 = vld [vmem:[%s173 + $0x328] sm:$0xff]
      %v283 = vld [vmem:[%s173 + $0x330] sm:$0xff]
      %v284 = vld [vmem:[%s173 + $0x338] sm:$0xff]
      %v285 = vld [vmem:[%s173 + $0x340] sm:$0xff]
      %v286 = vld [vmem:[%s173 + $0x348] sm:$0xff]
      %v287 = vld [vmem:[%s173 + $0x350] sm:$0xff]
      %v288 = vld [vmem:[%s173 + $0x358] sm:$0xff]
      %v289 = vld [vmem:[%s173 + $0x360] sm:$0xff]
      %v290 = vld [vmem:[%s173 + $0x368] sm:$0xff]
      %v291 = vld [vmem:[%s173 + $0x370] sm:$0xff]
      %v292 = vld [vmem:[%s173 + $0x378] sm:$0xff]
      %v293 = vld [vmem:[%s173 + $0x380] sm:$0xff]
      %v294 = vld [vmem:[%s173 + $0x388] sm:$0xff]
      %v295 = vld [vmem:[%s173 + $0x390] sm:$0xff]
      %v296 = vld [vmem:[%s173 + $0x398] sm:$0xff]
      %v297 = vld [vmem:[%s173 + $0x3a0] sm:$0xff]
      %v298 = vld [vmem:[%s173 + $0x3a8] sm:$0xff]
      %v299 = vld [vmem:[%s173 + $0x3b0] sm:$0xff]
      %v300 = vld [vmem:[%s173 + $0x3b8] sm:$0xff]
      %v301 = vld [vmem:[%s173 + $0x3c0] sm:$0xff]
      %v302 = vld [vmem:[%s173 + $0x3c8] sm:$0xff]
      %v303 = vld [vmem:[%s173 + $0x3d0] sm:$0xff]
      %v304 = vld [vmem:[%s173 + $0x3d8] sm:$0xff]
      %v305 = vld [vmem:[%s173 + $0x3e0] sm:$0xff]
      %v306 = vld [vmem:[%s173 + $0x3e8] sm:$0xff]
      %v307 = vld [vmem:[%s173 + $0x3f0] sm:$0xff]
      %v308 = vld [vmem:[%s173 + $0x3f8] sm:$0xff]
      %v309 = vld [vmem:[%s1] sm:$0xff]
      %v310 = vld [vmem:[%s1 + $0x8] sm:$0xff]
      %v311 = vld [vmem:[%s1 + $0x10] sm:$0xff]
      %v312 = vld [vmem:[%s1 + $0x18] sm:$0xff]
      %v313 = vld [vmem:[%s1 + $0x20] sm:$0xff]
      %v314 = vld [vmem:[%s1 + $0x28] sm:$0xff]
      %v315 = vld [vmem:[%s1 + $0x30] sm:$0xff]
      %v316 = vld [vmem:[%s1 + $0x38] sm:$0xff]
      %v317 = vld [vmem:[%s1 + $0x40] sm:$0xff]
      %v318 = vld [vmem:[%s1 + $0x48] sm:$0xff]
      %v319 = vld [vmem:[%s1 + $0x50] sm:$0xff]
      %v320 = vld [vmem:[%s1 + $0x58] sm:$0xff]
      %v321 = vld [vmem:[%s1 + $0x60] sm:$0xff]
      %v322 = vld [vmem:[%s1 + $0x68] sm:$0xff]
      %v323 = vld [vmem:[%s1 + $0x70] sm:$0xff]
      %v324 = vld [vmem:[%s1 + $0x78] sm:$0xff]
      %v325 = vld [vmem:[%s1 + $0x80] sm:$0xff]
      %v326 = vld [vmem:[%s1 + $0x88] sm:$0xff]
      %v327 = vld [vmem:[%s1 + $0x90] sm:$0xff]
      %v328 = vld [vmem:[%s1 + $0x98] sm:$0xff]
      %v329 = vld [vmem:[%s1 + $0xa0] sm:$0xff]
      %v330 = vld [vmem:[%s1 + $0xa8] sm:$0xff]
      %v331 = vld [vmem:[%s1 + $0xb0] sm:$0xff]
      %v332 = vld [vmem:[%s1 + $0xb8] sm:$0xff]
      %v333 = vld [vmem:[%s1 + $0xc0] sm:$0xff]
      %v334 = vld [vmem:[%s1 + $0xc8] sm:$0xff]
      %v335 = vld [vmem:[%s1 + $0xd0] sm:$0xff]
      %v336 = vld [vmem:[%s1 + $0xd8] sm:$0xff]
      %v337 = vld [vmem:[%s1 + $0xe0] sm:$0xff]
      %v338 = vld [vmem:[%s1 + $0xe8] sm:$0xff]
      %v339 = vld [vmem:[%s1 + $0xf0] sm:$0xff]
      %v340 = vld [vmem:[%s1 + $0xf8] sm:$0xff]
      %341 = vmatprep.subr.mxu0 0.0
      %342 = vmatpush1.msra.mxu0 %v324
      %343 = vmatprep.subr.mxu0 0.0
      %344 = vmatpush1.msra.mxu0 %v323
      %345 = vmatprep.subr.mxu0 0.0
      %346 = vmatpush1.msra.mxu0 %v322
      %347 = vmatprep.subr.mxu0 0.0
      %348 = vmatpush1.msra.mxu0 %v321
      %349 = vmatprep.subr.mxu0 0.0
      %350 = vmatpush1.msra.mxu0 %v320
      %351 = vmatprep.subr.mxu0 0.0
      %352 = vmatpush1.msra.mxu0 %v319
      %353 = vmatprep.subr.mxu0 0.0
      %354 = vmatpush1.msra.mxu0 %v318
      %355 = vmatprep.subr.mxu0 0.0
      %356 = vmatpush1.msra.mxu0 %v317
      %357 = vmatprep.subr.mxu0 0.0
      %358 = vmatpush1.msra.mxu0 %v316
      %359 = vmatprep.subr.mxu0 0.0
      %360 = vmatpush1.msra.mxu0 %v315
      %361 = vmatprep.subr.mxu0 0.0
      %362 = vmatpush1.msra.mxu0 %v314
      %363 = vmatprep.subr.mxu0 0.0
      %364 = vmatpush1.msra.mxu0 %v313
      %365 = vmatprep.subr.mxu0 0.0
      %366 = vmatpush1.msra.mxu0 %v312
      %367 = vmatprep.subr.mxu0 0.0
      %368 = vmatpush1.msra.mxu0 %v311
      %369 = vmatprep.subr.mxu0 0.0
      %370 = vmatpush1.msra.mxu0 %v310
      %371 = vmatprep.subr.mxu0 0.0
      %372 = vmatpush1.msra.mxu0 %v309
      %373 = vmatprep.subr.mxu0 0.0
      %374 = vmatpush2.msra.mxu0 %v340
      %375 = vmatprep.subr.mxu0 0.0
      %376 = vmatpush2.msra.mxu0 %v339
      %377 = vmatprep.subr.mxu0 0.0
      %378 = vmatpush2.msra.mxu0 %v338
      %379 = vmatprep.subr.mxu0 0.0
      %380 = vmatpush2.msra.mxu0 %v337
      %381 = vmatprep.subr.mxu0 0.0
      %382 = vmatpush2.msra.mxu0 %v336
      %383 = vmatprep.subr.mxu0 0.0
      %384 = vmatpush2.msra.mxu0 %v335
      %385 = vmatprep.subr.mxu0 0.0
      %386 = vmatpush2.msra.mxu0 %v334
      %387 = vmatprep.subr.mxu0 0.0
      %388 = vmatpush2.msra.mxu0 %v333
      %389 = vmatprep.subr.mxu0 0.0
      %390 = vmatpush2.msra.mxu0 %v332
      %391 = vmatprep.subr.mxu0 0.0
      %392 = vmatpush2.msra.mxu0 %v331
      %393 = vmatprep.subr.mxu0 0.0
      %394 = vmatpush2.msra.mxu0 %v330
      %395 = vmatprep.subr.mxu0 0.0
      %396 = vmatpush2.msra.mxu0 %v329
      %397 = vmatprep.subr.mxu0 0.0
      %398 = vmatpush2.msra.mxu0 %v328
      %399 = vmatprep.subr.mxu0 0.0
      %400 = vmatpush2.msra.mxu0 %v327
      %401 = vmatprep.subr.mxu0 0.0
      %402 = vmatpush2.msra.mxu0 %v326
      %403 = vmatprep.subr.mxu0 0.0
      %404 = vmatpush2.msra.mxu0 %v325
      %405 = vmatprep.mubr.f32.mxu0 %v182
      %406 = vmatmul.mubr.f32.gmra.mxu0 %v181
      %v407 = vpop.f32.mrf.mxu0
      %v408 = vadd.f32 0.0, %v407
      %v409 = vpop.f32.mrf.mxu0
      %410 = vmatprep.mubr.f32.mxu0 %v184
      %411 = vmatmul.mubr.f32.gmra.mxu0 %v183
      %v412 = vpop.f32.mrf.mxu0
      %v413 = vadd.f32 0.0, %v412
      %v414 = vpop.f32.mrf.mxu0
      %415 = vmatprep.mubr.f32.mxu0 %v186
      %416 = vmatmul.mubr.f32.gmra.mxu0 %v185
      %v417 = vpop.f32.mrf.mxu0
      %v418 = vadd.f32 0.0, %v417
      %v419 = vpop.f32.mrf.mxu0
      %420 = vmatprep.mubr.f32.mxu0 %v188
      %421 = vmatmul.mubr.f32.gmra.mxu0 %v187
      %v422 = vpop.f32.mrf.mxu0
      %v423 = vadd.f32 0.0, %v422
      %v424 = vpop.f32.mrf.mxu0
      %425 = vmatprep.mubr.f32.mxu0 %v190
      %426 = vmatmul.mubr.f32.gmra.mxu0 %v189
      %v427 = vpop.f32.mrf.mxu0
      %v428 = vadd.f32 0.0, %v427
      %v429 = vpop.f32.mrf.mxu0
      %430 = vmatprep.mubr.f32.mxu0 %v192
      %431 = vmatmul.mubr.f32.gmra.mxu0 %v191
      %v432 = vpop.f32.mrf.mxu0
      %v433 = vadd.f32 0.0, %v432
      %v434 = vpop.f32.mrf.mxu0
      %435 = vmatprep.mubr.f32.mxu0 %v194
      %436 = vmatmul.mubr.f32.gmra.mxu0 %v193
      %v437 = vpop.f32.mrf.mxu0
      %v438 = vadd.f32 0.0, %v437
      %v439 = vpop.f32.mrf.mxu0
      %440 = vmatprep.mubr.f32.mxu0 %v196
      %441 = vmatmul.mubr.f32.gmra.mxu0 %v195
      %v442 = vpop.f32.mrf.mxu0
      %v443 = vadd.f32 0.0, %v442
      %v444 = vpop.f32.mrf.mxu0
      %445 = vmatprep.mubr.f32.mxu0 %v198
      %446 = vmatmul.mubr.f32.gmra.mxu0 %v197
      %v447 = vpop.f32.mrf.mxu0
      %v448 = vadd.f32 0.0, %v447
      %v449 = vpop.f32.mrf.mxu0
      %450 = vmatprep.mubr.f32.mxu0 %v200
      %451 = vmatmul.mubr.f32.gmra.mxu0 %v199
      %v452 = vpop.f32.mrf.mxu0
      %v453 = vadd.f32 0.0, %v452
      %v454 = vpop.f32.mrf.mxu0
      %455 = vmatprep.mubr.f32.mxu0 %v202
      %456 = vmatmul.mubr.f32.gmra.mxu0 %v201
      %v457 = vpop.f32.mrf.mxu0
      %v458 = vadd.f32 0.0, %v457
      %v459 = vpop.f32.mrf.mxu0
      %460 = vmatprep.mubr.f32.mxu0 %v204
      %461 = vmatmul.mubr.f32.gmra.mxu0 %v203
      %v462 = vpop.f32.mrf.mxu0
      %v463 = vadd.f32 0.0, %v462
      %v464 = vpop.f32.mrf.mxu0
      %465 = vmatprep.mubr.f32.mxu0 %v206
      %466 = vmatmul.mubr.f32.gmra.mxu0 %v205
      %v467 = vpop.f32.mrf.mxu0
      %v468 = vadd.f32 0.0, %v467
      %v469 = vpop.f32.mrf.mxu0
      %470 = vmatprep.mubr.f32.mxu0 %v208
      %471 = vmatmul.mubr.f32.gmra.mxu0 %v207
      %v472 = vpop.f32.mrf.mxu0
      %v473 = vadd.f32 0.0, %v472
      %v474 = vpop.f32.mrf.mxu0
      %475 = vmatprep.mubr.f32.mxu0 %v210
      %476 = vmatmul.mubr.f32.gmra.mxu0 %v209
      %v477 = vpop.f32.mrf.mxu0
      %v478 = vadd.f32 0.0, %v477
      %v479 = vpop.f32.mrf.mxu0
      %480 = vmatprep.mubr.f32.mxu0 %v212
      %481 = vmatmul.mubr.f32.gmra.mxu0 %v211
      %v482 = vpop.f32.mrf.mxu0
      %v483 = vadd.f32 0.0, %v482
      %v484 = vpop.f32.mrf.mxu0
      %485 = vmatprep.mubr.f32.mxu0 %v214
      %486 = vmatmul.mubr.f32.gmra.mxu0 %v213
      %v487 = vpop.f32.mrf.mxu0
      %v488 = vadd.f32 0.0, %v487
      %v489 = vpop.f32.mrf.mxu0
      %490 = vmatprep.mubr.f32.mxu0 %v216
      %491 = vmatmul.mubr.f32.gmra.mxu0 %v215
      %v492 = vpop.f32.mrf.mxu0
      %v493 = vadd.f32 0.0, %v492
      %v494 = vpop.f32.mrf.mxu0
      %495 = vmatprep.mubr.f32.mxu0 %v218
      %496 = vmatmul.mubr.f32.gmra.mxu0 %v217
      %v497 = vpop.f32.mrf.mxu0
      %v498 = vadd.f32 0.0, %v497
      %v499 = vpop.f32.mrf.mxu0
      %500 = vmatprep.mubr.f32.mxu0 %v220
      %501 = vmatmul.mubr.f32.gmra.mxu0 %v219
      %v502 = vpop.f32.mrf.mxu0
      %v503 = vadd.f32 0.0, %v502
      %v504 = vpop.f32.mrf.mxu0
      %505 = vmatprep.mubr.f32.mxu0 %v222
      %506 = vmatmul.mubr.f32.gmra.mxu0 %v221
      %v507 = vpop.f32.mrf.mxu0
      %v508 = vadd.f32 0.0, %v507
      %v509 = vpop.f32.mrf.mxu0
      %510 = vmatprep.mubr.f32.mxu0 %v224
      %511 = vmatmul.mubr.f32.gmra.mxu0 %v223
      %v512 = vpop.f32.mrf.mxu0
      %v513 = vadd.f32 0.0, %v512
      %v514 = vpop.f32.mrf.mxu0
      %515 = vmatprep.mubr.f32.mxu0 %v226
      %516 = vmatmul.mubr.f32.gmra.mxu0 %v225
      %v517 = vpop.f32.mrf.mxu0
      %v518 = vadd.f32 0.0, %v517
      %v519 = vpop.f32.mrf.mxu0
      %520 = vmatprep.mubr.f32.mxu0 %v228
      %521 = vmatmul.mubr.f32.gmra.mxu0 %v227
      %v522 = vpop.f32.mrf.mxu0
      %v523 = vadd.f32 0.0, %v522
      %v524 = vpop.f32.mrf.mxu0
      %525 = vmatprep.mubr.f32.mxu0 %v230
      %526 = vmatmul.mubr.f32.gmra.mxu0 %v229
      %v527 = vpop.f32.mrf.mxu0
      %v528 = vadd.f32 0.0, %v527
      %v529 = vpop.f32.mrf.mxu0
      %530 = vmatprep.mubr.f32.mxu0 %v232
      %531 = vmatmul.mubr.f32.gmra.mxu0 %v231
      %v532 = vpop.f32.mrf.mxu0
      %v533 = vadd.f32 0.0, %v532
      %v534 = vpop.f32.mrf.mxu0
      %535 = vmatprep.mubr.f32.mxu0 %v234
      %536 = vmatmul.mubr.f32.gmra.mxu0 %v233
      %v537 = vpop.f32.mrf.mxu0
      %v538 = vadd.f32 0.0, %v537
      %v539 = vpop.f32.mrf.mxu0
      %540 = vmatprep.mubr.f32.mxu0 %v236
      %541 = vmatmul.mubr.f32.gmra.mxu0 %v235
      %v542 = vpop.f32.mrf.mxu0
      %v543 = vadd.f32 0.0, %v542
      %v544 = vpop.f32.mrf.mxu0
      %545 = vmatprep.mubr.f32.mxu0 %v238
      %546 = vmatmul.mubr.f32.gmra.mxu0 %v237
      %v547 = vpop.f32.mrf.mxu0
      %v548 = vadd.f32 0.0, %v547
      %v549 = vpop.f32.mrf.mxu0
      %550 = vmatprep.mubr.f32.mxu0 %v240
      %551 = vmatmul.mubr.f32.gmra.mxu0 %v239
      %v552 = vpop.f32.mrf.mxu0
      %v553 = vadd.f32 0.0, %v552
      %v554 = vpop.f32.mrf.mxu0
      %555 = vmatprep.mubr.f32.mxu0 %v242
      %556 = vmatmul.mubr.f32.gmra.mxu0 %v241
      %v557 = vpop.f32.mrf.mxu0
      %v558 = vadd.f32 0.0, %v557
      %v559 = vpop.f32.mrf.mxu0
      %560 = vmatprep.mubr.f32.mxu0 %v244
      %561 = vmatmul.mubr.f32.gmra.mxu0 %v243
      %v562 = vpop.f32.mrf.mxu0
      %v563 = vadd.f32 0.0, %v562
      %v564 = vpop.f32.mrf.mxu0
      %565 = vmatprep.mubr.f32.mxu0 %v246
      %566 = vmatmul.mubr.f32.gmra.mxu0 %v245
      %v567 = vpop.f32.mrf.mxu0
      %v568 = vadd.f32 0.0, %v567
      %v569 = vpop.f32.mrf.mxu0
      %570 = vmatprep.mubr.f32.mxu0 %v248
      %571 = vmatmul.mubr.f32.gmra.mxu0 %v247
      %v572 = vpop.f32.mrf.mxu0
      %v573 = vadd.f32 0.0, %v572
      %v574 = vpop.f32.mrf.mxu0
      %575 = vmatprep.mubr.f32.mxu0 %v250
      %576 = vmatmul.mubr.f32.gmra.mxu0 %v249
      %v577 = vpop.f32.mrf.mxu0
      %v578 = vadd.f32 0.0, %v577
      %v579 = vpop.f32.mrf.mxu0
      %580 = vmatprep.mubr.f32.mxu0 %v252
      %581 = vmatmul.mubr.f32.gmra.mxu0 %v251
      %v582 = vpop.f32.mrf.mxu0
      %v583 = vadd.f32 0.0, %v582
      %v584 = vpop.f32.mrf.mxu0
      %585 = vmatprep.mubr.f32.mxu0 %v254
      %586 = vmatmul.mubr.f32.gmra.mxu0 %v253
      %v587 = vpop.f32.mrf.mxu0
      %v588 = vadd.f32 0.0, %v587
      %v589 = vpop.f32.mrf.mxu0
      %590 = vmatprep.mubr.f32.mxu0 %v256
      %591 = vmatmul.mubr.f32.gmra.mxu0 %v255
      %v592 = vpop.f32.mrf.mxu0
      %v593 = vadd.f32 0.0, %v592
      %v594 = vpop.f32.mrf.mxu0
      %595 = vmatprep.mubr.f32.mxu0 %v258
      %596 = vmatmul.mubr.f32.gmra.mxu0 %v257
      %v597 = vpop.f32.mrf.mxu0
      %v598 = vadd.f32 0.0, %v597
      %v599 = vpop.f32.mrf.mxu0
      %600 = vmatprep.mubr.f32.mxu0 %v260
      %601 = vmatmul.mubr.f32.gmra.mxu0 %v259
      %v602 = vpop.f32.mrf.mxu0
      %v603 = vadd.f32 0.0, %v602
      %v604 = vpop.f32.mrf.mxu0
      %605 = vmatprep.mubr.f32.mxu0 %v262
      %606 = vmatmul.mubr.f32.gmra.mxu0 %v261
      %v607 = vpop.f32.mrf.mxu0
      %v608 = vadd.f32 0.0, %v607
      %v609 = vpop.f32.mrf.mxu0
      %610 = vmatprep.mubr.f32.mxu0 %v264
      %611 = vmatmul.mubr.f32.gmra.mxu0 %v263
      %v612 = vpop.f32.mrf.mxu0
      %v613 = vadd.f32 0.0, %v612
      %v614 = vpop.f32.mrf.mxu0
      %615 = vmatprep.mubr.f32.mxu0 %v266
      %616 = vmatmul.mubr.f32.gmra.mxu0 %v265
      %v617 = vpop.f32.mrf.mxu0
      %v618 = vadd.f32 0.0, %v617
      %v619 = vpop.f32.mrf.mxu0
      %620 = vmatprep.mubr.f32.mxu0 %v268
      %621 = vmatmul.mubr.f32.gmra.mxu0 %v267
      %v622 = vpop.f32.mrf.mxu0
      %v623 = vadd.f32 0.0, %v622
      %v624 = vpop.f32.mrf.mxu0
      %625 = vmatprep.mubr.f32.mxu0 %v270
      %626 = vmatmul.mubr.f32.gmra.mxu0 %v269
      %v627 = vpop.f32.mrf.mxu0
      %v628 = vadd.f32 0.0, %v627
      %v629 = vpop.f32.mrf.mxu0
      %630 = vmatprep.mubr.f32.mxu0 %v272
      %631 = vmatmul.mubr.f32.gmra.mxu0 %v271
      %v632 = vpop.f32.mrf.mxu0
      %v633 = vadd.f32 0.0, %v632
      %v634 = vpop.f32.mrf.mxu0
      %635 = vmatprep.mubr.f32.mxu0 %v274
      %636 = vmatmul.mubr.f32.gmra.mxu0 %v273
      %v637 = vpop.f32.mrf.mxu0
      %v638 = vadd.f32 0.0, %v637
      %v639 = vpop.f32.mrf.mxu0
      %640 = vmatprep.mubr.f32.mxu0 %v276
      %641 = vmatmul.mubr.f32.gmra.mxu0 %v275
      %v642 = vpop.f32.mrf.mxu0
      %v643 = vadd.f32 0.0, %v642
      %v644 = vpop.f32.mrf.mxu0
      %645 = vmatprep.mubr.f32.mxu0 %v278
      %646 = vmatmul.mubr.f32.gmra.mxu0 %v277
      %v647 = vpop.f32.mrf.mxu0
      %v648 = vadd.f32 0.0, %v647
      %v649 = vpop.f32.mrf.mxu0
      %650 = vmatprep.mubr.f32.mxu0 %v280
      %651 = vmatmul.mubr.f32.gmra.mxu0 %v279
      %v652 = vpop.f32.mrf.mxu0
      %v653 = vadd.f32 0.0, %v652
      %v654 = vpop.f32.mrf.mxu0
      %655 = vmatprep.mubr.f32.mxu0 %v282
      %656 = vmatmul.mubr.f32.gmra.mxu0 %v281
      %v657 = vpop.f32.mrf.mxu0
      %v658 = vadd.f32 0.0, %v657
      %v659 = vpop.f32.mrf.mxu0
      %660 = vmatprep.mubr.f32.mxu0 %v284
      %661 = vmatmul.mubr.f32.gmra.mxu0 %v283
      %v662 = vpop.f32.mrf.mxu0
      %v663 = vadd.f32 0.0, %v662
      %v664 = vpop.f32.mrf.mxu0
      %665 = vmatprep.mubr.f32.mxu0 %v286
      %666 = vmatmul.mubr.f32.gmra.mxu0 %v285
      %v667 = vpop.f32.mrf.mxu0
      %v668 = vadd.f32 0.0, %v667
      %v669 = vpop.f32.mrf.mxu0
      %670 = vmatprep.mubr.f32.mxu0 %v288
      %671 = vmatmul.mubr.f32.gmra.mxu0 %v287
      %v672 = vpop.f32.mrf.mxu0
      %v673 = vadd.f32 0.0, %v672
      %v674 = vpop.f32.mrf.mxu0
      %675 = vmatprep.mubr.f32.mxu0 %v290
      %676 = vmatmul.mubr.f32.gmra.mxu0 %v289
      %v677 = vpop.f32.mrf.mxu0
      %v678 = vadd.f32 0.0, %v677
      %v679 = vpop.f32.mrf.mxu0
      %680 = vmatprep.mubr.f32.mxu0 %v292
      %681 = vmatmul.mubr.f32.gmra.mxu0 %v291
      %v682 = vpop.f32.mrf.mxu0
      %v683 = vadd.f32 0.0, %v682
      %v684 = vpop.f32.mrf.mxu0
      %685 = vmatprep.mubr.f32.mxu0 %v294
      %686 = vmatmul.mubr.f32.gmra.mxu0 %v293
      %v687 = vpop.f32.mrf.mxu0
      %v688 = vadd.f32 0.0, %v687
      %v689 = vpop.f32.mrf.mxu0
      %690 = vmatprep.mubr.f32.mxu0 %v296
      %691 = vmatmul.mubr.f32.gmra.mxu0 %v295
      %v692 = vpop.f32.mrf.mxu0
      %v693 = vadd.f32 0.0, %v692
      %v694 = vpop.f32.mrf.mxu0
      %695 = vmatprep.mubr.f32.mxu0 %v298
      %696 = vmatmul.mubr.f32.gmra.mxu0 %v297
      %v697 = vpop.f32.mrf.mxu0
      %v698 = vadd.f32 0.0, %v697
      %v699 = vpop.f32.mrf.mxu0
      %700 = vmatprep.mubr.f32.mxu0 %v300
      %701 = vmatmul.mubr.f32.gmra.mxu0 %v299
      %v702 = vpop.f32.mrf.mxu0
      %v703 = vadd.f32 0.0, %v702
      %v704 = vpop.f32.mrf.mxu0
      %705 = vmatprep.mubr.f32.mxu0 %v302
      %706 = vmatmul.mubr.f32.gmra.mxu0 %v301
      %v707 = vpop.f32.mrf.mxu0
      %v708 = vadd.f32 0.0, %v707
      %v709 = vpop.f32.mrf.mxu0
      %710 = vmatprep.mubr.f32.mxu0 %v304
      %711 = vmatmul.mubr.f32.gmra.mxu0 %v303
      %v712 = vpop.f32.mrf.mxu0
      %v713 = vadd.f32 0.0, %v712
      %v714 = vpop.f32.mrf.mxu0
      %715 = vmatprep.mubr.f32.mxu0 %v306
      %716 = vmatmul.mubr.f32.gmra.mxu0 %v305
      %v717 = vpop.f32.mrf.mxu0
      %v718 = vadd.f32 0.0, %v717
      %v719 = vpop.f32.mrf.mxu0
      %720 = vmatprep.mubr.f32.mxu0 %v308
      %721 = vmatmul.mubr.f32.gmra.mxu0 %v307
      %v722 = vpop.f32.mrf.mxu0
      %v723 = vadd.f32 0.0, %v722
      %v724 = vpop.f32.mrf.mxu0
      %725 = vdwg.mxu0
      %v726 = vadd.f32 %v408, %v413
      %v727 = vadd.f32 %v726, %v418
      %v728 = vadd.f32 %v727, %v423
      %v729 = vadd.f32 %v728, %v428
      %v730 = vadd.f32 %v729, %v433
      %v731 = vadd.f32 %v730, %v438
      %v732 = vadd.f32 %v731, %v443
      %v733 = vadd.f32 %v732, %v448
      %v734 = vadd.f32 %v733, %v453
      %v735 = vadd.f32 %v734, %v458
      %v736 = vadd.f32 %v735, %v463
      %v737 = vadd.f32 %v736, %v468
      %v738 = vadd.f32 %v737, %v473
      %v739 = vadd.f32 %v738, %v478
      %v740 = vadd.f32 %v739, %v483
      %v741 = vadd.f32 %v740, %v488
      %v742 = vadd.f32 %v741, %v493
      %v743 = vadd.f32 %v742, %v498
      %v744 = vadd.f32 %v743, %v503
      %v745 = vadd.f32 %v744, %v508
      %v746 = vadd.f32 %v745, %v513
      %v747 = vadd.f32 %v746, %v518
      %v748 = vadd.f32 %v747, %v523
      %v749 = vadd.f32 %v748, %v528
      %v750 = vadd.f32 %v749, %v533
      %v751 = vadd.f32 %v750, %v538
      %v752 = vadd.f32 %v751, %v543
      %v753 = vadd.f32 %v752, %v548
      %v754 = vadd.f32 %v753, %v553
      %v755 = vadd.f32 %v754, %v558
      %v756 = vadd.f32 %v755, %v563
      %v757 = vadd.f32 %v756, %v568
      %v758 = vadd.f32 %v757, %v573
      %v759 = vadd.f32 %v758, %v578
      %v760 = vadd.f32 %v759, %v583
      %v761 = vadd.f32 %v760, %v588
      %v762 = vadd.f32 %v761, %v593
      %v763 = vadd.f32 %v762, %v598
      %v764 = vadd.f32 %v763, %v603
      %v765 = vadd.f32 %v764, %v608
      %v766 = vadd.f32 %v765, %v613
      %v767 = vadd.f32 %v766, %v618
      %v768 = vadd.f32 %v767, %v623
      %v769 = vadd.f32 %v768, %v628
      %v770 = vadd.f32 %v769, %v633
      %v771 = vadd.f32 %v770, %v638
      %v772 = vadd.f32 %v771, %v643
      %v773 = vadd.f32 %v772, %v648
      %v774 = vadd.f32 %v773, %v653
      %v775 = vadd.f32 %v774, %v658
      %v776 = vadd.f32 %v775, %v663
      %v777 = vadd.f32 %v776, %v668
      %v778 = vadd.f32 %v777, %v673
      %v779 = vadd.f32 %v778, %v678
      %v780 = vadd.f32 %v779, %v683
      %v781 = vadd.f32 %v780, %v688
      %v782 = vadd.f32 %v781, %v693
      %v783 = vadd.f32 %v782, %v698
      %v784 = vadd.f32 %v783, %v703
      %v785 = vadd.f32 %v784, %v708
      %v786 = vadd.f32 %v785, %v713
      %v787 = vadd.f32 %v786, %v718
      %v788 = vadd.f32 %v787, %v723
      %v789 = vrot.slane %v788, 4
      %v790 = vadd.f32 %v788, %v789
      %v791 = vrot.slane %v790, 2
      %v792 = vadd.f32 %v790, %v791
      %v793 = vrot.slane %v792, 1
      %v794 = vadd.f32 %v792, %v793
      %795 = vst [vmem:[%s177] sm:$0x1] %v794
      %v796 = vmul.f32 %v408, %v408
      %v797 = vmul.f32 %v413, %v413
      %v798 = vmul.f32 %v418, %v418
      %v799 = vmul.f32 %v423, %v423
      %v800 = vmul.f32 %v428, %v428
      %v801 = vmul.f32 %v433, %v433
      %v802 = vmul.f32 %v438, %v438
      %v803 = vmul.f32 %v443, %v443
      %v804 = vmul.f32 %v448, %v448
      %v805 = vmul.f32 %v453, %v453
      %v806 = vmul.f32 %v458, %v458
      %v807 = vmul.f32 %v463, %v463
      %v808 = vmul.f32 %v468, %v468
      %v809 = vmul.f32 %v473, %v473
      %v810 = vmul.f32 %v478, %v478
      %v811 = vmul.f32 %v483, %v483
      %v812 = vmul.f32 %v488, %v488
      %v813 = vmul.f32 %v493, %v493
      %v814 = vmul.f32 %v498, %v498
      %v815 = vmul.f32 %v503, %v503
      %v816 = vmul.f32 %v508, %v508
      %v817 = vmul.f32 %v513, %v513
      %v818 = vmul.f32 %v518, %v518
      %v819 = vmul.f32 %v523, %v523
      %v820 = vmul.f32 %v528, %v528
      %v821 = vmul.f32 %v533, %v533
      %v822 = vmul.f32 %v538, %v538
      %v823 = vmul.f32 %v543, %v543
      %v824 = vmul.f32 %v548, %v548
      %v825 = vmul.f32 %v553, %v553
      %v826 = vmul.f32 %v558, %v558
      %v827 = vmul.f32 %v563, %v563
      %v828 = vmul.f32 %v568, %v568
      %v829 = vmul.f32 %v573, %v573
      %v830 = vmul.f32 %v578, %v578
      %v831 = vmul.f32 %v583, %v583
      %v832 = vmul.f32 %v588, %v588
      %v833 = vmul.f32 %v593, %v593
      %v834 = vmul.f32 %v598, %v598
      %v835 = vmul.f32 %v603, %v603
      %v836 = vmul.f32 %v608, %v608
      %v837 = vmul.f32 %v613, %v613
      %v838 = vmul.f32 %v618, %v618
      %v839 = vmul.f32 %v623, %v623
      %v840 = vmul.f32 %v628, %v628
      %v841 = vmul.f32 %v633, %v633
      %v842 = vmul.f32 %v638, %v638
      %v843 = vmul.f32 %v643, %v643
      %v844 = vmul.f32 %v648, %v648
      %v845 = vmul.f32 %v653, %v653
      %v846 = vmul.f32 %v658, %v658
      %v847 = vmul.f32 %v663, %v663
      %v848 = vmul.f32 %v668, %v668
      %v849 = vmul.f32 %v673, %v673
      %v850 = vmul.f32 %v678, %v678
      %v851 = vmul.f32 %v683, %v683
      %v852 = vmul.f32 %v688, %v688
      %v853 = vmul.f32 %v693, %v693
      %v854 = vmul.f32 %v698, %v698
      %v855 = vmul.f32 %v703, %v703
      %v856 = vmul.f32 %v708, %v708
      %v857 = vmul.f32 %v713, %v713
      %v858 = vmul.f32 %v718, %v718
      %v859 = vmul.f32 %v723, %v723
      %v860 = vadd.f32 %v796, %v797
      %v861 = vadd.f32 %v860, %v798
      %v862 = vadd.f32 %v861, %v799
      %v863 = vadd.f32 %v862, %v800
      %v864 = vadd.f32 %v863, %v801
      %v865 = vadd.f32 %v864, %v802
      %v866 = vadd.f32 %v865, %v803
      %v867 = vadd.f32 %v866, %v804
      %v868 = vadd.f32 %v867, %v805
      %v869 = vadd.f32 %v868, %v806
      %v870 = vadd.f32 %v869, %v807
      %v871 = vadd.f32 %v870, %v808
      %v872 = vadd.f32 %v871, %v809
      %v873 = vadd.f32 %v872, %v810
      %v874 = vadd.f32 %v873, %v811
      %v875 = vadd.f32 %v874, %v812
      %v876 = vadd.f32 %v875, %v813
      %v877 = vadd.f32 %v876, %v814
      %v878 = vadd.f32 %v877, %v815
      %v879 = vadd.f32 %v878, %v816
      %v880 = vadd.f32 %v879, %v817
      %v881 = vadd.f32 %v880, %v818
      %v882 = vadd.f32 %v881, %v819
      %v883 = vadd.f32 %v882, %v820
      %v884 = vadd.f32 %v883, %v821
      %v885 = vadd.f32 %v884, %v822
      %v886 = vadd.f32 %v885, %v823
      %v887 = vadd.f32 %v886, %v824
      %v888 = vadd.f32 %v887, %v825
      %v889 = vadd.f32 %v888, %v826
      %v890 = vadd.f32 %v889, %v827
      %v891 = vadd.f32 %v890, %v828
      %v892 = vadd.f32 %v891, %v829
      %v893 = vadd.f32 %v892, %v830
      %v894 = vadd.f32 %v893, %v831
      %v895 = vadd.f32 %v894, %v832
      %v896 = vadd.f32 %v895, %v833
      %v897 = vadd.f32 %v896, %v834
      %v898 = vadd.f32 %v897, %v835
      %v899 = vadd.f32 %v898, %v836
      %v900 = vadd.f32 %v899, %v837
      %v901 = vadd.f32 %v900, %v838
      %v902 = vadd.f32 %v901, %v839
      %v903 = vadd.f32 %v902, %v840
      %v904 = vadd.f32 %v903, %v841
      %v905 = vadd.f32 %v904, %v842
      %v906 = vadd.f32 %v905, %v843
      %v907 = vadd.f32 %v906, %v844
      %v908 = vadd.f32 %v907, %v845
      %v909 = vadd.f32 %v908, %v846
      %v910 = vadd.f32 %v909, %v847
      %v911 = vadd.f32 %v910, %v848
      %v912 = vadd.f32 %v911, %v849
      %v913 = vadd.f32 %v912, %v850
      %v914 = vadd.f32 %v913, %v851
      %v915 = vadd.f32 %v914, %v852
      %v916 = vadd.f32 %v915, %v853
      %v917 = vadd.f32 %v916, %v854
      %v918 = vadd.f32 %v917, %v855
      %v919 = vadd.f32 %v918, %v856
      %v920 = vadd.f32 %v919, %v857
      %v921 = vadd.f32 %v920, %v858
      %v922 = vadd.f32 %v921, %v859
      %v923 = vrot.slane %v922, 4
      %v924 = vadd.f32 %v922, %v923
      %v925 = vrot.slane %v924, 2
      %v926 = vadd.f32 %v924, %v925
      %v927 = vrot.slane %v926, 1
      %v928 = vadd.f32 %v926, %v927
      %929 = vst [vmem:[%s180] sm:$0x1] %v928
      %p930 = scmp.lt.s32.totalorder %s15, 1
      %s931 = scalar_select %p930, %s15, 1
      %s932 = scalar_lea.vmem %s2, %s931
      %p933 = scmp.lt.s32.totalorder %s15, 1
      %s934 = scalar_select %p933, %s15, 1
      %s935 = scalar_lea.vmem %s3, %s934
      // Predicated region
      $region29: #{up_double_3d_conv.6} parent=27 // pred_check
        %p936 = pneg %p80
      $region30: #{up_double_3d_conv.6} parent=27 // pred_check_branch
        %938 = sbr.rel (%p936) target = $region32
      $region31: #{up_double_3d_conv.6} parent=27 // pred_region
        _
      $region32: #{up_double_3d_conv.6} parent=27 // pred_fallthru
        _
      // Predicated region
      $region33: #{up_double_3d_conv.6} parent=27 // pred_check
        %p939 = pneg %p106
      $region34: #{up_double_3d_conv.6} parent=27 // pred_check_branch
        %941 = sbr.rel (%p939) target = $region36
      $region35: #{up_double_3d_conv.6} parent=27 // pred_region
        _
      $region36: #{up_double_3d_conv.6} parent=27 // pred_fallthru
        _
    $region28: #{up_double_3d_conv.6} parent=5 // pred_fallthru
      _
    %p942 = scmp.le.s32.totalorder 2, %s10
    // Predicated region
    $region37: #{up_double_3d_conv.6} parent=5 // pred_check
      %p943 = pneg %p942
    $region38: #{up_double_3d_conv.6} parent=5 // pred_check_branch
      %945 = sbr.rel (%p943) target = $region40
    $region39: #{up_double_3d_conv.6} parent=5 // pred_region
      %s946 = ssub.s32 %s10, 2
      // Predicated region
      $region41: #{up_double_3d_conv.6} parent=39 // pred_check
        %p947 = pneg %p86
      $region42: #{up_double_3d_conv.6} parent=39 // pred_check_branch
        %949 = sbr.rel (%p947) target = $region44
      $region43: #{up_double_3d_conv.6} parent=39 // pred_region
        %p950 = scmp.lt.s32.totalorder %s16, 1
        %s951 = scalar_select %p950, %s16, 1
        %s952 = scalar_lea.vmem %s2, %s951
      $region44: #{up_double_3d_conv.6} parent=39 // pred_fallthru
        _
      // Predicated region
      $region45: #{up_double_3d_conv.6} parent=39 // pred_check
        %p953 = pneg %p112
      $region46: #{up_double_3d_conv.6} parent=39 // pred_check_branch
        %955 = sbr.rel (%p953) target = $region48
      $region47: #{up_double_3d_conv.6} parent=39 // pred_region
        %p956 = scmp.lt.s32.totalorder %s16, 1
        %s957 = scalar_select %p956, %s16, 1
        %s958 = scalar_lea.vmem %s3, %s957
      $region48: #{up_double_3d_conv.6} parent=39 // pred_fallthru
        _
    $region40: #{up_double_3d_conv.6} parent=5 // pred_fallthru
      _
  $region6: #{up_double_3d_conv.6} parent=0 // loop_footer
    %s14 = sadd.s32 1, %s10
  $region7: #{up_double_3d_conv.6} parent=0 // loop_footer_branch
    %9 = sbr.rel target = $region3
  $region8: #{up_double_3d_conv.6} parent=0 // loop_exit
    _

// kernel: up_double_3d_conv.7
$region0: #{up_double_3d_conv.7}
  #allocation0 [shape = 'u32[]', space=smem, size = 0x4, offset = 0x4, fixed_abs, tag = 'smem constant byte address 0x4 - core index']
  #allocation1 [shape = 'u32[144,128]{1,0:T(1,128)}', space=vmem, size = 0x12000, scoped, tag = 'internal scratch']
  %s0 = inlined_call_operand.vmem [shape: f32[1024,256], index: 0, kind: input, shape index: {}]
  %s1 = inlined_call_operand.vmem [shape: f32[256,128], index: 1, kind: input, shape index: {}]
  %s2 = inlined_call_operand.vmem [shape: f32[1,128], index: 2, kind: input, shape index: {}]
  %s3 = inlined_call_operand.vmem [shape: f32[1,128], index: 3, kind: input, shape index: {}]
  %s4 = inlined_call_operand.vmem [shape: f32[1024,128], index: 4, kind: output, shape index: {}]
  %s5 = sld [smem:[#allocation0]]
  $region49: #{up_double_3d_conv.7} parent=0
    _
  %s7 = ssub.s32 1, %s5
  %s8 = scalar_select 0, %s7, %s5
  loop: start=0, step=1, limit=4
  $region2: #{up_double_3d_conv.7} parent=0 // loop_pre_header
    _
  $region3: #{up_double_3d_conv.7} parent=0 // loop_header
    %s10 = sphi 0, %s14
    %p11 = scmp.ge.s32.totalorder %s10, 4
    %s20 = sphi 0, %s22
    %s23 = sphi 0, %s20
    %s24 = sphi 0, %s23
    %s40 = sphi 0, %s24
    %s44 = sphi 0, %s44
    %s46 = sphi 0, %s44
    %s47 = sphi 0, %s46
    %s61 = sphi 0, %s47
    %s65 = sphi 0, %s65
    %s67 = sphi 0, %s65
    %s68 = sphi 0, %s67
    %s82 = sphi 0, %s68
    %s86 = sphi 0, %s86
    %s88 = sphi 0, %s86
    %s89 = sphi 0, %s88
    %s103 = sphi 0, %s89
    %s109 = sphi 0, %s111
    %s112 = sphi 0, %s109
    %s113 = sphi 0, %s112
    %s129 = sphi 0, %s113
  $region4: #{up_double_3d_conv.7} parent=0 // loop_header_branch
    %13 = sbr.rel (%p11) target = $region8
  $region5: #{up_double_3d_conv.7} parent=0 // loop_body
    %s15 = ssub.s32 %s10, 1
    %s16 = ssub.s32 %s10, 2
    %s17 = sadd.s32 %s10, 1
    %s18 = ssub.s32 %s10, %s17
    %p19 = scmp.eq.s32.totalorder %s18, 0
    %s21 = sadd.s32 %s20, 1
    %s22 = scalar_select %p19, %s20, %s21
    %p25 = pneg %p19
    %p26 = scmp.eq.s32.totalorder %s10, 1
    %p27 = por %p25, %p26
    %p28 = scmp.ne.s32.totalorder %s20, %s23
    %p29 = scmp.eq.s32.totalorder %s10, 0
    %p30 = por %p28, %p29
    %p31 = scmp.ne.s32.totalorder %s20, %s23
    %p32 = scmp.eq.s32.totalorder %s15, 1
    %p33 = por %p31, %p32
    %p34 = scmp.ne.s32.totalorder %s23, %s24
    %p35 = scmp.eq.s32.totalorder %s15, 0
    %p36 = por %p34, %p35
    %p37 = scmp.ne.s32.totalorder %s23, %s24
    %p38 = scmp.eq.s32.totalorder %s16, 1
    %p39 = por %p37, %p38
    %p41 = scmp.ne.s32.totalorder %s24, %s40
    %p42 = scmp.eq.s32.totalorder %s16, 0
    %p43 = por %p41, %p42
    %s45 = sadd.s32 %s44, 1
    %p48 = scmp.eq.s32.totalorder %s10, 1
    %p49 = scmp.ne.s32.totalorder %s44, %s46
    %p50 = scmp.eq.s32.totalorder %s10, 0
    %p51 = por %p49, %p50
    %p52 = scmp.ne.s32.totalorder %s44, %s46
    %p53 = scmp.eq.s32.totalorder %s15, 1
    %p54 = por %p52, %p53
    %p55 = scmp.ne.s32.totalorder %s46, %s47
    %p56 = scmp.eq.s32.totalorder %s15, 0
    %p57 = por %p55, %p56
    %p58 = scmp.ne.s32.totalorder %s46, %s47
    %p59 = scmp.eq.s32.totalorder %s16, 1
    %p60 = por %p58, %p59
    %p62 = scmp.ne.s32.totalorder %s47, %s61
    %p63 = scmp.eq.s32.totalorder %s16, 0
    %p64 = por %p62, %p63
    %s66 = sadd.s32 %s65, 1
    %p69 = scmp.eq.s32.totalorder %s10, 1
    %p70 = scmp.ne.s32.totalorder %s65, %s67
    %p71 = scmp.eq.s32.totalorder %s10, 0
    %p72 = por %p70, %p71
    %p73 = scmp.ne.s32.totalorder %s65, %s67
    %p74 = scmp.eq.s32.totalorder %s15, 1
    %p75 = por %p73, %p74
    %p76 = scmp.ne.s32.totalorder %s67, %s68
    %p77 = scmp.eq.s32.totalorder %s15, 0
    %p78 = por %p76, %p77
    %p79 = scmp.ne.s32.totalorder %s67, %s68
    %p80 = scmp.eq.s32.totalorder %s16, 1
    %p81 = por %p79, %p80
    %p83 = scmp.ne.s32.totalorder %s68, %s82
    %p84 = scmp.eq.s32.totalorder %s16, 0
    %p85 = por %p83, %p84
    %s87 = sadd.s32 %s86, 1
    %p90 = scmp.eq.s32.totalorder %s10, 1
    %p91 = scmp.ne.s32.totalorder %s86, %s88
    %p92 = scmp.eq.s32.totalorder %s10, 0
    %p93 = por %p91, %p92
    %p94 = scmp.ne.s32.totalorder %s86, %s88
    %p95 = scmp.eq.s32.totalorder %s15, 1
    %p96 = por %p94, %p95
    %p97 = scmp.ne.s32.totalorder %s88, %s89
    %p98 = scmp.eq.s32.totalorder %s15, 0
    %p99 = por %p97, %p98
    %p100 = scmp.ne.s32.totalorder %s88, %s89
    %p101 = scmp.eq.s32.totalorder %s16, 1
    %p102 = por %p100, %p101
    %p104 = scmp.ne.s32.totalorder %s89, %s103
    %p105 = scmp.eq.s32.totalorder %s16, 0
    %p106 = por %p104, %p105
    %s107 = ssub.s32 %s10, %s17
    %p108 = scmp.eq.s32.totalorder %s107, 0
    %s110 = sadd.s32 %s109, 1
    %s111 = scalar_select %p108, %s109, %s110
    %p114 = pneg %p108
    %p115 = scmp.eq.s32.totalorder %s10, 1
    %p116 = por %p114, %p115
    %p117 = scmp.ne.s32.totalorder %s109, %s112
    %p118 = scmp.eq.s32.totalorder %s10, 0
    %p119 = por %p117, %p118
    %p120 = scmp.ne.s32.totalorder %s109, %s112
    %p121 = scmp.eq.s32.totalorder %s15, 1
    %p122 = por %p120, %p121
    %p123 = scmp.ne.s32.totalorder %s112, %s113
    %p124 = scmp.eq.s32.totalorder %s15, 0
    %p125 = por %p123, %p124
    %p126 = scmp.ne.s32.totalorder %s112, %s113
    %p127 = scmp.eq.s32.totalorder %s16, 1
    %p128 = por %p126, %p127
    %p130 = scmp.ne.s32.totalorder %s113, %s129
    %p131 = scmp.eq.s32.totalorder %s16, 0
    %p132 = por %p130, %p131
    %p133 = scmp.le.s32.totalorder 1, %s10
    %p134 = scmp.lt.s32.totalorder %s10, 3
    %p135 = pnand %p133, %p134
    %p136 = pneg %p135
    // Predicated region
    $region9: #{up_double_3d_conv.7} parent=5 // pred_check
      _
    $region10: #{up_double_3d_conv.7} parent=5 // pred_check_branch
      %138 = sbr.rel (%p135) target = $region12
    $region11: #{up_double_3d_conv.7} parent=5 // pred_region
      %s139 = ssub.s32 %s10, 1
      // Predicated region
      $region13: #{up_double_3d_conv.7} parent=11 // pred_check
        %p140 = pneg %p57
      $region14: #{up_double_3d_conv.7} parent=11 // pred_check_branch
        %142 = sbr.rel (%p140) target = $region16
      $region15: #{up_double_3d_conv.7} parent=11 // pred_region
        _
      $region16: #{up_double_3d_conv.7} parent=11 // pred_fallthru
        _
      // Predicated region
      $region17: #{up_double_3d_conv.7} parent=11 // pred_check
        %p143 = pneg %p78
      $region18: #{up_double_3d_conv.7} parent=11 // pred_check_branch
        %145 = sbr.rel (%p143) target = $region20
      $region19: #{up_double_3d_conv.7} parent=11 // pred_region
        _
      $region20: #{up_double_3d_conv.7} parent=11 // pred_fallthru
        _
      // Predicated region
      $region21: #{up_double_3d_conv.7} parent=11 // pred_check
        %p146 = pneg %p99
      $region22: #{up_double_3d_conv.7} parent=11 // pred_check_branch
        %148 = sbr.rel (%p146) target = $region24
      $region23: #{up_double_3d_conv.7} parent=11 // pred_region
        _
      $region24: #{up_double_3d_conv.7} parent=11 // pred_fallthru
        _
    $region12: #{up_double_3d_conv.7} parent=5 // pred_fallthru
      _
    %p149 = scmp.lt.s32.totalorder %s10, 2
    // Predicated region
    $region25: #{up_double_3d_conv.7} parent=5 // pred_check
      %p150 = pneg %p149
    $region26: #{up_double_3d_conv.7} parent=5 // pred_check_branch
      %152 = sbr.rel (%p150) target = $region28
    $region27: #{up_double_3d_conv.7} parent=5 // pred_region
      // Predicated region
      $region29: #{up_double_3d_conv.7} parent=27 // pred_check
        %p153 = pneg %p30
      $region30: #{up_double_3d_conv.7} parent=27 // pred_check_branch
        %155 = sbr.rel (%p153) target = $region32
      $region31: #{up_double_3d_conv.7} parent=27 // pred_region
        %s156 = smul.u32 64, %s10
        %p157 = scmp.lt.s32.totalorder %s156, 127
        %s158 = scalar_select %p157, %s156, 127
        %s159 = smul.addr %s158, 2
        %s160 = smul.addr %s159, 8
        %s161 = scalar_lea.vmem %s0, %s160
        %s162 = smul.u32 64, %s10
      $region32: #{up_double_3d_conv.7} parent=27 // pred_fallthru
        _
    $region28: #{up_double_3d_conv.7} parent=5 // pred_fallthru
      _
    %p163 = scmp.le.s32.totalorder 1, %s10
    %p164 = scmp.lt.s32.totalorder %s10, 3
    %p165 = pnand %p163, %p164
    %p166 = pneg %p165
    // Predicated region
    $region33: #{up_double_3d_conv.7} parent=5 // pred_check
      _
    $region34: #{up_double_3d_conv.7} parent=5 // pred_check_branch
      %168 = sbr.rel (%p165) target = $region36
    $region35: #{up_double_3d_conv.7} parent=5 // pred_region
      %s169 = ssub.s32 %s10, 1
      %s170 = smul.u32 64, %s15
      %p171 = scmp.lt.s32.totalorder %s170, 127
      %s172 = scalar_select %p171, %s170, 127
      %s173 = smul.addr %s172, 2
      %s174 = smul.addr %s173, 8
      %s175 = scalar_lea.vmem %s0, %s174
      %p176 = pneg %p36
      %p177 = pneg %p33
      %p178 = pneg %p57
      %p179 = pneg %p54
      %p180 = pneg %p78
      %p181 = pneg %p75
      %p182 = pneg %p99
      %p183 = pneg %p96
      %p184 = pneg %p125
      %p185 = pneg %p122
      %s186 = smul.u32 64, %s15
      %p187 = scmp.lt.s32.totalorder %s186, 127
      %s188 = scalar_select %p187, %s186, 127
      %s189 = smul.addr %s188, 8
      %s190 = scalar_lea.vmem %s4, %s189
      %s191 = smul.u32 64, %s15
      %p192 = scmp.lt.s32.totalorder %s191, 127
      %s193 = scalar_select %p192, %s191, 127
      %s194 = smul.addr %s193, 2
      %s195 = smul.addr %s194, 8
      %s196 = scalar_lea.vmem %s0, %s195
      %s197 = smul.u32 64, %s15
      %s198 = smul.u32 64, %s15
      %p199 = scmp.lt.s32.totalorder %s198, 127
      %s200 = scalar_select %p199, %s198, 127
      %s201 = smul.addr %s200, 8
      %s202 = scalar_lea.vmem %s4, %s201
      %s203 = smul.u32 64, %s15
      %v204 = vld [vmem:[%s196] sm:$0xff]
      %v205 = vld [vmem:[%s196 + $0x8] sm:$0xff]
      %v206 = vld [vmem:[%s196 + $0x10] sm:$0xff]
      %v207 = vld [vmem:[%s196 + $0x18] sm:$0xff]
      %v208 = vld [vmem:[%s196 + $0x20] sm:$0xff]
      %v209 = vld [vmem:[%s196 + $0x28] sm:$0xff]
      %v210 = vld [vmem:[%s196 + $0x30] sm:$0xff]
      %v211 = vld [vmem:[%s196 + $0x38] sm:$0xff]
      %v212 = vld [vmem:[%s196 + $0x40] sm:$0xff]
      %v213 = vld [vmem:[%s196 + $0x48] sm:$0xff]
      %v214 = vld [vmem:[%s196 + $0x50] sm:$0xff]
      %v215 = vld [vmem:[%s196 + $0x58] sm:$0xff]
      %v216 = vld [vmem:[%s196 + $0x60] sm:$0xff]
      %v217 = vld [vmem:[%s196 + $0x68] sm:$0xff]
      %v218 = vld [vmem:[%s196 + $0x70] sm:$0xff]
      %v219 = vld [vmem:[%s196 + $0x78] sm:$0xff]
      %v220 = vld [vmem:[%s196 + $0x80] sm:$0xff]
      %v221 = vld [vmem:[%s196 + $0x88] sm:$0xff]
      %v222 = vld [vmem:[%s196 + $0x90] sm:$0xff]
      %v223 = vld [vmem:[%s196 + $0x98] sm:$0xff]
      %v224 = vld [vmem:[%s196 + $0xa0] sm:$0xff]
      %v225 = vld [vmem:[%s196 + $0xa8] sm:$0xff]
      %v226 = vld [vmem:[%s196 + $0xb0] sm:$0xff]
      %v227 = vld [vmem:[%s196 + $0xb8] sm:$0xff]
      %v228 = vld [vmem:[%s196 + $0xc0] sm:$0xff]
      %v229 = vld [vmem:[%s196 + $0xc8] sm:$0xff]
      %v230 = vld [vmem:[%s196 + $0xd0] sm:$0xff]
      %v231 = vld [vmem:[%s196 + $0xd8] sm:$0xff]
      %v232 = vld [vmem:[%s196 + $0xe0] sm:$0xff]
      %v233 = vld [vmem:[%s196 + $0xe8] sm:$0xff]
      %v234 = vld [vmem:[%s196 + $0xf0] sm:$0xff]
      %v235 = vld [vmem:[%s196 + $0xf8] sm:$0xff]
      %v236 = vld [vmem:[%s196 + $0x100] sm:$0xff]
      %v237 = vld [vmem:[%s196 + $0x108] sm:$0xff]
      %v238 = vld [vmem:[%s196 + $0x110] sm:$0xff]
      %v239 = vld [vmem:[%s196 + $0x118] sm:$0xff]
      %v240 = vld [vmem:[%s196 + $0x120] sm:$0xff]
      %v241 = vld [vmem:[%s196 + $0x128] sm:$0xff]
      %v242 = vld [vmem:[%s196 + $0x130] sm:$0xff]
      %v243 = vld [vmem:[%s196 + $0x138] sm:$0xff]
      %v244 = vld [vmem:[%s196 + $0x140] sm:$0xff]
      %v245 = vld [vmem:[%s196 + $0x148] sm:$0xff]
      %v246 = vld [vmem:[%s196 + $0x150] sm:$0xff]
      %v247 = vld [vmem:[%s196 + $0x158] sm:$0xff]
      %v248 = vld [vmem:[%s196 + $0x160] sm:$0xff]
      %v249 = vld [vmem:[%s196 + $0x168] sm:$0xff]
      %v250 = vld [vmem:[%s196 + $0x170] sm:$0xff]
      %v251 = vld [vmem:[%s196 + $0x178] sm:$0xff]
      %v252 = vld [vmem:[%s196 + $0x180] sm:$0xff]
      %v253 = vld [vmem:[%s196 + $0x188] sm:$0xff]
      %v254 = vld [vmem:[%s196 + $0x190] sm:$0xff]
      %v255 = vld [vmem:[%s196 + $0x198] sm:$0xff]
      %v256 = vld [vmem:[%s196 + $0x1a0] sm:$0xff]
      %v257 = vld [vmem:[%s196 + $0x1a8] sm:$0xff]
      %v258 = vld [vmem:[%s196 + $0x1b0] sm:$0xff]
      %v259 = vld [vmem:[%s196 + $0x1b8] sm:$0xff]
      %v260 = vld [vmem:[%s196 + $0x1c0] sm:$0xff]
      %v261 = vld [vmem:[%s196 + $0x1c8] sm:$0xff]
      %v262 = vld [vmem:[%s196 + $0x1d0] sm:$0xff]
      %v263 = vld [vmem:[%s196 + $0x1d8] sm:$0xff]
      %v264 = vld [vmem:[%s196 + $0x1e0] sm:$0xff]
      %v265 = vld [vmem:[%s196 + $0x1e8] sm:$0xff]
      %v266 = vld [vmem:[%s196 + $0x1f0] sm:$0xff]
      %v267 = vld [vmem:[%s196 + $0x1f8] sm:$0xff]
      %v268 = vld [vmem:[%s196 + $0x200] sm:$0xff]
      %v269 = vld [vmem:[%s196 + $0x208] sm:$0xff]
      %v270 = vld [vmem:[%s196 + $0x210] sm:$0xff]
      %v271 = vld [vmem:[%s196 + $0x218] sm:$0xff]
      %v272 = vld [vmem:[%s196 + $0x220] sm:$0xff]
      %v273 = vld [vmem:[%s196 + $0x228] sm:$0xff]
      %v274 = vld [vmem:[%s196 + $0x230] sm:$0xff]
      %v275 = vld [vmem:[%s196 + $0x238] sm:$0xff]
      %v276 = vld [vmem:[%s196 + $0x240] sm:$0xff]
      %v277 = vld [vmem:[%s196 + $0x248] sm:$0xff]
      %v278 = vld [vmem:[%s196 + $0x250] sm:$0xff]
      %v279 = vld [vmem:[%s196 + $0x258] sm:$0xff]
      %v280 = vld [vmem:[%s196 + $0x260] sm:$0xff]
      %v281 = vld [vmem:[%s196 + $0x268] sm:$0xff]
      %v282 = vld [vmem:[%s196 + $0x270] sm:$0xff]
      %v283 = vld [vmem:[%s196 + $0x278] sm:$0xff]
      %v284 = vld [vmem:[%s196 + $0x280] sm:$0xff]
      %v285 = vld [vmem:[%s196 + $0x288] sm:$0xff]
      %v286 = vld [vmem:[%s196 + $0x290] sm:$0xff]
      %v287 = vld [vmem:[%s196 + $0x298] sm:$0xff]
      %v288 = vld [vmem:[%s196 + $0x2a0] sm:$0xff]
      %v289 = vld [vmem:[%s196 + $0x2a8] sm:$0xff]
      %v290 = vld [vmem:[%s196 + $0x2b0] sm:$0xff]
      %v291 = vld [vmem:[%s196 + $0x2b8] sm:$0xff]
      %v292 = vld [vmem:[%s196 + $0x2c0] sm:$0xff]
      %v293 = vld [vmem:[%s196 + $0x2c8] sm:$0xff]
      %v294 = vld [vmem:[%s196 + $0x2d0] sm:$0xff]
      %v295 = vld [vmem:[%s196 + $0x2d8] sm:$0xff]
      %v296 = vld [vmem:[%s196 + $0x2e0] sm:$0xff]
      %v297 = vld [vmem:[%s196 + $0x2e8] sm:$0xff]
      %v298 = vld [vmem:[%s196 + $0x2f0] sm:$0xff]
      %v299 = vld [vmem:[%s196 + $0x2f8] sm:$0xff]
      %v300 = vld [vmem:[%s196 + $0x300] sm:$0xff]
      %v301 = vld [vmem:[%s196 + $0x308] sm:$0xff]
      %v302 = vld [vmem:[%s196 + $0x310] sm:$0xff]
      %v303 = vld [vmem:[%s196 + $0x318] sm:$0xff]
      %v304 = vld [vmem:[%s196 + $0x320] sm:$0xff]
      %v305 = vld [vmem:[%s196 + $0x328] sm:$0xff]
      %v306 = vld [vmem:[%s196 + $0x330] sm:$0xff]
      %v307 = vld [vmem:[%s196 + $0x338] sm:$0xff]
      %v308 = vld [vmem:[%s196 + $0x340] sm:$0xff]
      %v309 = vld [vmem:[%s196 + $0x348] sm:$0xff]
      %v310 = vld [vmem:[%s196 + $0x350] sm:$0xff]
      %v311 = vld [vmem:[%s196 + $0x358] sm:$0xff]
      %v312 = vld [vmem:[%s196 + $0x360] sm:$0xff]
      %v313 = vld [vmem:[%s196 + $0x368] sm:$0xff]
      %v314 = vld [vmem:[%s196 + $0x370] sm:$0xff]
      %v315 = vld [vmem:[%s196 + $0x378] sm:$0xff]
      %v316 = vld [vmem:[%s196 + $0x380] sm:$0xff]
      %v317 = vld [vmem:[%s196 + $0x388] sm:$0xff]
      %v318 = vld [vmem:[%s196 + $0x390] sm:$0xff]
      %v319 = vld [vmem:[%s196 + $0x398] sm:$0xff]
      %v320 = vld [vmem:[%s196 + $0x3a0] sm:$0xff]
      %v321 = vld [vmem:[%s196 + $0x3a8] sm:$0xff]
      %v322 = vld [vmem:[%s196 + $0x3b0] sm:$0xff]
      %v323 = vld [vmem:[%s196 + $0x3b8] sm:$0xff]
      %v324 = vld [vmem:[%s196 + $0x3c0] sm:$0xff]
      %v325 = vld [vmem:[%s196 + $0x3c8] sm:$0xff]
      %v326 = vld [vmem:[%s196 + $0x3d0] sm:$0xff]
      %v327 = vld [vmem:[%s196 + $0x3d8] sm:$0xff]
      %v328 = vld [vmem:[%s196 + $0x3e0] sm:$0xff]
      %v329 = vld [vmem:[%s196 + $0x3e8] sm:$0xff]
      %v330 = vld [vmem:[%s196 + $0x3f0] sm:$0xff]
      %v331 = vld [vmem:[%s196 + $0x3f8] sm:$0xff]
      %v332 = vld [vmem:[%s1] sm:$0xff]
      %v333 = vld [vmem:[%s1 + $0x8] sm:$0xff]
      %v334 = vld [vmem:[%s1 + $0x10] sm:$0xff]
      %v335 = vld [vmem:[%s1 + $0x18] sm:$0xff]
      %v336 = vld [vmem:[%s1 + $0x20] sm:$0xff]
      %v337 = vld [vmem:[%s1 + $0x28] sm:$0xff]
      %v338 = vld [vmem:[%s1 + $0x30] sm:$0xff]
      %v339 = vld [vmem:[%s1 + $0x38] sm:$0xff]
      %v340 = vld [vmem:[%s1 + $0x40] sm:$0xff]
      %v341 = vld [vmem:[%s1 + $0x48] sm:$0xff]
      %v342 = vld [vmem:[%s1 + $0x50] sm:$0xff]
      %v343 = vld [vmem:[%s1 + $0x58] sm:$0xff]
      %v344 = vld [vmem:[%s1 + $0x60] sm:$0xff]
      %v345 = vld [vmem:[%s1 + $0x68] sm:$0xff]
      %v346 = vld [vmem:[%s1 + $0x70] sm:$0xff]
      %v347 = vld [vmem:[%s1 + $0x78] sm:$0xff]
      %v348 = vld [vmem:[%s1 + $0x80] sm:$0xff]
      %v349 = vld [vmem:[%s1 + $0x88] sm:$0xff]
      %v350 = vld [vmem:[%s1 + $0x90] sm:$0xff]
      %v351 = vld [vmem:[%s1 + $0x98] sm:$0xff]
      %v352 = vld [vmem:[%s1 + $0xa0] sm:$0xff]
      %v353 = vld [vmem:[%s1 + $0xa8] sm:$0xff]
      %v354 = vld [vmem:[%s1 + $0xb0] sm:$0xff]
      %v355 = vld [vmem:[%s1 + $0xb8] sm:$0xff]
      %v356 = vld [vmem:[%s1 + $0xc0] sm:$0xff]
      %v357 = vld [vmem:[%s1 + $0xc8] sm:$0xff]
      %v358 = vld [vmem:[%s1 + $0xd0] sm:$0xff]
      %v359 = vld [vmem:[%s1 + $0xd8] sm:$0xff]
      %v360 = vld [vmem:[%s1 + $0xe0] sm:$0xff]
      %v361 = vld [vmem:[%s1 + $0xe8] sm:$0xff]
      %v362 = vld [vmem:[%s1 + $0xf0] sm:$0xff]
      %v363 = vld [vmem:[%s1 + $0xf8] sm:$0xff]
      %364 = vmatprep.subr.mxu0 0.0
      %365 = vmatpush1.msra.mxu0 %v347
      %366 = vmatprep.subr.mxu0 0.0
      %367 = vmatpush1.msra.mxu0 %v346
      %368 = vmatprep.subr.mxu0 0.0
      %369 = vmatpush1.msra.mxu0 %v345
      %370 = vmatprep.subr.mxu0 0.0
      %371 = vmatpush1.msra.mxu0 %v344
      %372 = vmatprep.subr.mxu0 0.0
      %373 = vmatpush1.msra.mxu0 %v343
      %374 = vmatprep.subr.mxu0 0.0
      %375 = vmatpush1.msra.mxu0 %v342
      %376 = vmatprep.subr.mxu0 0.0
      %377 = vmatpush1.msra.mxu0 %v341
      %378 = vmatprep.subr.mxu0 0.0
      %379 = vmatpush1.msra.mxu0 %v340
      %380 = vmatprep.subr.mxu0 0.0
      %381 = vmatpush1.msra.mxu0 %v339
      %382 = vmatprep.subr.mxu0 0.0
      %383 = vmatpush1.msra.mxu0 %v338
      %384 = vmatprep.subr.mxu0 0.0
      %385 = vmatpush1.msra.mxu0 %v337
      %386 = vmatprep.subr.mxu0 0.0
      %387 = vmatpush1.msra.mxu0 %v336
      %388 = vmatprep.subr.mxu0 0.0
      %389 = vmatpush1.msra.mxu0 %v335
      %390 = vmatprep.subr.mxu0 0.0
      %391 = vmatpush1.msra.mxu0 %v334
      %392 = vmatprep.subr.mxu0 0.0
      %393 = vmatpush1.msra.mxu0 %v333
      %394 = vmatprep.subr.mxu0 0.0
      %395 = vmatpush1.msra.mxu0 %v332
      %396 = vmatprep.subr.mxu0 0.0
      %397 = vmatpush2.msra.mxu0 %v363
      %398 = vmatprep.subr.mxu0 0.0
      %399 = vmatpush2.msra.mxu0 %v362
      %400 = vmatprep.subr.mxu0 0.0
      %401 = vmatpush2.msra.mxu0 %v361
      %402 = vmatprep.subr.mxu0 0.0
      %403 = vmatpush2.msra.mxu0 %v360
      %404 = vmatprep.subr.mxu0 0.0
      %405 = vmatpush2.msra.mxu0 %v359
      %406 = vmatprep.subr.mxu0 0.0
      %407 = vmatpush2.msra.mxu0 %v358
      %408 = vmatprep.subr.mxu0 0.0
      %409 = vmatpush2.msra.mxu0 %v357
      %410 = vmatprep.subr.mxu0 0.0
      %411 = vmatpush2.msra.mxu0 %v356
      %412 = vmatprep.subr.mxu0 0.0
      %413 = vmatpush2.msra.mxu0 %v355
      %414 = vmatprep.subr.mxu0 0.0
      %415 = vmatpush2.msra.mxu0 %v354
      %416 = vmatprep.subr.mxu0 0.0
      %417 = vmatpush2.msra.mxu0 %v353
      %418 = vmatprep.subr.mxu0 0.0
      %419 = vmatpush2.msra.mxu0 %v352
      %420 = vmatprep.subr.mxu0 0.0
      %421 = vmatpush2.msra.mxu0 %v351
      %422 = vmatprep.subr.mxu0 0.0
      %423 = vmatpush2.msra.mxu0 %v350
      %424 = vmatprep.subr.mxu0 0.0
      %425 = vmatpush2.msra.mxu0 %v349
      %426 = vmatprep.subr.mxu0 0.0
      %427 = vmatpush2.msra.mxu0 %v348
      %428 = vmatprep.mubr.f32.mxu0 %v205
      %429 = vmatmul.mubr.f32.gmra.mxu0 %v204
      %v430 = vpop.f32.mrf.mxu0
      %v431 = vadd.f32 0.0, %v430
      %v432 = vpop.f32.mrf.mxu0
      %433 = vmatprep.mubr.f32.mxu0 %v207
      %434 = vmatmul.mubr.f32.gmra.mxu0 %v206
      %v435 = vpop.f32.mrf.mxu0
      %v436 = vadd.f32 0.0, %v435
      %v437 = vpop.f32.mrf.mxu0
      %438 = vmatprep.mubr.f32.mxu0 %v209
      %439 = vmatmul.mubr.f32.gmra.mxu0 %v208
      %v440 = vpop.f32.mrf.mxu0
      %v441 = vadd.f32 0.0, %v440
      %v442 = vpop.f32.mrf.mxu0
      %443 = vmatprep.mubr.f32.mxu0 %v211
      %444 = vmatmul.mubr.f32.gmra.mxu0 %v210
      %v445 = vpop.f32.mrf.mxu0
      %v446 = vadd.f32 0.0, %v445
      %v447 = vpop.f32.mrf.mxu0
      %448 = vmatprep.mubr.f32.mxu0 %v213
      %449 = vmatmul.mubr.f32.gmra.mxu0 %v212
      %v450 = vpop.f32.mrf.mxu0
      %v451 = vadd.f32 0.0, %v450
      %v452 = vpop.f32.mrf.mxu0
      %453 = vmatprep.mubr.f32.mxu0 %v215
      %454 = vmatmul.mubr.f32.gmra.mxu0 %v214
      %v455 = vpop.f32.mrf.mxu0
      %v456 = vadd.f32 0.0, %v455
      %v457 = vpop.f32.mrf.mxu0
      %458 = vmatprep.mubr.f32.mxu0 %v217
      %459 = vmatmul.mubr.f32.gmra.mxu0 %v216
      %v460 = vpop.f32.mrf.mxu0
      %v461 = vadd.f32 0.0, %v460
      %v462 = vpop.f32.mrf.mxu0
      %463 = vmatprep.mubr.f32.mxu0 %v219
      %464 = vmatmul.mubr.f32.gmra.mxu0 %v218
      %v465 = vpop.f32.mrf.mxu0
      %v466 = vadd.f32 0.0, %v465
      %v467 = vpop.f32.mrf.mxu0
      %468 = vmatprep.mubr.f32.mxu0 %v221
      %469 = vmatmul.mubr.f32.gmra.mxu0 %v220
      %v470 = vpop.f32.mrf.mxu0
      %v471 = vadd.f32 0.0, %v470
      %v472 = vpop.f32.mrf.mxu0
      %473 = vmatprep.mubr.f32.mxu0 %v223
      %474 = vmatmul.mubr.f32.gmra.mxu0 %v222
      %v475 = vpop.f32.mrf.mxu0
      %v476 = vadd.f32 0.0, %v475
      %v477 = vpop.f32.mrf.mxu0
      %478 = vmatprep.mubr.f32.mxu0 %v225
      %479 = vmatmul.mubr.f32.gmra.mxu0 %v224
      %v480 = vpop.f32.mrf.mxu0
      %v481 = vadd.f32 0.0, %v480
      %v482 = vpop.f32.mrf.mxu0
      %483 = vmatprep.mubr.f32.mxu0 %v227
      %484 = vmatmul.mubr.f32.gmra.mxu0 %v226
      %v485 = vpop.f32.mrf.mxu0
      %v486 = vadd.f32 0.0, %v485
      %v487 = vpop.f32.mrf.mxu0
      %488 = vmatprep.mubr.f32.mxu0 %v229
      %489 = vmatmul.mubr.f32.gmra.mxu0 %v228
      %v490 = vpop.f32.mrf.mxu0
      %v491 = vadd.f32 0.0, %v490
      %v492 = vpop.f32.mrf.mxu0
      %493 = vmatprep.mubr.f32.mxu0 %v231
      %494 = vmatmul.mubr.f32.gmra.mxu0 %v230
      %v495 = vpop.f32.mrf.mxu0
      %v496 = vadd.f32 0.0, %v495
      %v497 = vpop.f32.mrf.mxu0
      %498 = vmatprep.mubr.f32.mxu0 %v233
      %499 = vmatmul.mubr.f32.gmra.mxu0 %v232
      %v500 = vpop.f32.mrf.mxu0
      %v501 = vadd.f32 0.0, %v500
      %v502 = vpop.f32.mrf.mxu0
      %503 = vmatprep.mubr.f32.mxu0 %v235
      %504 = vmatmul.mubr.f32.gmra.mxu0 %v234
      %v505 = vpop.f32.mrf.mxu0
      %v506 = vadd.f32 0.0, %v505
      %v507 = vpop.f32.mrf.mxu0
      %508 = vmatprep.mubr.f32.mxu0 %v237
      %509 = vmatmul.mubr.f32.gmra.mxu0 %v236
      %v510 = vpop.f32.mrf.mxu0
      %v511 = vadd.f32 0.0, %v510
      %v512 = vpop.f32.mrf.mxu0
      %513 = vmatprep.mubr.f32.mxu0 %v239
      %514 = vmatmul.mubr.f32.gmra.mxu0 %v238
      %v515 = vpop.f32.mrf.mxu0
      %v516 = vadd.f32 0.0, %v515
      %v517 = vpop.f32.mrf.mxu0
      %518 = vmatprep.mubr.f32.mxu0 %v241
      %519 = vmatmul.mubr.f32.gmra.mxu0 %v240
      %v520 = vpop.f32.mrf.mxu0
      %v521 = vadd.f32 0.0, %v520
      %v522 = vpop.f32.mrf.mxu0
      %523 = vmatprep.mubr.f32.mxu0 %v243
      %524 = vmatmul.mubr.f32.gmra.mxu0 %v242
      %v525 = vpop.f32.mrf.mxu0
      %v526 = vadd.f32 0.0, %v525
      %v527 = vpop.f32.mrf.mxu0
      %528 = vmatprep.mubr.f32.mxu0 %v245
      %529 = vmatmul.mubr.f32.gmra.mxu0 %v244
      %v530 = vpop.f32.mrf.mxu0
      %v531 = vadd.f32 0.0, %v530
      %v532 = vpop.f32.mrf.mxu0
      %533 = vmatprep.mubr.f32.mxu0 %v247
      %534 = vmatmul.mubr.f32.gmra.mxu0 %v246
      %v535 = vpop.f32.mrf.mxu0
      %v536 = vadd.f32 0.0, %v535
      %v537 = vpop.f32.mrf.mxu0
      %538 = vmatprep.mubr.f32.mxu0 %v249
      %539 = vmatmul.mubr.f32.gmra.mxu0 %v248
      %v540 = vpop.f32.mrf.mxu0
      %v541 = vadd.f32 0.0, %v540
      %v542 = vpop.f32.mrf.mxu0
      %543 = vmatprep.mubr.f32.mxu0 %v251
      %544 = vmatmul.mubr.f32.gmra.mxu0 %v250
      %v545 = vpop.f32.mrf.mxu0
      %v546 = vadd.f32 0.0, %v545
      %v547 = vpop.f32.mrf.mxu0
      %548 = vmatprep.mubr.f32.mxu0 %v253
      %549 = vmatmul.mubr.f32.gmra.mxu0 %v252
      %v550 = vpop.f32.mrf.mxu0
      %v551 = vadd.f32 0.0, %v550
      %v552 = vpop.f32.mrf.mxu0
      %553 = vmatprep.mubr.f32.mxu0 %v255
      %554 = vmatmul.mubr.f32.gmra.mxu0 %v254
      %v555 = vpop.f32.mrf.mxu0
      %v556 = vadd.f32 0.0, %v555
      %v557 = vpop.f32.mrf.mxu0
      %558 = vmatprep.mubr.f32.mxu0 %v257
      %559 = vmatmul.mubr.f32.gmra.mxu0 %v256
      %v560 = vpop.f32.mrf.mxu0
      %v561 = vadd.f32 0.0, %v560
      %v562 = vpop.f32.mrf.mxu0
      %563 = vmatprep.mubr.f32.mxu0 %v259
      %564 = vmatmul.mubr.f32.gmra.mxu0 %v258
      %v565 = vpop.f32.mrf.mxu0
      %v566 = vadd.f32 0.0, %v565
      %v567 = vpop.f32.mrf.mxu0
      %568 = vmatprep.mubr.f32.mxu0 %v261
      %569 = vmatmul.mubr.f32.gmra.mxu0 %v260
      %v570 = vpop.f32.mrf.mxu0
      %v571 = vadd.f32 0.0, %v570
      %v572 = vpop.f32.mrf.mxu0
      %573 = vmatprep.mubr.f32.mxu0 %v263
      %574 = vmatmul.mubr.f32.gmra.mxu0 %v262
      %v575 = vpop.f32.mrf.mxu0
      %v576 = vadd.f32 0.0, %v575
      %v577 = vpop.f32.mrf.mxu0
      %578 = vmatprep.mubr.f32.mxu0 %v265
      %579 = vmatmul.mubr.f32.gmra.mxu0 %v264
      %v580 = vpop.f32.mrf.mxu0
      %v581 = vadd.f32 0.0, %v580
      %v582 = vpop.f32.mrf.mxu0
      %583 = vmatprep.mubr.f32.mxu0 %v267
      %584 = vmatmul.mubr.f32.gmra.mxu0 %v266
      %v585 = vpop.f32.mrf.mxu0
      %v586 = vadd.f32 0.0, %v585
      %v587 = vpop.f32.mrf.mxu0
      %588 = vmatprep.mubr.f32.mxu0 %v269
      %589 = vmatmul.mubr.f32.gmra.mxu0 %v268
      %v590 = vpop.f32.mrf.mxu0
      %v591 = vadd.f32 0.0, %v590
      %v592 = vpop.f32.mrf.mxu0
      %593 = vmatprep.mubr.f32.mxu0 %v271
      %594 = vmatmul.mubr.f32.gmra.mxu0 %v270
      %v595 = vpop.f32.mrf.mxu0
      %v596 = vadd.f32 0.0, %v595
      %v597 = vpop.f32.mrf.mxu0
      %598 = vmatprep.mubr.f32.mxu0 %v273
      %599 = vmatmul.mubr.f32.gmra.mxu0 %v272
      %v600 = vpop.f32.mrf.mxu0
      %v601 = vadd.f32 0.0, %v600
      %v602 = vpop.f32.mrf.mxu0
      %603 = vmatprep.mubr.f32.mxu0 %v275
      %604 = vmatmul.mubr.f32.gmra.mxu0 %v274
      %v605 = vpop.f32.mrf.mxu0
      %v606 = vadd.f32 0.0, %v605
      %v607 = vpop.f32.mrf.mxu0
      %608 = vmatprep.mubr.f32.mxu0 %v277
      %609 = vmatmul.mubr.f32.gmra.mxu0 %v276
      %v610 = vpop.f32.mrf.mxu0
      %v611 = vadd.f32 0.0, %v610
      %v612 = vpop.f32.mrf.mxu0
      %613 = vmatprep.mubr.f32.mxu0 %v279
      %614 = vmatmul.mubr.f32.gmra.mxu0 %v278
      %v615 = vpop.f32.mrf.mxu0
      %v616 = vadd.f32 0.0, %v615
      %v617 = vpop.f32.mrf.mxu0
      %618 = vmatprep.mubr.f32.mxu0 %v281
      %619 = vmatmul.mubr.f32.gmra.mxu0 %v280
      %v620 = vpop.f32.mrf.mxu0
      %v621 = vadd.f32 0.0, %v620
      %v622 = vpop.f32.mrf.mxu0
      %623 = vmatprep.mubr.f32.mxu0 %v283
      %624 = vmatmul.mubr.f32.gmra.mxu0 %v282
      %v625 = vpop.f32.mrf.mxu0
      %v626 = vadd.f32 0.0, %v625
      %v627 = vpop.f32.mrf.mxu0
      %628 = vmatprep.mubr.f32.mxu0 %v285
      %629 = vmatmul.mubr.f32.gmra.mxu0 %v284
      %v630 = vpop.f32.mrf.mxu0
      %v631 = vadd.f32 0.0, %v630
      %v632 = vpop.f32.mrf.mxu0
      %633 = vmatprep.mubr.f32.mxu0 %v287
      %634 = vmatmul.mubr.f32.gmra.mxu0 %v286
      %v635 = vpop.f32.mrf.mxu0
      %v636 = vadd.f32 0.0, %v635
      %v637 = vpop.f32.mrf.mxu0
      %638 = vmatprep.mubr.f32.mxu0 %v289
      %639 = vmatmul.mubr.f32.gmra.mxu0 %v288
      %v640 = vpop.f32.mrf.mxu0
      %v641 = vadd.f32 0.0, %v640
      %v642 = vpop.f32.mrf.mxu0
      %643 = vmatprep.mubr.f32.mxu0 %v291
      %644 = vmatmul.mubr.f32.gmra.mxu0 %v290
      %v645 = vpop.f32.mrf.mxu0
      %v646 = vadd.f32 0.0, %v645
      %v647 = vpop.f32.mrf.mxu0
      %648 = vmatprep.mubr.f32.mxu0 %v293
      %649 = vmatmul.mubr.f32.gmra.mxu0 %v292
      %v650 = vpop.f32.mrf.mxu0
      %v651 = vadd.f32 0.0, %v650
      %v652 = vpop.f32.mrf.mxu0
      %653 = vmatprep.mubr.f32.mxu0 %v295
      %654 = vmatmul.mubr.f32.gmra.mxu0 %v294
      %v655 = vpop.f32.mrf.mxu0
      %v656 = vadd.f32 0.0, %v655
      %v657 = vpop.f32.mrf.mxu0
      %658 = vmatprep.mubr.f32.mxu0 %v297
      %659 = vmatmul.mubr.f32.gmra.mxu0 %v296
      %v660 = vpop.f32.mrf.mxu0
      %v661 = vadd.f32 0.0, %v660
      %v662 = vpop.f32.mrf.mxu0
      %663 = vmatprep.mubr.f32.mxu0 %v299
      %664 = vmatmul.mubr.f32.gmra.mxu0 %v298
      %v665 = vpop.f32.mrf.mxu0
      %v666 = vadd.f32 0.0, %v665
      %v667 = vpop.f32.mrf.mxu0
      %668 = vmatprep.mubr.f32.mxu0 %v301
      %669 = vmatmul.mubr.f32.gmra.mxu0 %v300
      %v670 = vpop.f32.mrf.mxu0
      %v671 = vadd.f32 0.0, %v670
      %v672 = vpop.f32.mrf.mxu0
      %673 = vmatprep.mubr.f32.mxu0 %v303
      %674 = vmatmul.mubr.f32.gmra.mxu0 %v302
      %v675 = vpop.f32.mrf.mxu0
      %v676 = vadd.f32 0.0, %v675
      %v677 = vpop.f32.mrf.mxu0
      %678 = vmatprep.mubr.f32.mxu0 %v305
      %679 = vmatmul.mubr.f32.gmra.mxu0 %v304
      %v680 = vpop.f32.mrf.mxu0
      %v681 = vadd.f32 0.0, %v680
      %v682 = vpop.f32.mrf.mxu0
      %683 = vmatprep.mubr.f32.mxu0 %v307
      %684 = vmatmul.mubr.f32.gmra.mxu0 %v306
      %v685 = vpop.f32.mrf.mxu0
      %v686 = vadd.f32 0.0, %v685
      %v687 = vpop.f32.mrf.mxu0
      %688 = vmatprep.mubr.f32.mxu0 %v309
      %689 = vmatmul.mubr.f32.gmra.mxu0 %v308
      %v690 = vpop.f32.mrf.mxu0
      %v691 = vadd.f32 0.0, %v690
      %v692 = vpop.f32.mrf.mxu0
      %693 = vmatprep.mubr.f32.mxu0 %v311
      %694 = vmatmul.mubr.f32.gmra.mxu0 %v310
      %v695 = vpop.f32.mrf.mxu0
      %v696 = vadd.f32 0.0, %v695
      %v697 = vpop.f32.mrf.mxu0
      %698 = vmatprep.mubr.f32.mxu0 %v313
      %699 = vmatmul.mubr.f32.gmra.mxu0 %v312
      %v700 = vpop.f32.mrf.mxu0
      %v701 = vadd.f32 0.0, %v700
      %v702 = vpop.f32.mrf.mxu0
      %703 = vmatprep.mubr.f32.mxu0 %v315
      %704 = vmatmul.mubr.f32.gmra.mxu0 %v314
      %v705 = vpop.f32.mrf.mxu0
      %v706 = vadd.f32 0.0, %v705
      %v707 = vpop.f32.mrf.mxu0
      %708 = vmatprep.mubr.f32.mxu0 %v317
      %709 = vmatmul.mubr.f32.gmra.mxu0 %v316
      %v710 = vpop.f32.mrf.mxu0
      %v711 = vadd.f32 0.0, %v710
      %v712 = vpop.f32.mrf.mxu0
      %713 = vmatprep.mubr.f32.mxu0 %v319
      %714 = vmatmul.mubr.f32.gmra.mxu0 %v318
      %v715 = vpop.f32.mrf.mxu0
      %v716 = vadd.f32 0.0, %v715
      %v717 = vpop.f32.mrf.mxu0
      %718 = vmatprep.mubr.f32.mxu0 %v321
      %719 = vmatmul.mubr.f32.gmra.mxu0 %v320
      %v720 = vpop.f32.mrf.mxu0
      %v721 = vadd.f32 0.0, %v720
      %v722 = vpop.f32.mrf.mxu0
      %723 = vmatprep.mubr.f32.mxu0 %v323
      %724 = vmatmul.mubr.f32.gmra.mxu0 %v322
      %v725 = vpop.f32.mrf.mxu0
      %v726 = vadd.f32 0.0, %v725
      %v727 = vpop.f32.mrf.mxu0
      %728 = vmatprep.mubr.f32.mxu0 %v325
      %729 = vmatmul.mubr.f32.gmra.mxu0 %v324
      %v730 = vpop.f32.mrf.mxu0
      %v731 = vadd.f32 0.0, %v730
      %v732 = vpop.f32.mrf.mxu0
      %733 = vmatprep.mubr.f32.mxu0 %v327
      %734 = vmatmul.mubr.f32.gmra.mxu0 %v326
      %v735 = vpop.f32.mrf.mxu0
      %v736 = vadd.f32 0.0, %v735
      %v737 = vpop.f32.mrf.mxu0
      %738 = vmatprep.mubr.f32.mxu0 %v329
      %739 = vmatmul.mubr.f32.gmra.mxu0 %v328
      %v740 = vpop.f32.mrf.mxu0
      %v741 = vadd.f32 0.0, %v740
      %v742 = vpop.f32.mrf.mxu0
      %743 = vmatprep.mubr.f32.mxu0 %v331
      %744 = vmatmul.mubr.f32.gmra.mxu0 %v330
      %v745 = vpop.f32.mrf.mxu0
      %v746 = vadd.f32 0.0, %v745
      %v747 = vpop.f32.mrf.mxu0
      %748 = vdwg.mxu0
      %v749 = vld [vmem:[%s2] sm:$0x1]
      %v751 = vlaneseq
      %v752 = vshrl.u32 %v751, 7
      %v753 = vsub.s32 0, %v752
      %v754 = vrot.slane %v749, %v753
      %v756 = vmul.f32 %v431, %v754
      %v757 = vmul.f32 %v436, %v754
      %v758 = vmul.f32 %v441, %v754
      %v759 = vmul.f32 %v446, %v754
      %v760 = vmul.f32 %v451, %v754
      %v761 = vmul.f32 %v456, %v754
      %v762 = vmul.f32 %v461, %v754
      %v763 = vmul.f32 %v466, %v754
      %v764 = vmul.f32 %v471, %v754
      %v765 = vmul.f32 %v476, %v754
      %v766 = vmul.f32 %v481, %v754
      %v767 = vmul.f32 %v486, %v754
      %v768 = vmul.f32 %v491, %v754
      %v769 = vmul.f32 %v496, %v754
      %v770 = vmul.f32 %v501, %v754
      %v771 = vmul.f32 %v506, %v754
      %v772 = vmul.f32 %v511, %v754
      %v773 = vmul.f32 %v516, %v754
      %v774 = vmul.f32 %v521, %v754
      %v775 = vmul.f32 %v526, %v754
      %v776 = vmul.f32 %v531, %v754
      %v777 = vmul.f32 %v536, %v754
      %v778 = vmul.f32 %v541, %v754
      %v779 = vmul.f32 %v546, %v754
      %v780 = vmul.f32 %v551, %v754
      %v781 = vmul.f32 %v556, %v754
      %v782 = vmul.f32 %v561, %v754
      %v783 = vmul.f32 %v566, %v754
      %v784 = vmul.f32 %v571, %v754
      %v785 = vmul.f32 %v576, %v754
      %v786 = vmul.f32 %v581, %v754
      %v787 = vmul.f32 %v586, %v754
      %v788 = vmul.f32 %v591, %v754
      %v789 = vmul.f32 %v596, %v754
      %v790 = vmul.f32 %v601, %v754
      %v791 = vmul.f32 %v606, %v754
      %v792 = vmul.f32 %v611, %v754
      %v793 = vmul.f32 %v616, %v754
      %v794 = vmul.f32 %v621, %v754
      %v795 = vmul.f32 %v626, %v754
      %v796 = vmul.f32 %v631, %v754
      %v797 = vmul.f32 %v636, %v754
      %v798 = vmul.f32 %v641, %v754
      %v799 = vmul.f32 %v646, %v754
      %v800 = vmul.f32 %v651, %v754
      %v801 = vmul.f32 %v656, %v754
      %v802 = vmul.f32 %v661, %v754
      %v803 = vmul.f32 %v666, %v754
      %v804 = vmul.f32 %v671, %v754
      %v805 = vmul.f32 %v676, %v754
      %v806 = vmul.f32 %v681, %v754
      %v807 = vmul.f32 %v686, %v754
      %v808 = vmul.f32 %v691, %v754
      %v809 = vmul.f32 %v696, %v754
      %v810 = vmul.f32 %v701, %v754
      %v811 = vmul.f32 %v706, %v754
      %v812 = vmul.f32 %v711, %v754
      %v813 = vmul.f32 %v716, %v754
      %v814 = vmul.f32 %v721, %v754
      %v815 = vmul.f32 %v726, %v754
      %v816 = vmul.f32 %v731, %v754
      %v817 = vmul.f32 %v736, %v754
      %v818 = vmul.f32 %v741, %v754
      %v819 = vmul.f32 %v746, %v754
      %v820 = vld [vmem:[%s3] sm:$0x1]
      %v822 = vlaneseq
      %v823 = vshrl.u32 %v822, 7
      %v824 = vsub.s32 0, %v823
      %v825 = vrot.slane %v820, %v824
      %v827 = vadd.f32 %v756, %v825
      %v828 = vadd.f32 %v757, %v825
      %v829 = vadd.f32 %v758, %v825
      %v830 = vadd.f32 %v759, %v825
      %v831 = vadd.f32 %v760, %v825
      %v832 = vadd.f32 %v761, %v825
      %v833 = vadd.f32 %v762, %v825
      %v834 = vadd.f32 %v763, %v825
      %v835 = vadd.f32 %v764, %v825
      %v836 = vadd.f32 %v765, %v825
      %v837 = vadd.f32 %v766, %v825
      %v838 = vadd.f32 %v767, %v825
      %v839 = vadd.f32 %v768, %v825
      %v840 = vadd.f32 %v769, %v825
      %v841 = vadd.f32 %v770, %v825
      %v842 = vadd.f32 %v771, %v825
      %v843 = vadd.f32 %v772, %v825
      %v844 = vadd.f32 %v773, %v825
      %v845 = vadd.f32 %v774, %v825
      %v846 = vadd.f32 %v775, %v825
      %v847 = vadd.f32 %v776, %v825
      %v848 = vadd.f32 %v777, %v825
      %v849 = vadd.f32 %v778, %v825
      %v850 = vadd.f32 %v779, %v825
      %v851 = vadd.f32 %v780, %v825
      %v852 = vadd.f32 %v781, %v825
      %v853 = vadd.f32 %v782, %v825
      %v854 = vadd.f32 %v783, %v825
      %v855 = vadd.f32 %v784, %v825
      %v856 = vadd.f32 %v785, %v825
      %v857 = vadd.f32 %v786, %v825
      %v858 = vadd.f32 %v787, %v825
      %v859 = vadd.f32 %v788, %v825
      %v860 = vadd.f32 %v789, %v825
      %v861 = vadd.f32 %v790, %v825
      %v862 = vadd.f32 %v791, %v825
      %v863 = vadd.f32 %v792, %v825
      %v864 = vadd.f32 %v793, %v825
      %v865 = vadd.f32 %v794, %v825
      %v866 = vadd.f32 %v795, %v825
      %v867 = vadd.f32 %v796, %v825
      %v868 = vadd.f32 %v797, %v825
      %v869 = vadd.f32 %v798, %v825
      %v870 = vadd.f32 %v799, %v825
      %v871 = vadd.f32 %v800, %v825
      %v872 = vadd.f32 %v801, %v825
      %v873 = vadd.f32 %v802, %v825
      %v874 = vadd.f32 %v803, %v825
      %v875 = vadd.f32 %v804, %v825
      %v876 = vadd.f32 %v805, %v825
      %v877 = vadd.f32 %v806, %v825
      %v878 = vadd.f32 %v807, %v825
      %v879 = vadd.f32 %v808, %v825
      %v880 = vadd.f32 %v809, %v825
      %v881 = vadd.f32 %v810, %v825
      %v882 = vadd.f32 %v811, %v825
      %v883 = vadd.f32 %v812, %v825
      %v884 = vadd.f32 %v813, %v825
      %v885 = vadd.f32 %v814, %v825
      %v886 = vadd.f32 %v815, %v825
      %v887 = vadd.f32 %v816, %v825
      %v888 = vadd.f32 %v817, %v825
      %v889 = vadd.f32 %v818, %v825
      %v890 = vadd.f32 %v819, %v825
      %v891 = vmax.f32 %v827, 0.0
      %v892 = vmax.f32 %v828, 0.0
      %v893 = vmax.f32 %v829, 0.0
      %v894 = vmax.f32 %v830, 0.0
      %v895 = vmax.f32 %v831, 0.0
      %v896 = vmax.f32 %v832, 0.0
      %v897 = vmax.f32 %v833, 0.0
      %v898 = vmax.f32 %v834, 0.0
      %v899 = vmax.f32 %v835, 0.0
      %v900 = vmax.f32 %v836, 0.0
      %v901 = vmax.f32 %v837, 0.0
      %v902 = vmax.f32 %v838, 0.0
      %v903 = vmax.f32 %v839, 0.0
      %v904 = vmax.f32 %v840, 0.0
      %v905 = vmax.f32 %v841, 0.0
      %v906 = vmax.f32 %v842, 0.0
      %v907 = vmax.f32 %v843, 0.0
      %v908 = vmax.f32 %v844, 0.0
      %v909 = vmax.f32 %v845, 0.0
      %v910 = vmax.f32 %v846, 0.0
      %v911 = vmax.f32 %v847, 0.0
      %v912 = vmax.f32 %v848, 0.0
      %v913 = vmax.f32 %v849, 0.0
      %v914 = vmax.f32 %v850, 0.0
      %v915 = vmax.f32 %v851, 0.0
      %v916 = vmax.f32 %v852, 0.0
      %v917 = vmax.f32 %v853, 0.0
      %v918 = vmax.f32 %v854, 0.0
      %v919 = vmax.f32 %v855, 0.0
      %v920 = vmax.f32 %v856, 0.0
      %v921 = vmax.f32 %v857, 0.0
      %v922 = vmax.f32 %v858, 0.0
      %v923 = vmax.f32 %v859, 0.0
      %v924 = vmax.f32 %v860, 0.0
      %v925 = vmax.f32 %v861, 0.0
      %v926 = vmax.f32 %v862, 0.0
      %v927 = vmax.f32 %v863, 0.0
      %v928 = vmax.f32 %v864, 0.0
      %v929 = vmax.f32 %v865, 0.0
      %v930 = vmax.f32 %v866, 0.0
      %v931 = vmax.f32 %v867, 0.0
      %v932 = vmax.f32 %v868, 0.0
      %v933 = vmax.f32 %v869, 0.0
      %v934 = vmax.f32 %v870, 0.0
      %v935 = vmax.f32 %v871, 0.0
      %v936 = vmax.f32 %v872, 0.0
      %v937 = vmax.f32 %v873, 0.0
      %v938 = vmax.f32 %v874, 0.0
      %v939 = vmax.f32 %v875, 0.0
      %v940 = vmax.f32 %v876, 0.0
      %v941 = vmax.f32 %v877, 0.0
      %v942 = vmax.f32 %v878, 0.0
      %v943 = vmax.f32 %v879, 0.0
      %v944 = vmax.f32 %v880, 0.0
      %v945 = vmax.f32 %v881, 0.0
      %v946 = vmax.f32 %v882, 0.0
      %v947 = vmax.f32 %v883, 0.0
      %v948 = vmax.f32 %v884, 0.0
      %v949 = vmax.f32 %v885, 0.0
      %v950 = vmax.f32 %v886, 0.0
      %v951 = vmax.f32 %v887, 0.0
      %v952 = vmax.f32 %v888, 0.0
      %v953 = vmax.f32 %v889, 0.0
      %v954 = vmax.f32 %v890, 0.0
      %955 = vst [vmem:[%s202] sm:$0xff] %v891
      %956 = vst [vmem:[%s202 + $0x8] sm:$0xff] %v892
      %957 = vst [vmem:[%s202 + $0x10] sm:$0xff] %v893
      %958 = vst [vmem:[%s202 + $0x18] sm:$0xff] %v894
      %959 = vst [vmem:[%s202 + $0x20] sm:$0xff] %v895
      %960 = vst [vmem:[%s202 + $0x28] sm:$0xff] %v896
      %961 = vst [vmem:[%s202 + $0x30] sm:$0xff] %v897
      %962 = vst [vmem:[%s202 + $0x38] sm:$0xff] %v898
      %963 = vst [vmem:[%s202 + $0x40] sm:$0xff] %v899
      %964 = vst [vmem:[%s202 + $0x48] sm:$0xff] %v900
      %965 = vst [vmem:[%s202 + $0x50] sm:$0xff] %v901
      %966 = vst [vmem:[%s202 + $0x58] sm:$0xff] %v902
      %967 = vst [vmem:[%s202 + $0x60] sm:$0xff] %v903
      %968 = vst [vmem:[%s202 + $0x68] sm:$0xff] %v904
      %969 = vst [vmem:[%s202 + $0x70] sm:$0xff] %v905
      %970 = vst [vmem:[%s202 + $0x78] sm:$0xff] %v906
      %971 = vst [vmem:[%s202 + $0x80] sm:$0xff] %v907
      %972 = vst [vmem:[%s202 + $0x88] sm:$0xff] %v908
      %973 = vst [vmem:[%s202 + $0x90] sm:$0xff] %v909
      %974 = vst [vmem:[%s202 + $0x98] sm:$0xff] %v910
      %975 = vst [vmem:[%s202 + $0xa0] sm:$0xff] %v911
      %976 = vst [vmem:[%s202 + $0xa8] sm:$0xff] %v912
      %977 = vst [vmem:[%s202 + $0xb0] sm:$0xff] %v913
      %978 = vst [vmem:[%s202 + $0xb8] sm:$0xff] %v914
      %979 = vst [vmem:[%s202 + $0xc0] sm:$0xff] %v915
      %980 = vst [vmem:[%s202 + $0xc8] sm:$0xff] %v916
      %981 = vst [vmem:[%s202 + $0xd0] sm:$0xff] %v917
      %982 = vst [vmem:[%s202 + $0xd8] sm:$0xff] %v918
      %983 = vst [vmem:[%s202 + $0xe0] sm:$0xff] %v919
      %984 = vst [vmem:[%s202 + $0xe8] sm:$0xff] %v920
      %985 = vst [vmem:[%s202 + $0xf0] sm:$0xff] %v921
      %986 = vst [vmem:[%s202 + $0xf8] sm:$0xff] %v922
      %987 = vst [vmem:[%s202 + $0x100] sm:$0xff] %v923
      %988 = vst [vmem:[%s202 + $0x108] sm:$0xff] %v924
      %989 = vst [vmem:[%s202 + $0x110] sm:$0xff] %v925
      %990 = vst [vmem:[%s202 + $0x118] sm:$0xff] %v926
      %991 = vst [vmem:[%s202 + $0x120] sm:$0xff] %v927
      %992 = vst [vmem:[%s202 + $0x128] sm:$0xff] %v928
      %993 = vst [vmem:[%s202 + $0x130] sm:$0xff] %v929
      %994 = vst [vmem:[%s202 + $0x138] sm:$0xff] %v930
      %995 = vst [vmem:[%s202 + $0x140] sm:$0xff] %v931
      %996 = vst [vmem:[%s202 + $0x148] sm:$0xff] %v932
      %997 = vst [vmem:[%s202 + $0x150] sm:$0xff] %v933
      %998 = vst [vmem:[%s202 + $0x158] sm:$0xff] %v934
      %999 = vst [vmem:[%s202 + $0x160] sm:$0xff] %v935
      %1000 = vst [vmem:[%s202 + $0x168] sm:$0xff] %v936
      %1001 = vst [vmem:[%s202 + $0x170] sm:$0xff] %v937
      %1002 = vst [vmem:[%s202 + $0x178] sm:$0xff] %v938
      %1003 = vst [vmem:[%s202 + $0x180] sm:$0xff] %v939
      %1004 = vst [vmem:[%s202 + $0x188] sm:$0xff] %v940
      %1005 = vst [vmem:[%s202 + $0x190] sm:$0xff] %v941
      %1006 = vst [vmem:[%s202 + $0x198] sm:$0xff] %v942
      %1007 = vst [vmem:[%s202 + $0x1a0] sm:$0xff] %v943
      %1008 = vst [vmem:[%s202 + $0x1a8] sm:$0xff] %v944
      %1009 = vst [vmem:[%s202 + $0x1b0] sm:$0xff] %v945
      %1010 = vst [vmem:[%s202 + $0x1b8] sm:$0xff] %v946
      %1011 = vst [vmem:[%s202 + $0x1c0] sm:$0xff] %v947
      %1012 = vst [vmem:[%s202 + $0x1c8] sm:$0xff] %v948
      %1013 = vst [vmem:[%s202 + $0x1d0] sm:$0xff] %v949
      %1014 = vst [vmem:[%s202 + $0x1d8] sm:$0xff] %v950
      %1015 = vst [vmem:[%s202 + $0x1e0] sm:$0xff] %v951
      %1016 = vst [vmem:[%s202 + $0x1e8] sm:$0xff] %v952
      %1017 = vst [vmem:[%s202 + $0x1f0] sm:$0xff] %v953
      %1018 = vst [vmem:[%s202 + $0x1f8] sm:$0xff] %v954
      %s1019 = smul.u32 64, %s15
      %p1020 = scmp.lt.s32.totalorder %s1019, 127
      %s1021 = scalar_select %p1020, %s1019, 127
      %s1022 = smul.addr %s1021, 8
      %s1023 = scalar_lea.vmem %s4, %s1022
      // Predicated region
      $region37: #{up_double_3d_conv.7} parent=35 // pred_check
        %p1024 = pneg %p122
      $region38: #{up_double_3d_conv.7} parent=35 // pred_check_branch
        %1026 = sbr.rel (%p1024) target = $region40
      $region39: #{up_double_3d_conv.7} parent=35 // pred_region
        %s1027 = smul.u32 64, %s15
      $region40: #{up_double_3d_conv.7} parent=35 // pred_fallthru
        _
    $region36: #{up_double_3d_conv.7} parent=5 // pred_fallthru
      _
    %p1028 = scmp.le.s32.totalorder 2, %s10
    // Predicated region
    $region41: #{up_double_3d_conv.7} parent=5 // pred_check
      %p1029 = pneg %p1028
    $region42: #{up_double_3d_conv.7} parent=5 // pred_check_branch
      %1031 = sbr.rel (%p1029) target = $region44
    $region43: #{up_double_3d_conv.7} parent=5 // pred_region
      %s1032 = ssub.s32 %s10, 2
      // Predicated region
      $region45: #{up_double_3d_conv.7} parent=43 // pred_check
        %p1033 = pneg %p128
      $region46: #{up_double_3d_conv.7} parent=43 // pred_check_branch
        %1035 = sbr.rel (%p1033) target = $region48
      $region47: #{up_double_3d_conv.7} parent=43 // pred_region
        %s1036 = smul.u32 64, %s16
        %p1037 = scmp.lt.s32.totalorder %s1036, 127
        %s1038 = scalar_select %p1037, %s1036, 127
        %s1039 = smul.addr %s1038, 8
        %s1040 = scalar_lea.vmem %s4, %s1039
      $region48: #{up_double_3d_conv.7} parent=43 // pred_fallthru
        _
    $region44: #{up_double_3d_conv.7} parent=5 // pred_fallthru
      _
  $region6: #{up_double_3d_conv.7} parent=0 // loop_footer
    %s14 = sadd.s32 1, %s10
  $region7: #{up_double_3d_conv.7} parent=0 // loop_footer_branch
    %9 = sbr.rel target = $region3
  $region8: #{up_double_3d_conv.7} parent=0 // loop_exit
    _

</llo_original>
